<compile_context>
chip_gen: v5e
topology: v5e:2x2
jax: 0.10.0
libtpu: 0.0.40
codegen_flags: <defaults>
</compile_context>

<pallas_src>
import functools

import jax
import jax.numpy as jnp
from jax.experimental import pallas as pl
from jax.experimental.pallas import tpu as pltpu


# ----------------------------------------------------------------------------
# Pallas kernel
# ----------------------------------------------------------------------------
def _lstm_cell(gates, c_prev, H):
    """PyTorch gate order (i, f, g, o): cell update from pre-activation gates."""
    i = jax.nn.sigmoid(gates[:, 0 * H:1 * H])
    f = jax.nn.sigmoid(gates[:, 1 * H:2 * H])
    g = jnp.tanh(gates[:, 2 * H:3 * H])
    o = jax.nn.sigmoid(gates[:, 3 * H:4 * H])
    c_new = f * c_prev + i * g
    h_new = o * jnp.tanh(c_new)
    return h_new, c_new


def encdec_kernel(enc_x_ref, e_wih0_ref, e_b0_ref, e_whh0_ref,
                  e_wih1_ref, e_whh1_ref, e_b1_ref,
                  dec_x_ref, d_wih0_ref, d_b0_ref, d_whh0_ref,
                  d_wih1_ref, d_whh1_ref, d_b1_ref,
                  wexp_ref, bexp_ref,
                  out_ref, top_sc, *, B, S, G, H):
    """Whole EncDecWords forward in one kernel (empty grid, unrolled time loops).

    enc_x : (S*B, E)  time-major embedded encoder inputs
    dec_x : (G*B, E)  time-major embedded (teacher-forced) decoder inputs
    *_wih0: (E, 4H)   *_whh0/_wih1/_whh1: (H, 4H)   *_b0/_b1: (1, 4H)
    wexp  : (H, V_pad)   bexp: (1, V_pad)  (pad columns biased to -1e30)
    out   : (G*B, V_pad) log-probs, time-major rows [t*B : (t+1)*B]
    top_sc: (G*B, H)  VMEM scratch holding decoder top-layer hiddens
    """

    def run_stack(xw0, whh0, wih1, whh1, b1, h0, c0, h1, c1, T, per_step=None):
        for t in range(T):                                # static, fully unrolled
            # layer 0: precomputed input projection + recurrent term
            gates0 = xw0[t * B:(t + 1) * B, :] + jnp.dot(
                h0, whh0, preferred_element_type=jnp.float32)
            h0, c0 = _lstm_cell(gates0, c0, H)
            # layer 1: two accumulated matmuls (no scratch round-trip on the
            # serial path); inter-layer dropout = identity (eval mode).
            gates1 = (jnp.dot(h0, wih1, preferred_element_type=jnp.float32)
                      + jnp.dot(h1, whh1, preferred_element_type=jnp.float32)
                      + b1)
            h1, c1 = _lstm_cell(gates1, c1, H)
            if per_step is not None:
                per_step(t, h1)
        return h0, c0, h1, c1

    zeros = jnp.zeros((B, H), jnp.float32)

    # -------------------- Encoder --------------------
    # Hoisted layer-0 input projection: one matmul over all S timesteps.
    e_xw0 = jnp.dot(enc_x_ref[...], e_wih0_ref[...],
                    preferred_element_type=jnp.float32) + e_b0_ref[...]
    h0, c0, h1, c1 = run_stack(e_xw0, e_whh0_ref[...], e_wih1_ref[...],
                               e_whh1_ref[...], e_b1_ref[...],
                               zeros, zeros, zeros, zeros, S)

    # -------------------- Decoder (teacher forcing) --------------------
    d_xw0 = jnp.dot(dec_x_ref[...], d_wih0_ref[...],
                    preferred_element_type=jnp.float32) + d_b0_ref[...]

    def stash_top(t, h_top):
        top_sc[t * B:(t + 1) * B, :] = h_top              # static, sublane-aligned

    run_stack(d_xw0, d_whh0_ref[...], d_wih1_ref[...], d_whh1_ref[...],
              d_b1_ref[...], h0, c0, h1, c1, G, per_step=stash_top)

    # -------------- Expansion + log_softmax (lane-dense vocab) --------------
    logits = jnp.dot(top_sc[...], wexp_ref[...],
                     preferred_element_type=jnp.float32) + bexp_ref[...]
    m = jnp.max(logits, axis=-1, keepdims=True)
    shifted = logits - m
    lse = jnp.log(jnp.sum(jnp.exp(shifted), axis=-1, keepdims=True))
    out_ref[...] = shifted - lse


# ----------------------------------------------------------------------------
# pallas_call wrapper
# ----------------------------------------------------------------------------
def encdec_pallas(enc_x, dec_x, enc_layers, dec_layers, w_exp_pad, b_exp_pad,
                  *, B, S, G, H, V_pad):
    (e_wih0, e_whh0, e_b0), (e_wih1, e_whh1, e_b1) = enc_layers
    (d_wih0, d_whh0, d_b0), (d_wih1, d_whh1, d_b1) = dec_layers
    kernel = functools.partial(encdec_kernel, B=B, S=S, G=G, H=H)
    return pl.pallas_call(
        kernel,
        out_shape=jax.ShapeDtypeStruct((G * B, V_pad), jnp.float32),
        scratch_shapes=[pltpu.VMEM((G * B, H), jnp.float32)],
    )(enc_x, e_wih0, e_b0, e_whh0, e_wih1, e_whh1, e_b1,
      dec_x, d_wih0, d_b0, d_whh0, d_wih1, d_whh1, d_b1,
      w_exp_pad, b_exp_pad)


# ----------------------------------------------------------------------------
# Model: parameter init + forward
# ----------------------------------------------------------------------------
def init_params(key, *, in_vocab, out_vocab, E, H, nl):
    keys = iter(jax.random.split(key, 64))

    def unif(shape, scale=0.1):
        return jax.random.uniform(next(keys), shape, jnp.float32, -scale, scale)

    def lstm_stack(input_size):
        layers = []
        for layer in range(nl):
            isz = input_size if layer == 0 else H
            wih = unif((isz, 4 * H))      # = PyTorch weight_ih_l{k}.T
            whh = unif((H, 4 * H))        # = PyTorch weight_hh_l{k}.T
            b = unif((1, 4 * H))          # = b_ih + b_hh (combined)
            layers.append((wih, whh, b))
        return layers

    return {
        "enc_emb": unif((in_vocab, E), 1.0),
        "enc_lstm": lstm_stack(E),
        "dec_emb": unif((out_vocab, E), 1.0),
        "dec_lstm": lstm_stack(E),
        "exp_w": unif((H, out_vocab)),    # = PyTorch expansion.weight.T
        "exp_b": unif((1, out_vocab)),
    }


def encdec_forward(params, input_tensor, label_tensor, *, num_guesses, H, nl):
    assert nl == 2, "fused kernel is specialized for num_layers=2"
    B, S = input_tensor.shape
    G = num_guesses

    # Pad batch to a sublane-friendly multiple of 8 (padded rows sliced off).
    B_pad = max(8, ((B + 7) // 8) * 8)
    inp = jnp.pad(input_tensor, ((0, B_pad - B), (0, 0)))
    lbl = jnp.pad(label_tensor, ((0, B_pad - B), (0, 0)))

    # Teacher forcing: step 0 uses start token 0, step i uses label[:, i-1].
    dec_tokens = jnp.concatenate(
        [jnp.zeros((B_pad, 1), jnp.int32), lbl[:, :G - 1]], axis=1)     # (Bp, G)

    # Time-major embedding lookups. Only the tiny int token matrices get
    # transposed; no activation-tensor transpose. Dropout = identity (eval).
    E = params["enc_emb"].shape[-1]
    enc_x = params["enc_emb"][inp.T].reshape(S * B_pad, E)              # (S*Bp, E)
    dec_x = params["dec_emb"][dec_tokens.T].reshape(G * B_pad, E)       # (G*Bp, E)

    # Lane-dense (multiple-of-128) padded vocab for the expansion layer.
    V = params["exp_w"].shape[-1]
    V_pad = max(128, ((V + 127) // 128) * 128)
    w_pad = jnp.pad(params["exp_w"], ((0, 0), (0, V_pad - V)))
    b_pad = jnp.pad(params["exp_b"], ((0, 0), (0, V_pad - V)),
                    constant_values=-1e30)                # kill padded logits

    logp = encdec_pallas(enc_x, dec_x, params["enc_lstm"], params["dec_lstm"],
                         w_pad, b_pad, B=B_pad, S=S, G=G, H=H, V_pad=V_pad)
    logp = logp.reshape(G, B_pad, V_pad).transpose(1, 0, 2)
    return logp[:B, :, :V]                                # (B, G, V) log-probs


# ----------------------------------------------------------------------------
# Main
# ----------------------------------------------------------------------------
if __name__ == "__main__":
    # Small, module-consistent shapes.
    B = 2            # batch
    S_IN = 8         # encoder input sequence length
    IN_VOCAB = 20    # encoder vocab size
    OUT_VOCAB = 16   # decoder vocab size (output_size)
    E = 32           # embedding_size
    H = 32           # hidden_size
    NL = 2           # num LSTM layers
    NUM_GUESSES = 4  # decoder steps

    key = jax.random.PRNGKey(0)
    k_params, k_in, k_lbl = jax.random.split(key, 3)

    params = init_params(k_params, in_vocab=IN_VOCAB, out_vocab=OUT_VOCAB,
                         E=E, H=H, nl=NL)

    input_tensor = jax.random.randint(k_in, (B, S_IN), 0, IN_VOCAB,
                                      dtype=jnp.int32)
    label_tensor = jax.random.randint(k_lbl, (B, NUM_GUESSES), 0, OUT_VOCAB,
                                      dtype=jnp.int32)

    fwd = jax.jit(functools.partial(encdec_forward,
                                    num_guesses=NUM_GUESSES, H=H, nl=NL))
    out = fwd(params, input_tensor, label_tensor)
    out = jax.block_until_ready(out)

    assert out.shape == (B, NUM_GUESSES, OUT_VOCAB), out.shape
    # log_softmax rows must (approximately) sum to 1 in prob space.
    row_sums = jnp.exp(out).sum(axis=-1)
    assert bool(jnp.all(jnp.abs(row_sums - 1.0) < 1e-4))
    assert bool(jnp.all(jnp.isfinite(out)))

    print("KERNEL_OK")
</pallas_src>

<mosaic_0001>
module attributes {stable_mosaic.version = 11 : i64} {
  func.func @encdec_kernel(%arg0: memref<64x32xf32, #tpu.memory_space<vmem>>, %arg1: memref<32x128xf32, #tpu.memory_space<vmem>>, %arg2: memref<1x128xf32, #tpu.memory_space<vmem>>, %arg3: memref<32x128xf32, #tpu.memory_space<vmem>>, %arg4: memref<32x128xf32, #tpu.memory_space<vmem>>, %arg5: memref<32x128xf32, #tpu.memory_space<vmem>>, %arg6: memref<1x128xf32, #tpu.memory_space<vmem>>, %arg7: memref<32x32xf32, #tpu.memory_space<vmem>>, %arg8: memref<32x128xf32, #tpu.memory_space<vmem>>, %arg9: memref<1x128xf32, #tpu.memory_space<vmem>>, %arg10: memref<32x128xf32, #tpu.memory_space<vmem>>, %arg11: memref<32x128xf32, #tpu.memory_space<vmem>>, %arg12: memref<32x128xf32, #tpu.memory_space<vmem>>, %arg13: memref<1x128xf32, #tpu.memory_space<vmem>>, %arg14: memref<32x128xf32, #tpu.memory_space<vmem>>, %arg15: memref<1x128xf32, #tpu.memory_space<vmem>>, %arg16: memref<32x128xf32, #tpu.memory_space<vmem>>, %arg17: memref<32x32xf32, #tpu.memory_space<vmem>>) attributes {dimension_semantics = [], scalar_prefetch = 0 : i64, scratch_operands = 1 : i64, tpu.core_type = #tpu.core_type<tc>} {
    %cst = arith.constant 0.000000e+00 : f32
    %0 = vector.broadcast %cst : f32 to vector<8x32xf32>
    %c0 = arith.constant 0 : index
    %c0_0 = arith.constant 0 : index
    %1 = vector.load %arg0[%c0, %c0_0] : memref<64x32xf32, #tpu.memory_space<vmem>>, vector<64x32xf32>
    %c0_1 = arith.constant 0 : index
    %c0_2 = arith.constant 0 : index
    %2 = vector.load %arg1[%c0_1, %c0_2] : memref<32x128xf32, #tpu.memory_space<vmem>>, vector<32x128xf32>
    %cst_3 = arith.constant dense<0.000000e+00> : vector<64x128xf32>
    %3 = tpu.matmul %1, %2, %cst_3 {dimension_numbers = #tpu.dot_dimension_numbers<[1], [0], [0], [1], [0, 0, 1, 1], [], []>} : vector<64x32xf32>, vector<32x128xf32>, vector<64x128xf32> -> vector<64x128xf32>
    %c0_4 = arith.constant 0 : index
    %c0_5 = arith.constant 0 : index
    %4 = vector.load %arg2[%c0_4, %c0_5] : memref<1x128xf32, #tpu.memory_space<vmem>>, vector<1x128xf32>
    %5 = vector.broadcast %4 : vector<1x128xf32> to vector<64x128xf32>
    %6 = arith.addf %3, %5 : vector<64x128xf32>
    %c0_6 = arith.constant 0 : index
    %c0_7 = arith.constant 0 : index
    %7 = vector.load %arg3[%c0_6, %c0_7] : memref<32x128xf32, #tpu.memory_space<vmem>>, vector<32x128xf32>
    %c0_8 = arith.constant 0 : index
    %c0_9 = arith.constant 0 : index
    %8 = vector.load %arg4[%c0_8, %c0_9] : memref<32x128xf32, #tpu.memory_space<vmem>>, vector<32x128xf32>
    %c0_10 = arith.constant 0 : index
    %c0_11 = arith.constant 0 : index
    %9 = vector.load %arg5[%c0_10, %c0_11] : memref<32x128xf32, #tpu.memory_space<vmem>>, vector<32x128xf32>
    %c0_12 = arith.constant 0 : index
    %c0_13 = arith.constant 0 : index
    %10 = vector.load %arg6[%c0_12, %c0_13] : memref<1x128xf32, #tpu.memory_space<vmem>>, vector<1x128xf32>
    %11 = vector.extract_strided_slice %6 {offsets = [0, 0], sizes = [8, 128], strides = [1, 1]} : vector<64x128xf32> to vector<8x128xf32>
    %cst_14 = arith.constant dense<0.000000e+00> : vector<8x128xf32>
    %12 = tpu.matmul %0, %7, %cst_14 {dimension_numbers = #tpu.dot_dimension_numbers<[1], [0], [0], [1], [0, 0, 1, 1], [], []>} : vector<8x32xf32>, vector<32x128xf32>, vector<8x128xf32> -> vector<8x128xf32>
    %13 = arith.addf %11, %12 : vector<8x128xf32>
    %14 = vector.extract_strided_slice %13 {offsets = [0, 0], sizes = [8, 32], strides = [1, 1]} : vector<8x128xf32> to vector<8x32xf32>
    %15 = arith.negf %14 : vector<8x32xf32>
    %16 = math.exp %15 : vector<8x32xf32>
    %cst_15 = arith.constant 1.000000e+00 : f32
    %17 = vector.broadcast %cst_15 : f32 to vector<8x32xf32>
    %18 = arith.addf %17, %16 : vector<8x32xf32>
    %19 = arith.divf %17, %18 : vector<8x32xf32>
    %20 = vector.extract_strided_slice %13 {offsets = [0, 32], sizes = [8, 32], strides = [1, 1]} : vector<8x128xf32> to vector<8x32xf32>
    %21 = arith.negf %20 : vector<8x32xf32>
    %22 = math.exp %21 : vector<8x32xf32>
    %cst_16 = arith.constant 1.000000e+00 : f32
    %23 = vector.broadcast %cst_16 : f32 to vector<8x32xf32>
    %24 = arith.addf %23, %22 : vector<8x32xf32>
    %25 = arith.divf %23, %24 : vector<8x32xf32>
    %26 = vector.extract_strided_slice %13 {offsets = [0, 64], sizes = [8, 32], strides = [1, 1]} : vector<8x128xf32> to vector<8x32xf32>
    %27 = math.tanh %26 : vector<8x32xf32>
    %28 = vector.extract_strided_slice %13 {offsets = [0, 96], sizes = [8, 32], strides = [1, 1]} : vector<8x128xf32> to vector<8x32xf32>
    %29 = arith.negf %28 : vector<8x32xf32>
    %30 = math.exp %29 : vector<8x32xf32>
    %cst_17 = arith.constant 1.000000e+00 : f32
    %31 = vector.broadcast %cst_17 : f32 to vector<8x32xf32>
    %32 = arith.addf %31, %30 : vector<8x32xf32>
    %33 = arith.divf %31, %32 : vector<8x32xf32>
    %34 = arith.mulf %25, %0 : vector<8x32xf32>
    %35 = arith.mulf %19, %27 : vector<8x32xf32>
    %36 = arith.addf %34, %35 : vector<8x32xf32>
    %37 = math.tanh %36 : vector<8x32xf32>
    %38 = arith.mulf %33, %37 : vector<8x32xf32>
    %cst_18 = arith.constant dense<0.000000e+00> : vector<8x128xf32>
    %39 = tpu.matmul %38, %8, %cst_18 {dimension_numbers = #tpu.dot_dimension_numbers<[1], [0], [0], [1], [0, 0, 1, 1], [], []>} : vector<8x32xf32>, vector<32x128xf32>, vector<8x128xf32> -> vector<8x128xf32>
    %cst_19 = arith.constant dense<0.000000e+00> : vector<8x128xf32>
    %40 = tpu.matmul %0, %9, %cst_19 {dimension_numbers = #tpu.dot_dimension_numbers<[1], [0], [0], [1], [0, 0, 1, 1], [], []>} : vector<8x32xf32>, vector<32x128xf32>, vector<8x128xf32> -> vector<8x128xf32>
    %41 = arith.addf %39, %40 : vector<8x128xf32>
    %42 = vector.broadcast %10 : vector<1x128xf32> to vector<8x128xf32>
    %43 = arith.addf %41, %42 : vector<8x128xf32>
    %44 = vector.extract_strided_slice %43 {offsets = [0, 0], sizes = [8, 32], strides = [1, 1]} : vector<8x128xf32> to vector<8x32xf32>
    %45 = arith.negf %44 : vector<8x32xf32>
    %46 = math.exp %45 : vector<8x32xf32>
    %cst_20 = arith.constant 1.000000e+00 : f32
    %47 = vector.broadcast %cst_20 : f32 to vector<8x32xf32>
    %48 = arith.addf %47, %46 : vector<8x32xf32>
    %49 = arith.divf %47, %48 : vector<8x32xf32>
    %50 = vector.extract_strided_slice %43 {offsets = [0, 32], sizes = [8, 32], strides = [1, 1]} : vector<8x128xf32> to vector<8x32xf32>
    %51 = arith.negf %50 : vector<8x32xf32>
    %52 = math.exp %51 : vector<8x32xf32>
    %cst_21 = arith.constant 1.000000e+00 : f32
    %53 = vector.broadcast %cst_21 : f32 to vector<8x32xf32>
    %54 = arith.addf %53, %52 : vector<8x32xf32>
    %55 = arith.divf %53, %54 : vector<8x32xf32>
    %56 = vector.extract_strided_slice %43 {offsets = [0, 64], sizes = [8, 32], strides = [1, 1]} : vector<8x128xf32> to vector<8x32xf32>
    %57 = math.tanh %56 : vector<8x32xf32>
    %58 = vector.extract_strided_slice %43 {offsets = [0, 96], sizes = [8, 32], strides = [1, 1]} : vector<8x128xf32> to vector<8x32xf32>
    %59 = arith.negf %58 : vector<8x32xf32>
    %60 = math.exp %59 : vector<8x32xf32>
    %cst_22 = arith.constant 1.000000e+00 : f32
    %61 = vector.broadcast %cst_22 : f32 to vector<8x32xf32>
    %62 = arith.addf %61, %60 : vector<8x32xf32>
    %63 = arith.divf %61, %62 : vector<8x32xf32>
    %64 = arith.mulf %55, %0 : vector<8x32xf32>
    %65 = arith.mulf %49, %57 : vector<8x32xf32>
    %66 = arith.addf %64, %65 : vector<8x32xf32>
    %67 = math.tanh %66 : vector<8x32xf32>
    %68 = arith.mulf %63, %67 : vector<8x32xf32>
    %69 = vector.extract_strided_slice %6 {offsets = [8, 0], sizes = [8, 128], strides = [1, 1]} : vector<64x128xf32> to vector<8x128xf32>
    %cst_23 = arith.constant dense<0.000000e+00> : vector<8x128xf32>
    %70 = tpu.matmul %38, %7, %cst_23 {dimension_numbers = #tpu.dot_dimension_numbers<[1], [0], [0], [1], [0, 0, 1, 1], [], []>} : vector<8x32xf32>, vector<32x128xf32>, vector<8x128xf32> -> vector<8x128xf32>
    %71 = arith.addf %69, %70 : vector<8x128xf32>
    %72 = vector.extract_strided_slice %71 {offsets = [0, 0], sizes = [8, 32], strides = [1, 1]} : vector<8x128xf32> to vector<8x32xf32>
    %73 = arith.negf %72 : vector<8x32xf32>
    %74 = math.exp %73 : vector<8x32xf32>
    %cst_24 = arith.constant 1.000000e+00 : f32
    %75 = vector.broadcast %cst_24 : f32 to vector<8x32xf32>
    %76 = arith.addf %75, %74 : vector<8x32xf32>
    %77 = arith.divf %75, %76 : vector<8x32xf32>
    %78 = vector.extract_strided_slice %71 {offsets = [0, 32], sizes = [8, 32], strides = [1, 1]} : vector<8x128xf32> to vector<8x32xf32>
    %79 = arith.negf %78 : vector<8x32xf32>
    %80 = math.exp %79 : vector<8x32xf32>
    %cst_25 = arith.constant 1.000000e+00 : f32
    %81 = vector.broadcast %cst_25 : f32 to vector<8x32xf32>
    %82 = arith.addf %81, %80 : vector<8x32xf32>
    %83 = arith.divf %81, %82 : vector<8x32xf32>
    %84 = vector.extract_strided_slice %71 {offsets = [0, 64], sizes = [8, 32], strides = [1, 1]} : vector<8x128xf32> to vector<8x32xf32>
    %85 = math.tanh %84 : vector<8x32xf32>
    %86 = vector.extract_strided_slice %71 {offsets = [0, 96], sizes = [8, 32], strides = [1, 1]} : vector<8x128xf32> to vector<8x32xf32>
    %87 = arith.negf %86 : vector<8x32xf32>
    %88 = math.exp %87 : vector<8x32xf32>
    %cst_26 = arith.constant 1.000000e+00 : f32
    %89 = vector.broadcast %cst_26 : f32 to vector<8x32xf32>
    %90 = arith.addf %89, %88 : vector<8x32xf32>
    %91 = arith.divf %89, %90 : vector<8x32xf32>
    %92 = arith.mulf %83, %36 : vector<8x32xf32>
    %93 = arith.mulf %77, %85 : vector<8x32xf32>
    %94 = arith.addf %92, %93 : vector<8x32xf32>
    %95 = math.tanh %94 : vector<8x32xf32>
    %96 = arith.mulf %91, %95 : vector<8x32xf32>
    %cst_27 = arith.constant dense<0.000000e+00> : vector<8x128xf32>
    %97 = tpu.matmul %96, %8, %cst_27 {dimension_numbers = #tpu.dot_dimension_numbers<[1], [0], [0], [1], [0, 0, 1, 1], [], []>} : vector<8x32xf32>, vector<32x128xf32>, vector<8x128xf32> -> vector<8x128xf32>
    %cst_28 = arith.constant dense<0.000000e+00> : vector<8x128xf32>
    %98 = tpu.matmul %68, %9, %cst_28 {dimension_numbers = #tpu.dot_dimension_numbers<[1], [0], [0], [1], [0, 0, 1, 1], [], []>} : vector<8x32xf32>, vector<32x128xf32>, vector<8x128xf32> -> vector<8x128xf32>
    %99 = arith.addf %97, %98 : vector<8x128xf32>
    %100 = vector.broadcast %10 : vector<1x128xf32> to vector<8x128xf32>
    %101 = arith.addf %99, %100 : vector<8x128xf32>
    %102 = vector.extract_strided_slice %101 {offsets = [0, 0], sizes = [8, 32], strides = [1, 1]} : vector<8x128xf32> to vector<8x32xf32>
    %103 = arith.negf %102 : vector<8x32xf32>
    %104 = math.exp %103 : vector<8x32xf32>
    %cst_29 = arith.constant 1.000000e+00 : f32
    %105 = vector.broadcast %cst_29 : f32 to vector<8x32xf32>
    %106 = arith.addf %105, %104 : vector<8x32xf32>
    %107 = arith.divf %105, %106 : vector<8x32xf32>
    %108 = vector.extract_strided_slice %101 {offsets = [0, 32], sizes = [8, 32], strides = [1, 1]} : vector<8x128xf32> to vector<8x32xf32>
    %109 = arith.negf %108 : vector<8x32xf32>
    %110 = math.exp %109 : vector<8x32xf32>
    %cst_30 = arith.constant 1.000000e+00 : f32
    %111 = vector.broadcast %cst_30 : f32 to vector<8x32xf32>
    %112 = arith.addf %111, %110 : vector<8x32xf32>
    %113 = arith.divf %111, %112 : vector<8x32xf32>
    %114 = vector.extract_strided_slice %101 {offsets = [0, 64], sizes = [8, 32], strides = [1, 1]} : vector<8x128xf32> to vector<8x32xf32>
    %115 = math.tanh %114 : vector<8x32xf32>
    %116 = vector.extract_strided_slice %101 {offsets = [0, 96], sizes = [8, 32], strides = [1, 1]} : vector<8x128xf32> to vector<8x32xf32>
    %117 = arith.negf %116 : vector<8x32xf32>
    %118 = math.exp %117 : vector<8x32xf32>
    %cst_31 = arith.constant 1.000000e+00 : f32
    %119 = vector.broadcast %cst_31 : f32 to vector<8x32xf32>
    %120 = arith.addf %119, %118 : vector<8x32xf32>
    %121 = arith.divf %119, %120 : vector<8x32xf32>
    %122 = arith.mulf %113, %66 : vector<8x32xf32>
    %123 = arith.mulf %107, %115 : vector<8x32xf32>
    %124 = arith.addf %122, %123 : vector<8x32xf32>
    %125 = math.tanh %124 : vector<8x32xf32>
    %126 = arith.mulf %121, %125 : vector<8x32xf32>
    %127 = vector.extract_strided_slice %6 {offsets = [16, 0], sizes = [8, 128], strides = [1, 1]} : vector<64x128xf32> to vector<8x128xf32>
    %cst_32 = arith.constant dense<0.000000e+00> : vector<8x128xf32>
    %128 = tpu.matmul %96, %7, %cst_32 {dimension_numbers = #tpu.dot_dimension_numbers<[1], [0], [0], [1], [0, 0, 1, 1], [], []>} : vector<8x32xf32>, vector<32x128xf32>, vector<8x128xf32> -> vector<8x128xf32>
    %129 = arith.addf %127, %128 : vector<8x128xf32>
    %130 = vector.extract_strided_slice %129 {offsets = [0, 0], sizes = [8, 32], strides = [1, 1]} : vector<8x128xf32> to vector<8x32xf32>
    %131 = arith.negf %130 : vector<8x32xf32>
    %132 = math.exp %131 : vector<8x32xf32>
    %cst_33 = arith.constant 1.000000e+00 : f32
    %133 = vector.broadcast %cst_33 : f32 to vector<8x32xf32>
    %134 = arith.addf %133, %132 : vector<8x32xf32>
    %135 = arith.divf %133, %134 : vector<8x32xf32>
    %136 = vector.extract_strided_slice %129 {offsets = [0, 32], sizes = [8, 32], strides = [1, 1]} : vector<8x128xf32> to vector<8x32xf32>
    %137 = arith.negf %136 : vector<8x32xf32>
    %138 = math.exp %137 : vector<8x32xf32>
    %cst_34 = arith.constant 1.000000e+00 : f32
    %139 = vector.broadcast %cst_34 : f32 to vector<8x32xf32>
    %140 = arith.addf %139, %138 : vector<8x32xf32>
    %141 = arith.divf %139, %140 : vector<8x32xf32>
    %142 = vector.extract_strided_slice %129 {offsets = [0, 64], sizes = [8, 32], strides = [1, 1]} : vector<8x128xf32> to vector<8x32xf32>
    %143 = math.tanh %142 : vector<8x32xf32>
    %144 = vector.extract_strided_slice %129 {offsets = [0, 96], sizes = [8, 32], strides = [1, 1]} : vector<8x128xf32> to vector<8x32xf32>
    %145 = arith.negf %144 : vector<8x32xf32>
    %146 = math.exp %145 : vector<8x32xf32>
    %cst_35 = arith.constant 1.000000e+00 : f32
    %147 = vector.broadcast %cst_35 : f32 to vector<8x32xf32>
    %148 = arith.addf %147, %146 : vector<8x32xf32>
    %149 = arith.divf %147, %148 : vector<8x32xf32>
    %150 = arith.mulf %141, %94 : vector<8x32xf32>
    %151 = arith.mulf %135, %143 : vector<8x32xf32>
    %152 = arith.addf %150, %151 : vector<8x32xf32>
    %153 = math.tanh %152 : vector<8x32xf32>
    %154 = arith.mulf %149, %153 : vector<8x32xf32>
    %cst_36 = arith.constant dense<0.000000e+00> : vector<8x128xf32>
    %155 = tpu.matmul %154, %8, %cst_36 {dimension_numbers = #tpu.dot_dimension_numbers<[1], [0], [0], [1], [0, 0, 1, 1], [], []>} : vector<8x32xf32>, vector<32x128xf32>, vector<8x128xf32> -> vector<8x128xf32>
    %cst_37 = arith.constant dense<0.000000e+00> : vector<8x128xf32>
    %156 = tpu.matmul %126, %9, %cst_37 {dimension_numbers = #tpu.dot_dimension_numbers<[1], [0], [0], [1], [0, 0, 1, 1], [], []>} : vector<8x32xf32>, vector<32x128xf32>, vector<8x128xf32> -> vector<8x128xf32>
    %157 = arith.addf %155, %156 : vector<8x128xf32>
    %158 = vector.broadcast %10 : vector<1x128xf32> to vector<8x128xf32>
    %159 = arith.addf %157, %158 : vector<8x128xf32>
    %160 = vector.extract_strided_slice %159 {offsets = [0, 0], sizes = [8, 32], strides = [1, 1]} : vector<8x128xf32> to vector<8x32xf32>
    %161 = arith.negf %160 : vector<8x32xf32>
    %162 = math.exp %161 : vector<8x32xf32>
    %cst_38 = arith.constant 1.000000e+00 : f32
    %163 = vector.broadcast %cst_38 : f32 to vector<8x32xf32>
    %164 = arith.addf %163, %162 : vector<8x32xf32>
    %165 = arith.divf %163, %164 : vector<8x32xf32>
    %166 = vector.extract_strided_slice %159 {offsets = [0, 32], sizes = [8, 32], strides = [1, 1]} : vector<8x128xf32> to vector<8x32xf32>
    %167 = arith.negf %166 : vector<8x32xf32>
    %168 = math.exp %167 : vector<8x32xf32>
    %cst_39 = arith.constant 1.000000e+00 : f32
    %169 = vector.broadcast %cst_39 : f32 to vector<8x32xf32>
    %170 = arith.addf %169, %168 : vector<8x32xf32>
    %171 = arith.divf %169, %170 : vector<8x32xf32>
    %172 = vector.extract_strided_slice %159 {offsets = [0, 64], sizes = [8, 32], strides = [1, 1]} : vector<8x128xf32> to vector<8x32xf32>
    %173 = math.tanh %172 : vector<8x32xf32>
    %174 = vector.extract_strided_slice %159 {offsets = [0, 96], sizes = [8, 32], strides = [1, 1]} : vector<8x128xf32> to vector<8x32xf32>
    %175 = arith.negf %174 : vector<8x32xf32>
    %176 = math.exp %175 : vector<8x32xf32>
    %cst_40 = arith.constant 1.000000e+00 : f32
    %177 = vector.broadcast %cst_40 : f32 to vector<8x32xf32>
    %178 = arith.addf %177, %176 : vector<8x32xf32>
    %179 = arith.divf %177, %178 : vector<8x32xf32>
    %180 = arith.mulf %171, %124 : vector<8x32xf32>
    %181 = arith.mulf %165, %173 : vector<8x32xf32>
    %182 = arith.addf %180, %181 : vector<8x32xf32>
    %183 = math.tanh %182 : vector<8x32xf32>
    %184 = arith.mulf %179, %183 : vector<8x32xf32>
    %185 = vector.extract_strided_slice %6 {offsets = [24, 0], sizes = [8, 128], strides = [1, 1]} : vector<64x128xf32> to vector<8x128xf32>
    %cst_41 = arith.constant dense<0.000000e+00> : vector<8x128xf32>
    %186 = tpu.matmul %154, %7, %cst_41 {dimension_numbers = #tpu.dot_dimension_numbers<[1], [0], [0], [1], [0, 0, 1, 1], [], []>} : vector<8x32xf32>, vector<32x128xf32>, vector<8x128xf32> -> vector<8x128xf32>
    %187 = arith.addf %185, %186 : vector<8x128xf32>
    %188 = vector.extract_strided_slice %187 {offsets = [0, 0], sizes = [8, 32], strides = [1, 1]} : vector<8x128xf32> to vector<8x32xf32>
    %189 = arith.negf %188 : vector<8x32xf32>
    %190 = math.exp %189 : vector<8x32xf32>
    %cst_42 = arith.constant 1.000000e+00 : f32
    %191 = vector.broadcast %cst_42 : f32 to vector<8x32xf32>
    %192 = arith.addf %191, %190 : vector<8x32xf32>
    %193 = arith.divf %191, %192 : vector<8x32xf32>
    %194 = vector.extract_strided_slice %187 {offsets = [0, 32], sizes = [8, 32], strides = [1, 1]} : vector<8x128xf32> to vector<8x32xf32>
    %195 = arith.negf %194 : vector<8x32xf32>
    %196 = math.exp %195 : vector<8x32xf32>
    %cst_43 = arith.constant 1.000000e+00 : f32
    %197 = vector.broadcast %cst_43 : f32 to vector<8x32xf32>
    %198 = arith.addf %197, %196 : vector<8x32xf32>
    %199 = arith.divf %197, %198 : vector<8x32xf32>
    %200 = vector.extract_strided_slice %187 {offsets = [0, 64], sizes = [8, 32], strides = [1, 1]} : vector<8x128xf32> to vector<8x32xf32>
    %201 = math.tanh %200 : vector<8x32xf32>
    %202 = vector.extract_strided_slice %187 {offsets = [0, 96], sizes = [8, 32], strides = [1, 1]} : vector<8x128xf32> to vector<8x32xf32>
    %203 = arith.negf %202 : vector<8x32xf32>
    %204 = math.exp %203 : vector<8x32xf32>
    %cst_44 = arith.constant 1.000000e+00 : f32
    %205 = vector.broadcast %cst_44 : f32 to vector<8x32xf32>
    %206 = arith.addf %205, %204 : vector<8x32xf32>
    %207 = arith.divf %205, %206 : vector<8x32xf32>
    %208 = arith.mulf %199, %152 : vector<8x32xf32>
    %209 = arith.mulf %193, %201 : vector<8x32xf32>
    %210 = arith.addf %208, %209 : vector<8x32xf32>
    %211 = math.tanh %210 : vector<8x32xf32>
    %212 = arith.mulf %207, %211 : vector<8x32xf32>
    %cst_45 = arith.constant dense<0.000000e+00> : vector<8x128xf32>
    %213 = tpu.matmul %212, %8, %cst_45 {dimension_numbers = #tpu.dot_dimension_numbers<[1], [0], [0], [1], [0, 0, 1, 1], [], []>} : vector<8x32xf32>, vector<32x128xf32>, vector<8x128xf32> -> vector<8x128xf32>
    %cst_46 = arith.constant dense<0.000000e+00> : vector<8x128xf32>
    %214 = tpu.matmul %184, %9, %cst_46 {dimension_numbers = #tpu.dot_dimension_numbers<[1], [0], [0], [1], [0, 0, 1, 1], [], []>} : vector<8x32xf32>, vector<32x128xf32>, vector<8x128xf32> -> vector<8x128xf32>
    %215 = arith.addf %213, %214 : vector<8x128xf32>
    %216 = vector.broadcast %10 : vector<1x128xf32> to vector<8x128xf32>
    %217 = arith.addf %215, %216 : vector<8x128xf32>
    %218 = vector.extract_strided_slice %217 {offsets = [0, 0], sizes = [8, 32], strides = [1, 1]} : vector<8x128xf32> to vector<8x32xf32>
    %219 = arith.negf %218 : vector<8x32xf32>
    %220 = math.exp %219 : vector<8x32xf32>
    %cst_47 = arith.constant 1.000000e+00 : f32
    %221 = vector.broadcast %cst_47 : f32 to vector<8x32xf32>
    %222 = arith.addf %221, %220 : vector<8x32xf32>
    %223 = arith.divf %221, %222 : vector<8x32xf32>
    %224 = vector.extract_strided_slice %217 {offsets = [0, 32], sizes = [8, 32], strides = [1, 1]} : vector<8x128xf32> to vector<8x32xf32>
    %225 = arith.negf %224 : vector<8x32xf32>
    %226 = math.exp %225 : vector<8x32xf32>
    %cst_48 = arith.constant 1.000000e+00 : f32
    %227 = vector.broadcast %cst_48 : f32 to vector<8x32xf32>
    %228 = arith.addf %227, %226 : vector<8x32xf32>
    %229 = arith.divf %227, %228 : vector<8x32xf32>
    %230 = vector.extract_strided_slice %217 {offsets = [0, 64], sizes = [8, 32], strides = [1, 1]} : vector<8x128xf32> to vector<8x32xf32>
    %231 = math.tanh %230 : vector<8x32xf32>
    %232 = vector.extract_strided_slice %217 {offsets = [0, 96], sizes = [8, 32], strides = [1, 1]} : vector<8x128xf32> to vector<8x32xf32>
    %233 = arith.negf %232 : vector<8x32xf32>
    %234 = math.exp %233 : vector<8x32xf32>
    %cst_49 = arith.constant 1.000000e+00 : f32
    %235 = vector.broadcast %cst_49 : f32 to vector<8x32xf32>
    %236 = arith.addf %235, %234 : vector<8x32xf32>
    %237 = arith.divf %235, %236 : vector<8x32xf32>
    %238 = arith.mulf %229, %182 : vector<8x32xf32>
    %239 = arith.mulf %223, %231 : vector<8x32xf32>
    %240 = arith.addf %238, %239 : vector<8x32xf32>
    %241 = math.tanh %240 : vector<8x32xf32>
    %242 = arith.mulf %237, %241 : vector<8x32xf32>
    %243 = vector.extract_strided_slice %6 {offsets = [32, 0], sizes = [8, 128], strides = [1, 1]} : vector<64x128xf32> to vector<8x128xf32>
    %cst_50 = arith.constant dense<0.000000e+00> : vector<8x128xf32>
    %244 = tpu.matmul %212, %7, %cst_50 {dimension_numbers = #tpu.dot_dimension_numbers<[1], [0], [0], [1], [0, 0, 1, 1], [], []>} : vector<8x32xf32>, vector<32x128xf32>, vector<8x128xf32> -> vector<8x128xf32>
    %245 = arith.addf %243, %244 : vector<8x128xf32>
    %246 = vector.extract_strided_slice %245 {offsets = [0, 0], sizes = [8, 32], strides = [1, 1]} : vector<8x128xf32> to vector<8x32xf32>
    %247 = arith.negf %246 : vector<8x32xf32>
    %248 = math.exp %247 : vector<8x32xf32>
    %cst_51 = arith.constant 1.000000e+00 : f32
    %249 = vector.broadcast %cst_51 : f32 to vector<8x32xf32>
    %250 = arith.addf %249, %248 : vector<8x32xf32>
    %251 = arith.divf %249, %250 : vector<8x32xf32>
    %252 = vector.extract_strided_slice %245 {offsets = [0, 32], sizes = [8, 32], strides = [1, 1]} : vector<8x128xf32> to vector<8x32xf32>
    %253 = arith.negf %252 : vector<8x32xf32>
    %254 = math.exp %253 : vector<8x32xf32>
    %cst_52 = arith.constant 1.000000e+00 : f32
    %255 = vector.broadcast %cst_52 : f32 to vector<8x32xf32>
    %256 = arith.addf %255, %254 : vector<8x32xf32>
    %257 = arith.divf %255, %256 : vector<8x32xf32>
    %258 = vector.extract_strided_slice %245 {offsets = [0, 64], sizes = [8, 32], strides = [1, 1]} : vector<8x128xf32> to vector<8x32xf32>
    %259 = math.tanh %258 : vector<8x32xf32>
    %260 = vector.extract_strided_slice %245 {offsets = [0, 96], sizes = [8, 32], strides = [1, 1]} : vector<8x128xf32> to vector<8x32xf32>
    %261 = arith.negf %260 : vector<8x32xf32>
    %262 = math.exp %261 : vector<8x32xf32>
    %cst_53 = arith.constant 1.000000e+00 : f32
    %263 = vector.broadcast %cst_53 : f32 to vector<8x32xf32>
    %264 = arith.addf %263, %262 : vector<8x32xf32>
    %265 = arith.divf %263, %264 : vector<8x32xf32>
    %266 = arith.mulf %257, %210 : vector<8x32xf32>
    %267 = arith.mulf %251, %259 : vector<8x32xf32>
    %268 = arith.addf %266, %267 : vector<8x32xf32>
    %269 = math.tanh %268 : vector<8x32xf32>
    %270 = arith.mulf %265, %269 : vector<8x32xf32>
    %cst_54 = arith.constant dense<0.000000e+00> : vector<8x128xf32>
    %271 = tpu.matmul %270, %8, %cst_54 {dimension_numbers = #tpu.dot_dimension_numbers<[1], [0], [0], [1], [0, 0, 1, 1], [], []>} : vector<8x32xf32>, vector<32x128xf32>, vector<8x128xf32> -> vector<8x128xf32>
    %cst_55 = arith.constant dense<0.000000e+00> : vector<8x128xf32>
    %272 = tpu.matmul %242, %9, %cst_55 {dimension_numbers = #tpu.dot_dimension_numbers<[1], [0], [0], [1], [0, 0, 1, 1], [], []>} : vector<8x32xf32>, vector<32x128xf32>, vector<8x128xf32> -> vector<8x128xf32>
    %273 = arith.addf %271, %272 : vector<8x128xf32>
    %274 = vector.broadcast %10 : vector<1x128xf32> to vector<8x128xf32>
    %275 = arith.addf %273, %274 : vector<8x128xf32>
    %276 = vector.extract_strided_slice %275 {offsets = [0, 0], sizes = [8, 32], strides = [1, 1]} : vector<8x128xf32> to vector<8x32xf32>
    %277 = arith.negf %276 : vector<8x32xf32>
    %278 = math.exp %277 : vector<8x32xf32>
    %cst_56 = arith.constant 1.000000e+00 : f32
    %279 = vector.broadcast %cst_56 : f32 to vector<8x32xf32>
    %280 = arith.addf %279, %278 : vector<8x32xf32>
    %281 = arith.divf %279, %280 : vector<8x32xf32>
    %282 = vector.extract_strided_slice %275 {offsets = [0, 32], sizes = [8, 32], strides = [1, 1]} : vector<8x128xf32> to vector<8x32xf32>
    %283 = arith.negf %282 : vector<8x32xf32>
    %284 = math.exp %283 : vector<8x32xf32>
    %cst_57 = arith.constant 1.000000e+00 : f32
    %285 = vector.broadcast %cst_57 : f32 to vector<8x32xf32>
    %286 = arith.addf %285, %284 : vector<8x32xf32>
    %287 = arith.divf %285, %286 : vector<8x32xf32>
    %288 = vector.extract_strided_slice %275 {offsets = [0, 64], sizes = [8, 32], strides = [1, 1]} : vector<8x128xf32> to vector<8x32xf32>
    %289 = math.tanh %288 : vector<8x32xf32>
    %290 = vector.extract_strided_slice %275 {offsets = [0, 96], sizes = [8, 32], strides = [1, 1]} : vector<8x128xf32> to vector<8x32xf32>
    %291 = arith.negf %290 : vector<8x32xf32>
    %292 = math.exp %291 : vector<8x32xf32>
    %cst_58 = arith.constant 1.000000e+00 : f32
    %293 = vector.broadcast %cst_58 : f32 to vector<8x32xf32>
    %294 = arith.addf %293, %292 : vector<8x32xf32>
    %295 = arith.divf %293, %294 : vector<8x32xf32>
    %296 = arith.mulf %287, %240 : vector<8x32xf32>
    %297 = arith.mulf %281, %289 : vector<8x32xf32>
    %298 = arith.addf %296, %297 : vector<8x32xf32>
    %299 = math.tanh %298 : vector<8x32xf32>
    %300 = arith.mulf %295, %299 : vector<8x32xf32>
    %301 = vector.extract_strided_slice %6 {offsets = [40, 0], sizes = [8, 128], strides = [1, 1]} : vector<64x128xf32> to vector<8x128xf32>
    %cst_59 = arith.constant dense<0.000000e+00> : vector<8x128xf32>
    %302 = tpu.matmul %270, %7, %cst_59 {dimension_numbers = #tpu.dot_dimension_numbers<[1], [0], [0], [1], [0, 0, 1, 1], [], []>} : vector<8x32xf32>, vector<32x128xf32>, vector<8x128xf32> -> vector<8x128xf32>
    %303 = arith.addf %301, %302 : vector<8x128xf32>
    %304 = vector.extract_strided_slice %303 {offsets = [0, 0], sizes = [8, 32], strides = [1, 1]} : vector<8x128xf32> to vector<8x32xf32>
    %305 = arith.negf %304 : vector<8x32xf32>
    %306 = math.exp %305 : vector<8x32xf32>
    %cst_60 = arith.constant 1.000000e+00 : f32
    %307 = vector.broadcast %cst_60 : f32 to vector<8x32xf32>
    %308 = arith.addf %307, %306 : vector<8x32xf32>
    %309 = arith.divf %307, %308 : vector<8x32xf32>
    %310 = vector.extract_strided_slice %303 {offsets = [0, 32], sizes = [8, 32], strides = [1, 1]} : vector<8x128xf32> to vector<8x32xf32>
    %311 = arith.negf %310 : vector<8x32xf32>
    %312 = math.exp %311 : vector<8x32xf32>
    %cst_61 = arith.constant 1.000000e+00 : f32
    %313 = vector.broadcast %cst_61 : f32 to vector<8x32xf32>
    %314 = arith.addf %313, %312 : vector<8x32xf32>
    %315 = arith.divf %313, %314 : vector<8x32xf32>
    %316 = vector.extract_strided_slice %303 {offsets = [0, 64], sizes = [8, 32], strides = [1, 1]} : vector<8x128xf32> to vector<8x32xf32>
    %317 = math.tanh %316 : vector<8x32xf32>
    %318 = vector.extract_strided_slice %303 {offsets = [0, 96], sizes = [8, 32], strides = [1, 1]} : vector<8x128xf32> to vector<8x32xf32>
    %319 = arith.negf %318 : vector<8x32xf32>
    %320 = math.exp %319 : vector<8x32xf32>
    %cst_62 = arith.constant 1.000000e+00 : f32
    %321 = vector.broadcast %cst_62 : f32 to vector<8x32xf32>
    %322 = arith.addf %321, %320 : vector<8x32xf32>
    %323 = arith.divf %321, %322 : vector<8x32xf32>
    %324 = arith.mulf %315, %268 : vector<8x32xf32>
    %325 = arith.mulf %309, %317 : vector<8x32xf32>
    %326 = arith.addf %324, %325 : vector<8x32xf32>
    %327 = math.tanh %326 : vector<8x32xf32>
    %328 = arith.mulf %323, %327 : vector<8x32xf32>
    %cst_63 = arith.constant dense<0.000000e+00> : vector<8x128xf32>
    %329 = tpu.matmul %328, %8, %cst_63 {dimension_numbers = #tpu.dot_dimension_numbers<[1], [0], [0], [1], [0, 0, 1, 1], [], []>} : vector<8x32xf32>, vector<32x128xf32>, vector<8x128xf32> -> vector<8x128xf32>
    %cst_64 = arith.constant dense<0.000000e+00> : vector<8x128xf32>
    %330 = tpu.matmul %300, %9, %cst_64 {dimension_numbers = #tpu.dot_dimension_numbers<[1], [0], [0], [1], [0, 0, 1, 1], [], []>} : vector<8x32xf32>, vector<32x128xf32>, vector<8x128xf32> -> vector<8x128xf32>
    %331 = arith.addf %329, %330 : vector<8x128xf32>
    %332 = vector.broadcast %10 : vector<1x128xf32> to vector<8x128xf32>
    %333 = arith.addf %331, %332 : vector<8x128xf32>
    %334 = vector.extract_strided_slice %333 {offsets = [0, 0], sizes = [8, 32], strides = [1, 1]} : vector<8x128xf32> to vector<8x32xf32>
    %335 = arith.negf %334 : vector<8x32xf32>
    %336 = math.exp %335 : vector<8x32xf32>
    %cst_65 = arith.constant 1.000000e+00 : f32
    %337 = vector.broadcast %cst_65 : f32 to vector<8x32xf32>
    %338 = arith.addf %337, %336 : vector<8x32xf32>
    %339 = arith.divf %337, %338 : vector<8x32xf32>
    %340 = vector.extract_strided_slice %333 {offsets = [0, 32], sizes = [8, 32], strides = [1, 1]} : vector<8x128xf32> to vector<8x32xf32>
    %341 = arith.negf %340 : vector<8x32xf32>
    %342 = math.exp %341 : vector<8x32xf32>
    %cst_66 = arith.constant 1.000000e+00 : f32
    %343 = vector.broadcast %cst_66 : f32 to vector<8x32xf32>
    %344 = arith.addf %343, %342 : vector<8x32xf32>
    %345 = arith.divf %343, %344 : vector<8x32xf32>
    %346 = vector.extract_strided_slice %333 {offsets = [0, 64], sizes = [8, 32], strides = [1, 1]} : vector<8x128xf32> to vector<8x32xf32>
    %347 = math.tanh %346 : vector<8x32xf32>
    %348 = vector.extract_strided_slice %333 {offsets = [0, 96], sizes = [8, 32], strides = [1, 1]} : vector<8x128xf32> to vector<8x32xf32>
    %349 = arith.negf %348 : vector<8x32xf32>
    %350 = math.exp %349 : vector<8x32xf32>
    %cst_67 = arith.constant 1.000000e+00 : f32
    %351 = vector.broadcast %cst_67 : f32 to vector<8x32xf32>
    %352 = arith.addf %351, %350 : vector<8x32xf32>
    %353 = arith.divf %351, %352 : vector<8x32xf32>
    %354 = arith.mulf %345, %298 : vector<8x32xf32>
    %355 = arith.mulf %339, %347 : vector<8x32xf32>
    %356 = arith.addf %354, %355 : vector<8x32xf32>
    %357 = math.tanh %356 : vector<8x32xf32>
    %358 = arith.mulf %353, %357 : vector<8x32xf32>
    %359 = vector.extract_strided_slice %6 {offsets = [48, 0], sizes = [8, 128], strides = [1, 1]} : vector<64x128xf32> to vector<8x128xf32>
    %cst_68 = arith.constant dense<0.000000e+00> : vector<8x128xf32>
    %360 = tpu.matmul %328, %7, %cst_68 {dimension_numbers = #tpu.dot_dimension_numbers<[1], [0], [0], [1], [0, 0, 1, 1], [], []>} : vector<8x32xf32>, vector<32x128xf32>, vector<8x128xf32> -> vector<8x128xf32>
    %361 = arith.addf %359, %360 : vector<8x128xf32>
    %362 = vector.extract_strided_slice %361 {offsets = [0, 0], sizes = [8, 32], strides = [1, 1]} : vector<8x128xf32> to vector<8x32xf32>
    %363 = arith.negf %362 : vector<8x32xf32>
    %364 = math.exp %363 : vector<8x32xf32>
    %cst_69 = arith.constant 1.000000e+00 : f32
    %365 = vector.broadcast %cst_69 : f32 to vector<8x32xf32>
    %366 = arith.addf %365, %364 : vector<8x32xf32>
    %367 = arith.divf %365, %366 : vector<8x32xf32>
    %368 = vector.extract_strided_slice %361 {offsets = [0, 32], sizes = [8, 32], strides = [1, 1]} : vector<8x128xf32> to vector<8x32xf32>
    %369 = arith.negf %368 : vector<8x32xf32>
    %370 = math.exp %369 : vector<8x32xf32>
    %cst_70 = arith.constant 1.000000e+00 : f32
    %371 = vector.broadcast %cst_70 : f32 to vector<8x32xf32>
    %372 = arith.addf %371, %370 : vector<8x32xf32>
    %373 = arith.divf %371, %372 : vector<8x32xf32>
    %374 = vector.extract_strided_slice %361 {offsets = [0, 64], sizes = [8, 32], strides = [1, 1]} : vector<8x128xf32> to vector<8x32xf32>
    %375 = math.tanh %374 : vector<8x32xf32>
    %376 = vector.extract_strided_slice %361 {offsets = [0, 96], sizes = [8, 32], strides = [1, 1]} : vector<8x128xf32> to vector<8x32xf32>
    %377 = arith.negf %376 : vector<8x32xf32>
    %378 = math.exp %377 : vector<8x32xf32>
    %cst_71 = arith.constant 1.000000e+00 : f32
    %379 = vector.broadcast %cst_71 : f32 to vector<8x32xf32>
    %380 = arith.addf %379, %378 : vector<8x32xf32>
    %381 = arith.divf %379, %380 : vector<8x32xf32>
    %382 = arith.mulf %373, %326 : vector<8x32xf32>
    %383 = arith.mulf %367, %375 : vector<8x32xf32>
    %384 = arith.addf %382, %383 : vector<8x32xf32>
    %385 = math.tanh %384 : vector<8x32xf32>
    %386 = arith.mulf %381, %385 : vector<8x32xf32>
    %cst_72 = arith.constant dense<0.000000e+00> : vector<8x128xf32>
    %387 = tpu.matmul %386, %8, %cst_72 {dimension_numbers = #tpu.dot_dimension_numbers<[1], [0], [0], [1], [0, 0, 1, 1], [], []>} : vector<8x32xf32>, vector<32x128xf32>, vector<8x128xf32> -> vector<8x128xf32>
    %cst_73 = arith.constant dense<0.000000e+00> : vector<8x128xf32>
    %388 = tpu.matmul %358, %9, %cst_73 {dimension_numbers = #tpu.dot_dimension_numbers<[1], [0], [0], [1], [0, 0, 1, 1], [], []>} : vector<8x32xf32>, vector<32x128xf32>, vector<8x128xf32> -> vector<8x128xf32>
    %389 = arith.addf %387, %388 : vector<8x128xf32>
    %390 = vector.broadcast %10 : vector<1x128xf32> to vector<8x128xf32>
    %391 = arith.addf %389, %390 : vector<8x128xf32>
    %392 = vector.extract_strided_slice %391 {offsets = [0, 0], sizes = [8, 32], strides = [1, 1]} : vector<8x128xf32> to vector<8x32xf32>
    %393 = arith.negf %392 : vector<8x32xf32>
    %394 = math.exp %393 : vector<8x32xf32>
    %cst_74 = arith.constant 1.000000e+00 : f32
    %395 = vector.broadcast %cst_74 : f32 to vector<8x32xf32>
    %396 = arith.addf %395, %394 : vector<8x32xf32>
    %397 = arith.divf %395, %396 : vector<8x32xf32>
    %398 = vector.extract_strided_slice %391 {offsets = [0, 32], sizes = [8, 32], strides = [1, 1]} : vector<8x128xf32> to vector<8x32xf32>
    %399 = arith.negf %398 : vector<8x32xf32>
    %400 = math.exp %399 : vector<8x32xf32>
    %cst_75 = arith.constant 1.000000e+00 : f32
    %401 = vector.broadcast %cst_75 : f32 to vector<8x32xf32>
    %402 = arith.addf %401, %400 : vector<8x32xf32>
    %403 = arith.divf %401, %402 : vector<8x32xf32>
    %404 = vector.extract_strided_slice %391 {offsets = [0, 64], sizes = [8, 32], strides = [1, 1]} : vector<8x128xf32> to vector<8x32xf32>
    %405 = math.tanh %404 : vector<8x32xf32>
    %406 = vector.extract_strided_slice %391 {offsets = [0, 96], sizes = [8, 32], strides = [1, 1]} : vector<8x128xf32> to vector<8x32xf32>
    %407 = arith.negf %406 : vector<8x32xf32>
    %408 = math.exp %407 : vector<8x32xf32>
    %cst_76 = arith.constant 1.000000e+00 : f32
    %409 = vector.broadcast %cst_76 : f32 to vector<8x32xf32>
    %410 = arith.addf %409, %408 : vector<8x32xf32>
    %411 = arith.divf %409, %410 : vector<8x32xf32>
    %412 = arith.mulf %403, %356 : vector<8x32xf32>
    %413 = arith.mulf %397, %405 : vector<8x32xf32>
    %414 = arith.addf %412, %413 : vector<8x32xf32>
    %415 = math.tanh %414 : vector<8x32xf32>
    %416 = arith.mulf %411, %415 : vector<8x32xf32>
    %417 = vector.extract_strided_slice %6 {offsets = [56, 0], sizes = [8, 128], strides = [1, 1]} : vector<64x128xf32> to vector<8x128xf32>
    %cst_77 = arith.constant dense<0.000000e+00> : vector<8x128xf32>
    %418 = tpu.matmul %386, %7, %cst_77 {dimension_numbers = #tpu.dot_dimension_numbers<[1], [0], [0], [1], [0, 0, 1, 1], [], []>} : vector<8x32xf32>, vector<32x128xf32>, vector<8x128xf32> -> vector<8x128xf32>
    %419 = arith.addf %417, %418 : vector<8x128xf32>
    %420 = vector.extract_strided_slice %419 {offsets = [0, 0], sizes = [8, 32], strides = [1, 1]} : vector<8x128xf32> to vector<8x32xf32>
    %421 = arith.negf %420 : vector<8x32xf32>
    %422 = math.exp %421 : vector<8x32xf32>
    %cst_78 = arith.constant 1.000000e+00 : f32
    %423 = vector.broadcast %cst_78 : f32 to vector<8x32xf32>
    %424 = arith.addf %423, %422 : vector<8x32xf32>
    %425 = arith.divf %423, %424 : vector<8x32xf32>
    %426 = vector.extract_strided_slice %419 {offsets = [0, 32], sizes = [8, 32], strides = [1, 1]} : vector<8x128xf32> to vector<8x32xf32>
    %427 = arith.negf %426 : vector<8x32xf32>
    %428 = math.exp %427 : vector<8x32xf32>
    %cst_79 = arith.constant 1.000000e+00 : f32
    %429 = vector.broadcast %cst_79 : f32 to vector<8x32xf32>
    %430 = arith.addf %429, %428 : vector<8x32xf32>
    %431 = arith.divf %429, %430 : vector<8x32xf32>
    %432 = vector.extract_strided_slice %419 {offsets = [0, 64], sizes = [8, 32], strides = [1, 1]} : vector<8x128xf32> to vector<8x32xf32>
    %433 = math.tanh %432 : vector<8x32xf32>
    %434 = vector.extract_strided_slice %419 {offsets = [0, 96], sizes = [8, 32], strides = [1, 1]} : vector<8x128xf32> to vector<8x32xf32>
    %435 = arith.negf %434 : vector<8x32xf32>
    %436 = math.exp %435 : vector<8x32xf32>
    %cst_80 = arith.constant 1.000000e+00 : f32
    %437 = vector.broadcast %cst_80 : f32 to vector<8x32xf32>
    %438 = arith.addf %437, %436 : vector<8x32xf32>
    %439 = arith.divf %437, %438 : vector<8x32xf32>
    %440 = arith.mulf %431, %384 : vector<8x32xf32>
    %441 = arith.mulf %425, %433 : vector<8x32xf32>
    %442 = arith.addf %440, %441 : vector<8x32xf32>
    %443 = math.tanh %442 : vector<8x32xf32>
    %444 = arith.mulf %439, %443 : vector<8x32xf32>
    %cst_81 = arith.constant dense<0.000000e+00> : vector<8x128xf32>
    %445 = tpu.matmul %444, %8, %cst_81 {dimension_numbers = #tpu.dot_dimension_numbers<[1], [0], [0], [1], [0, 0, 1, 1], [], []>} : vector<8x32xf32>, vector<32x128xf32>, vector<8x128xf32> -> vector<8x128xf32>
    %cst_82 = arith.constant dense<0.000000e+00> : vector<8x128xf32>
    %446 = tpu.matmul %416, %9, %cst_82 {dimension_numbers = #tpu.dot_dimension_numbers<[1], [0], [0], [1], [0, 0, 1, 1], [], []>} : vector<8x32xf32>, vector<32x128xf32>, vector<8x128xf32> -> vector<8x128xf32>
    %447 = arith.addf %445, %446 : vector<8x128xf32>
    %448 = vector.broadcast %10 : vector<1x128xf32> to vector<8x128xf32>
    %449 = arith.addf %447, %448 : vector<8x128xf32>
    %450 = vector.extract_strided_slice %449 {offsets = [0, 0], sizes = [8, 32], strides = [1, 1]} : vector<8x128xf32> to vector<8x32xf32>
    %451 = arith.negf %450 : vector<8x32xf32>
    %452 = math.exp %451 : vector<8x32xf32>
    %cst_83 = arith.constant 1.000000e+00 : f32
    %453 = vector.broadcast %cst_83 : f32 to vector<8x32xf32>
    %454 = arith.addf %453, %452 : vector<8x32xf32>
    %455 = arith.divf %453, %454 : vector<8x32xf32>
    %456 = vector.extract_strided_slice %449 {offsets = [0, 32], sizes = [8, 32], strides = [1, 1]} : vector<8x128xf32> to vector<8x32xf32>
    %457 = arith.negf %456 : vector<8x32xf32>
    %458 = math.exp %457 : vector<8x32xf32>
    %cst_84 = arith.constant 1.000000e+00 : f32
    %459 = vector.broadcast %cst_84 : f32 to vector<8x32xf32>
    %460 = arith.addf %459, %458 : vector<8x32xf32>
    %461 = arith.divf %459, %460 : vector<8x32xf32>
    %462 = vector.extract_strided_slice %449 {offsets = [0, 64], sizes = [8, 32], strides = [1, 1]} : vector<8x128xf32> to vector<8x32xf32>
    %463 = math.tanh %462 : vector<8x32xf32>
    %464 = vector.extract_strided_slice %449 {offsets = [0, 96], sizes = [8, 32], strides = [1, 1]} : vector<8x128xf32> to vector<8x32xf32>
    %465 = arith.negf %464 : vector<8x32xf32>
    %466 = math.exp %465 : vector<8x32xf32>
    %cst_85 = arith.constant 1.000000e+00 : f32
    %467 = vector.broadcast %cst_85 : f32 to vector<8x32xf32>
    %468 = arith.addf %467, %466 : vector<8x32xf32>
    %469 = arith.divf %467, %468 : vector<8x32xf32>
    %470 = arith.mulf %461, %414 : vector<8x32xf32>
    %471 = arith.mulf %455, %463 : vector<8x32xf32>
    %472 = arith.addf %470, %471 : vector<8x32xf32>
    %473 = math.tanh %472 : vector<8x32xf32>
    %474 = arith.mulf %469, %473 : vector<8x32xf32>
    %c0_86 = arith.constant 0 : index
    %c0_87 = arith.constant 0 : index
    %475 = vector.load %arg7[%c0_86, %c0_87] : memref<32x32xf32, #tpu.memory_space<vmem>>, vector<32x32xf32>
    %c0_88 = arith.constant 0 : index
    %c0_89 = arith.constant 0 : index
    %476 = vector.load %arg8[%c0_88, %c0_89] : memref<32x128xf32, #tpu.memory_space<vmem>>, vector<32x128xf32>
    %cst_90 = arith.constant dense<0.000000e+00> : vector<32x128xf32>
    %477 = tpu.matmul %475, %476, %cst_90 {dimension_numbers = #tpu.dot_dimension_numbers<[1], [0], [0], [1], [0, 0, 1, 1], [], []>} : vector<32x32xf32>, vector<32x128xf32>, vector<32x128xf32> -> vector<32x128xf32>
    %c0_91 = arith.constant 0 : index
    %c0_92 = arith.constant 0 : index
    %478 = vector.load %arg9[%c0_91, %c0_92] : memref<1x128xf32, #tpu.memory_space<vmem>>, vector<1x128xf32>
    %479 = vector.broadcast %478 : vector<1x128xf32> to vector<32x128xf32>
    %480 = arith.addf %477, %479 : vector<32x128xf32>
    %c0_93 = arith.constant 0 : index
    %c0_94 = arith.constant 0 : index
    %481 = vector.load %arg10[%c0_93, %c0_94] : memref<32x128xf32, #tpu.memory_space<vmem>>, vector<32x128xf32>
    %c0_95 = arith.constant 0 : index
    %c0_96 = arith.constant 0 : index
    %482 = vector.load %arg11[%c0_95, %c0_96] : memref<32x128xf32, #tpu.memory_space<vmem>>, vector<32x128xf32>
    %c0_97 = arith.constant 0 : index
    %c0_98 = arith.constant 0 : index
    %483 = vector.load %arg12[%c0_97, %c0_98] : memref<32x128xf32, #tpu.memory_space<vmem>>, vector<32x128xf32>
    %c0_99 = arith.constant 0 : index
    %c0_100 = arith.constant 0 : index
    %484 = vector.load %arg13[%c0_99, %c0_100] : memref<1x128xf32, #tpu.memory_space<vmem>>, vector<1x128xf32>
    %485 = vector.extract_strided_slice %480 {offsets = [0, 0], sizes = [8, 128], strides = [1, 1]} : vector<32x128xf32> to vector<8x128xf32>
    %cst_101 = arith.constant dense<0.000000e+00> : vector<8x128xf32>
    %486 = tpu.matmul %444, %481, %cst_101 {dimension_numbers = #tpu.dot_dimension_numbers<[1], [0], [0], [1], [0, 0, 1, 1], [], []>} : vector<8x32xf32>, vector<32x128xf32>, vector<8x128xf32> -> vector<8x128xf32>
    %487 = arith.addf %485, %486 : vector<8x128xf32>
    %488 = vector.extract_strided_slice %487 {offsets = [0, 0], sizes = [8, 32], strides = [1, 1]} : vector<8x128xf32> to vector<8x32xf32>
    %489 = arith.negf %488 : vector<8x32xf32>
    %490 = math.exp %489 : vector<8x32xf32>
    %cst_102 = arith.constant 1.000000e+00 : f32
    %491 = vector.broadcast %cst_102 : f32 to vector<8x32xf32>
    %492 = arith.addf %491, %490 : vector<8x32xf32>
    %493 = arith.divf %491, %492 : vector<8x32xf32>
    %494 = vector.extract_strided_slice %487 {offsets = [0, 32], sizes = [8, 32], strides = [1, 1]} : vector<8x128xf32> to vector<8x32xf32>
    %495 = arith.negf %494 : vector<8x32xf32>
    %496 = math.exp %495 : vector<8x32xf32>
    %cst_103 = arith.constant 1.000000e+00 : f32
    %497 = vector.broadcast %cst_103 : f32 to vector<8x32xf32>
    %498 = arith.addf %497, %496 : vector<8x32xf32>
    %499 = arith.divf %497, %498 : vector<8x32xf32>
    %500 = vector.extract_strided_slice %487 {offsets = [0, 64], sizes = [8, 32], strides = [1, 1]} : vector<8x128xf32> to vector<8x32xf32>
    %501 = math.tanh %500 : vector<8x32xf32>
    %502 = vector.extract_strided_slice %487 {offsets = [0, 96], sizes = [8, 32], strides = [1, 1]} : vector<8x128xf32> to vector<8x32xf32>
    %503 = arith.negf %502 : vector<8x32xf32>
    %504 = math.exp %503 : vector<8x32xf32>
    %cst_104 = arith.constant 1.000000e+00 : f32
    %505 = vector.broadcast %cst_104 : f32 to vector<8x32xf32>
    %506 = arith.addf %505, %504 : vector<8x32xf32>
    %507 = arith.divf %505, %506 : vector<8x32xf32>
    %508 = arith.mulf %499, %442 : vector<8x32xf32>
    %509 = arith.mulf %493, %501 : vector<8x32xf32>
    %510 = arith.addf %508, %509 : vector<8x32xf32>
    %511 = math.tanh %510 : vector<8x32xf32>
    %512 = arith.mulf %507, %511 : vector<8x32xf32>
    %cst_105 = arith.constant dense<0.000000e+00> : vector<8x128xf32>
    %513 = tpu.matmul %512, %482, %cst_105 {dimension_numbers = #tpu.dot_dimension_numbers<[1], [0], [0], [1], [0, 0, 1, 1], [], []>} : vector<8x32xf32>, vector<32x128xf32>, vector<8x128xf32> -> vector<8x128xf32>
    %cst_106 = arith.constant dense<0.000000e+00> : vector<8x128xf32>
    %514 = tpu.matmul %474, %483, %cst_106 {dimension_numbers = #tpu.dot_dimension_numbers<[1], [0], [0], [1], [0, 0, 1, 1], [], []>} : vector<8x32xf32>, vector<32x128xf32>, vector<8x128xf32> -> vector<8x128xf32>
    %515 = arith.addf %513, %514 : vector<8x128xf32>
    %516 = vector.broadcast %484 : vector<1x128xf32> to vector<8x128xf32>
    %517 = arith.addf %515, %516 : vector<8x128xf32>
    %518 = vector.extract_strided_slice %517 {offsets = [0, 0], sizes = [8, 32], strides = [1, 1]} : vector<8x128xf32> to vector<8x32xf32>
    %519 = arith.negf %518 : vector<8x32xf32>
    %520 = math.exp %519 : vector<8x32xf32>
    %cst_107 = arith.constant 1.000000e+00 : f32
    %521 = vector.broadcast %cst_107 : f32 to vector<8x32xf32>
    %522 = arith.addf %521, %520 : vector<8x32xf32>
    %523 = arith.divf %521, %522 : vector<8x32xf32>
    %524 = vector.extract_strided_slice %517 {offsets = [0, 32], sizes = [8, 32], strides = [1, 1]} : vector<8x128xf32> to vector<8x32xf32>
    %525 = arith.negf %524 : vector<8x32xf32>
    %526 = math.exp %525 : vector<8x32xf32>
    %cst_108 = arith.constant 1.000000e+00 : f32
    %527 = vector.broadcast %cst_108 : f32 to vector<8x32xf32>
    %528 = arith.addf %527, %526 : vector<8x32xf32>
    %529 = arith.divf %527, %528 : vector<8x32xf32>
    %530 = vector.extract_strided_slice %517 {offsets = [0, 64], sizes = [8, 32], strides = [1, 1]} : vector<8x128xf32> to vector<8x32xf32>
    %531 = math.tanh %530 : vector<8x32xf32>
    %532 = vector.extract_strided_slice %517 {offsets = [0, 96], sizes = [8, 32], strides = [1, 1]} : vector<8x128xf32> to vector<8x32xf32>
    %533 = arith.negf %532 : vector<8x32xf32>
    %534 = math.exp %533 : vector<8x32xf32>
    %cst_109 = arith.constant 1.000000e+00 : f32
    %535 = vector.broadcast %cst_109 : f32 to vector<8x32xf32>
    %536 = arith.addf %535, %534 : vector<8x32xf32>
    %537 = arith.divf %535, %536 : vector<8x32xf32>
    %538 = arith.mulf %529, %472 : vector<8x32xf32>
    %539 = arith.mulf %523, %531 : vector<8x32xf32>
    %540 = arith.addf %538, %539 : vector<8x32xf32>
    %541 = math.tanh %540 : vector<8x32xf32>
    %542 = arith.mulf %537, %541 : vector<8x32xf32>
    %c0_110 = arith.constant 0 : index
    %c0_111 = arith.constant 0 : index
    %543 = vector.load %arg17[%c0_110, %c0_111] : memref<32x32xf32, #tpu.memory_space<vmem>>, vector<8x32xf32>
    tpu.vector_store %arg17[%c0_110, %c0_111], %542 {strides = array<i32>} : memref<32x32xf32, #tpu.memory_space<vmem>>, vector<8x32xf32>,
    %544 = vector.extract_strided_slice %480 {offsets = [8, 0], sizes = [8, 128], strides = [1, 1]} : vector<32x128xf32> to vector<8x128xf32>
    %cst_112 = arith.constant dense<0.000000e+00> : vector<8x128xf32>
    %545 = tpu.matmul %512, %481, %cst_112 {dimension_numbers = #tpu.dot_dimension_numbers<[1], [0], [0], [1], [0, 0, 1, 1], [], []>} : vector<8x32xf32>, vector<32x128xf32>, vector<8x128xf32> -> vector<8x128xf32>
    %546 = arith.addf %544, %545 : vector<8x128xf32>
    %547 = vector.extract_strided_slice %546 {offsets = [0, 0], sizes = [8, 32], strides = [1, 1]} : vector<8x128xf32> to vector<8x32xf32>
    %548 = arith.negf %547 : vector<8x32xf32>
    %549 = math.exp %548 : vector<8x32xf32>
    %cst_113 = arith.constant 1.000000e+00 : f32
    %550 = vector.broadcast %cst_113 : f32 to vector<8x32xf32>
    %551 = arith.addf %550, %549 : vector<8x32xf32>
    %552 = arith.divf %550, %551 : vector<8x32xf32>
    %553 = vector.extract_strided_slice %546 {offsets = [0, 32], sizes = [8, 32], strides = [1, 1]} : vector<8x128xf32> to vector<8x32xf32>
    %554 = arith.negf %553 : vector<8x32xf32>
    %555 = math.exp %554 : vector<8x32xf32>
    %cst_114 = arith.constant 1.000000e+00 : f32
    %556 = vector.broadcast %cst_114 : f32 to vector<8x32xf32>
    %557 = arith.addf %556, %555 : vector<8x32xf32>
    %558 = arith.divf %556, %557 : vector<8x32xf32>
    %559 = vector.extract_strided_slice %546 {offsets = [0, 64], sizes = [8, 32], strides = [1, 1]} : vector<8x128xf32> to vector<8x32xf32>
    %560 = math.tanh %559 : vector<8x32xf32>
    %561 = vector.extract_strided_slice %546 {offsets = [0, 96], sizes = [8, 32], strides = [1, 1]} : vector<8x128xf32> to vector<8x32xf32>
    %562 = arith.negf %561 : vector<8x32xf32>
    %563 = math.exp %562 : vector<8x32xf32>
    %cst_115 = arith.constant 1.000000e+00 : f32
    %564 = vector.broadcast %cst_115 : f32 to vector<8x32xf32>
    %565 = arith.addf %564, %563 : vector<8x32xf32>
    %566 = arith.divf %564, %565 : vector<8x32xf32>
    %567 = arith.mulf %558, %510 : vector<8x32xf32>
    %568 = arith.mulf %552, %560 : vector<8x32xf32>
    %569 = arith.addf %567, %568 : vector<8x32xf32>
    %570 = math.tanh %569 : vector<8x32xf32>
    %571 = arith.mulf %566, %570 : vector<8x32xf32>
    %cst_116 = arith.constant dense<0.000000e+00> : vector<8x128xf32>
    %572 = tpu.matmul %571, %482, %cst_116 {dimension_numbers = #tpu.dot_dimension_numbers<[1], [0], [0], [1], [0, 0, 1, 1], [], []>} : vector<8x32xf32>, vector<32x128xf32>, vector<8x128xf32> -> vector<8x128xf32>
    %cst_117 = arith.constant dense<0.000000e+00> : vector<8x128xf32>
    %573 = tpu.matmul %542, %483, %cst_117 {dimension_numbers = #tpu.dot_dimension_numbers<[1], [0], [0], [1], [0, 0, 1, 1], [], []>} : vector<8x32xf32>, vector<32x128xf32>, vector<8x128xf32> -> vector<8x128xf32>
    %574 = arith.addf %572, %573 : vector<8x128xf32>
    %575 = vector.broadcast %484 : vector<1x128xf32> to vector<8x128xf32>
    %576 = arith.addf %574, %575 : vector<8x128xf32>
    %577 = vector.extract_strided_slice %576 {offsets = [0, 0], sizes = [8, 32], strides = [1, 1]} : vector<8x128xf32> to vector<8x32xf32>
    %578 = arith.negf %577 : vector<8x32xf32>
    %579 = math.exp %578 : vector<8x32xf32>
    %cst_118 = arith.constant 1.000000e+00 : f32
    %580 = vector.broadcast %cst_118 : f32 to vector<8x32xf32>
    %581 = arith.addf %580, %579 : vector<8x32xf32>
    %582 = arith.divf %580, %581 : vector<8x32xf32>
    %583 = vector.extract_strided_slice %576 {offsets = [0, 32], sizes = [8, 32], strides = [1, 1]} : vector<8x128xf32> to vector<8x32xf32>
    %584 = arith.negf %583 : vector<8x32xf32>
    %585 = math.exp %584 : vector<8x32xf32>
    %cst_119 = arith.constant 1.000000e+00 : f32
    %586 = vector.broadcast %cst_119 : f32 to vector<8x32xf32>
    %587 = arith.addf %586, %585 : vector<8x32xf32>
    %588 = arith.divf %586, %587 : vector<8x32xf32>
    %589 = vector.extract_strided_slice %576 {offsets = [0, 64], sizes = [8, 32], strides = [1, 1]} : vector<8x128xf32> to vector<8x32xf32>
    %590 = math.tanh %589 : vector<8x32xf32>
    %591 = vector.extract_strided_slice %576 {offsets = [0, 96], sizes = [8, 32], strides = [1, 1]} : vector<8x128xf32> to vector<8x32xf32>
    %592 = arith.negf %591 : vector<8x32xf32>
    %593 = math.exp %592 : vector<8x32xf32>
    %cst_120 = arith.constant 1.000000e+00 : f32
    %594 = vector.broadcast %cst_120 : f32 to vector<8x32xf32>
    %595 = arith.addf %594, %593 : vector<8x32xf32>
    %596 = arith.divf %594, %595 : vector<8x32xf32>
    %597 = arith.mulf %588, %540 : vector<8x32xf32>
    %598 = arith.mulf %582, %590 : vector<8x32xf32>
    %599 = arith.addf %597, %598 : vector<8x32xf32>
    %600 = math.tanh %599 : vector<8x32xf32>
    %601 = arith.mulf %596, %600 : vector<8x32xf32>
    %c8 = arith.constant 8 : index
    %c0_121 = arith.constant 0 : index
    %602 = vector.load %arg17[%c8, %c0_121] : memref<32x32xf32, #tpu.memory_space<vmem>>, vector<8x32xf32>
    tpu.vector_store %arg17[%c8, %c0_121], %601 {strides = array<i32>} : memref<32x32xf32, #tpu.memory_space<vmem>>, vector<8x32xf32>,
    %603 = vector.extract_strided_slice %480 {offsets = [16, 0], sizes = [8, 128], strides = [1, 1]} : vector<32x128xf32> to vector<8x128xf32>
    %cst_122 = arith.constant dense<0.000000e+00> : vector<8x128xf32>
    %604 = tpu.matmul %571, %481, %cst_122 {dimension_numbers = #tpu.dot_dimension_numbers<[1], [0], [0], [1], [0, 0, 1, 1], [], []>} : vector<8x32xf32>, vector<32x128xf32>, vector<8x128xf32> -> vector<8x128xf32>
    %605 = arith.addf %603, %604 : vector<8x128xf32>
    %606 = vector.extract_strided_slice %605 {offsets = [0, 0], sizes = [8, 32], strides = [1, 1]} : vector<8x128xf32> to vector<8x32xf32>
    %607 = arith.negf %606 : vector<8x32xf32>
    %608 = math.exp %607 : vector<8x32xf32>
    %cst_123 = arith.constant 1.000000e+00 : f32
    %609 = vector.broadcast %cst_123 : f32 to vector<8x32xf32>
    %610 = arith.addf %609, %608 : vector<8x32xf32>
    %611 = arith.divf %609, %610 : vector<8x32xf32>
    %612 = vector.extract_strided_slice %605 {offsets = [0, 32], sizes = [8, 32], strides = [1, 1]} : vector<8x128xf32> to vector<8x32xf32>
    %613 = arith.negf %612 : vector<8x32xf32>
    %614 = math.exp %613 : vector<8x32xf32>
    %cst_124 = arith.constant 1.000000e+00 : f32
    %615 = vector.broadcast %cst_124 : f32 to vector<8x32xf32>
    %616 = arith.addf %615, %614 : vector<8x32xf32>
    %617 = arith.divf %615, %616 : vector<8x32xf32>
    %618 = vector.extract_strided_slice %605 {offsets = [0, 64], sizes = [8, 32], strides = [1, 1]} : vector<8x128xf32> to vector<8x32xf32>
    %619 = math.tanh %618 : vector<8x32xf32>
    %620 = vector.extract_strided_slice %605 {offsets = [0, 96], sizes = [8, 32], strides = [1, 1]} : vector<8x128xf32> to vector<8x32xf32>
    %621 = arith.negf %620 : vector<8x32xf32>
    %622 = math.exp %621 : vector<8x32xf32>
    %cst_125 = arith.constant 1.000000e+00 : f32
    %623 = vector.broadcast %cst_125 : f32 to vector<8x32xf32>
    %624 = arith.addf %623, %622 : vector<8x32xf32>
    %625 = arith.divf %623, %624 : vector<8x32xf32>
    %626 = arith.mulf %617, %569 : vector<8x32xf32>
    %627 = arith.mulf %611, %619 : vector<8x32xf32>
    %628 = arith.addf %626, %627 : vector<8x32xf32>
    %629 = math.tanh %628 : vector<8x32xf32>
    %630 = arith.mulf %625, %629 : vector<8x32xf32>
    %cst_126 = arith.constant dense<0.000000e+00> : vector<8x128xf32>
    %631 = tpu.matmul %630, %482, %cst_126 {dimension_numbers = #tpu.dot_dimension_numbers<[1], [0], [0], [1], [0, 0, 1, 1], [], []>} : vector<8x32xf32>, vector<32x128xf32>, vector<8x128xf32> -> vector<8x128xf32>
    %cst_127 = arith.constant dense<0.000000e+00> : vector<8x128xf32>
    %632 = tpu.matmul %601, %483, %cst_127 {dimension_numbers = #tpu.dot_dimension_numbers<[1], [0], [0], [1], [0, 0, 1, 1], [], []>} : vector<8x32xf32>, vector<32x128xf32>, vector<8x128xf32> -> vector<8x128xf32>
    %633 = arith.addf %631, %632 : vector<8x128xf32>
    %634 = vector.broadcast %484 : vector<1x128xf32> to vector<8x128xf32>
    %635 = arith.addf %633, %634 : vector<8x128xf32>
    %636 = vector.extract_strided_slice %635 {offsets = [0, 0], sizes = [8, 32], strides = [1, 1]} : vector<8x128xf32> to vector<8x32xf32>
    %637 = arith.negf %636 : vector<8x32xf32>
    %638 = math.exp %637 : vector<8x32xf32>
    %cst_128 = arith.constant 1.000000e+00 : f32
    %639 = vector.broadcast %cst_128 : f32 to vector<8x32xf32>
    %640 = arith.addf %639, %638 : vector<8x32xf32>
    %641 = arith.divf %639, %640 : vector<8x32xf32>
    %642 = vector.extract_strided_slice %635 {offsets = [0, 32], sizes = [8, 32], strides = [1, 1]} : vector<8x128xf32> to vector<8x32xf32>
    %643 = arith.negf %642 : vector<8x32xf32>
    %644 = math.exp %643 : vector<8x32xf32>
    %cst_129 = arith.constant 1.000000e+00 : f32
    %645 = vector.broadcast %cst_129 : f32 to vector<8x32xf32>
    %646 = arith.addf %645, %644 : vector<8x32xf32>
    %647 = arith.divf %645, %646 : vector<8x32xf32>
    %648 = vector.extract_strided_slice %635 {offsets = [0, 64], sizes = [8, 32], strides = [1, 1]} : vector<8x128xf32> to vector<8x32xf32>
    %649 = math.tanh %648 : vector<8x32xf32>
    %650 = vector.extract_strided_slice %635 {offsets = [0, 96], sizes = [8, 32], strides = [1, 1]} : vector<8x128xf32> to vector<8x32xf32>
    %651 = arith.negf %650 : vector<8x32xf32>
    %652 = math.exp %651 : vector<8x32xf32>
    %cst_130 = arith.constant 1.000000e+00 : f32
    %653 = vector.broadcast %cst_130 : f32 to vector<8x32xf32>
    %654 = arith.addf %653, %652 : vector<8x32xf32>
    %655 = arith.divf %653, %654 : vector<8x32xf32>
    %656 = arith.mulf %647, %599 : vector<8x32xf32>
    %657 = arith.mulf %641, %649 : vector<8x32xf32>
    %658 = arith.addf %656, %657 : vector<8x32xf32>
    %659 = math.tanh %658 : vector<8x32xf32>
    %660 = arith.mulf %655, %659 : vector<8x32xf32>
    %c16 = arith.constant 16 : index
    %c0_131 = arith.constant 0 : index
    %661 = vector.load %arg17[%c16, %c0_131] : memref<32x32xf32, #tpu.memory_space<vmem>>, vector<8x32xf32>
    tpu.vector_store %arg17[%c16, %c0_131], %660 {strides = array<i32>} : memref<32x32xf32, #tpu.memory_space<vmem>>, vector<8x32xf32>,
    %662 = vector.extract_strided_slice %480 {offsets = [24, 0], sizes = [8, 128], strides = [1, 1]} : vector<32x128xf32> to vector<8x128xf32>
    %cst_132 = arith.constant dense<0.000000e+00> : vector<8x128xf32>
    %663 = tpu.matmul %630, %481, %cst_132 {dimension_numbers = #tpu.dot_dimension_numbers<[1], [0], [0], [1], [0, 0, 1, 1], [], []>} : vector<8x32xf32>, vector<32x128xf32>, vector<8x128xf32> -> vector<8x128xf32>
    %664 = arith.addf %662, %663 : vector<8x128xf32>
    %665 = vector.extract_strided_slice %664 {offsets = [0, 0], sizes = [8, 32], strides = [1, 1]} : vector<8x128xf32> to vector<8x32xf32>
    %666 = arith.negf %665 : vector<8x32xf32>
    %667 = math.exp %666 : vector<8x32xf32>
    %cst_133 = arith.constant 1.000000e+00 : f32
    %668 = vector.broadcast %cst_133 : f32 to vector<8x32xf32>
    %669 = arith.addf %668, %667 : vector<8x32xf32>
    %670 = arith.divf %668, %669 : vector<8x32xf32>
    %671 = vector.extract_strided_slice %664 {offsets = [0, 32], sizes = [8, 32], strides = [1, 1]} : vector<8x128xf32> to vector<8x32xf32>
    %672 = arith.negf %671 : vector<8x32xf32>
    %673 = math.exp %672 : vector<8x32xf32>
    %cst_134 = arith.constant 1.000000e+00 : f32
    %674 = vector.broadcast %cst_134 : f32 to vector<8x32xf32>
    %675 = arith.addf %674, %673 : vector<8x32xf32>
    %676 = arith.divf %674, %675 : vector<8x32xf32>
    %677 = vector.extract_strided_slice %664 {offsets = [0, 64], sizes = [8, 32], strides = [1, 1]} : vector<8x128xf32> to vector<8x32xf32>
    %678 = math.tanh %677 : vector<8x32xf32>
    %679 = vector.extract_strided_slice %664 {offsets = [0, 96], sizes = [8, 32], strides = [1, 1]} : vector<8x128xf32> to vector<8x32xf32>
    %680 = arith.negf %679 : vector<8x32xf32>
    %681 = math.exp %680 : vector<8x32xf32>
    %cst_135 = arith.constant 1.000000e+00 : f32
    %682 = vector.broadcast %cst_135 : f32 to vector<8x32xf32>
    %683 = arith.addf %682, %681 : vector<8x32xf32>
    %684 = arith.divf %682, %683 : vector<8x32xf32>
    %685 = arith.mulf %676, %628 : vector<8x32xf32>
    %686 = arith.mulf %670, %678 : vector<8x32xf32>
    %687 = arith.addf %685, %686 : vector<8x32xf32>
    %688 = math.tanh %687 : vector<8x32xf32>
    %689 = arith.mulf %684, %688 : vector<8x32xf32>
    %cst_136 = arith.constant dense<0.000000e+00> : vector<8x128xf32>
    %690 = tpu.matmul %689, %482, %cst_136 {dimension_numbers = #tpu.dot_dimension_numbers<[1], [0], [0], [1], [0, 0, 1, 1], [], []>} : vector<8x32xf32>, vector<32x128xf32>, vector<8x128xf32> -> vector<8x128xf32>
    %cst_137 = arith.constant dense<0.000000e+00> : vector<8x128xf32>
    %691 = tpu.matmul %660, %483, %cst_137 {dimension_numbers = #tpu.dot_dimension_numbers<[1], [0], [0], [1], [0, 0, 1, 1], [], []>} : vector<8x32xf32>, vector<32x128xf32>, vector<8x128xf32> -> vector<8x128xf32>
    %692 = arith.addf %690, %691 : vector<8x128xf32>
    %693 = vector.broadcast %484 : vector<1x128xf32> to vector<8x128xf32>
    %694 = arith.addf %692, %693 : vector<8x128xf32>
    %695 = vector.extract_strided_slice %694 {offsets = [0, 0], sizes = [8, 32], strides = [1, 1]} : vector<8x128xf32> to vector<8x32xf32>
    %696 = arith.negf %695 : vector<8x32xf32>
    %697 = math.exp %696 : vector<8x32xf32>
    %cst_138 = arith.constant 1.000000e+00 : f32
    %698 = vector.broadcast %cst_138 : f32 to vector<8x32xf32>
    %699 = arith.addf %698, %697 : vector<8x32xf32>
    %700 = arith.divf %698, %699 : vector<8x32xf32>
    %701 = vector.extract_strided_slice %694 {offsets = [0, 32], sizes = [8, 32], strides = [1, 1]} : vector<8x128xf32> to vector<8x32xf32>
    %702 = arith.negf %701 : vector<8x32xf32>
    %703 = math.exp %702 : vector<8x32xf32>
    %cst_139 = arith.constant 1.000000e+00 : f32
    %704 = vector.broadcast %cst_139 : f32 to vector<8x32xf32>
    %705 = arith.addf %704, %703 : vector<8x32xf32>
    %706 = arith.divf %704, %705 : vector<8x32xf32>
    %707 = vector.extract_strided_slice %694 {offsets = [0, 64], sizes = [8, 32], strides = [1, 1]} : vector<8x128xf32> to vector<8x32xf32>
    %708 = math.tanh %707 : vector<8x32xf32>
    %709 = vector.extract_strided_slice %694 {offsets = [0, 96], sizes = [8, 32], strides = [1, 1]} : vector<8x128xf32> to vector<8x32xf32>
    %710 = arith.negf %709 : vector<8x32xf32>
    %711 = math.exp %710 : vector<8x32xf32>
    %cst_140 = arith.constant 1.000000e+00 : f32
    %712 = vector.broadcast %cst_140 : f32 to vector<8x32xf32>
    %713 = arith.addf %712, %711 : vector<8x32xf32>
    %714 = arith.divf %712, %713 : vector<8x32xf32>
    %715 = arith.mulf %706, %658 : vector<8x32xf32>
    %716 = arith.mulf %700, %708 : vector<8x32xf32>
    %717 = arith.addf %715, %716 : vector<8x32xf32>
    %718 = math.tanh %717 : vector<8x32xf32>
    %719 = arith.mulf %714, %718 : vector<8x32xf32>
    %c24 = arith.constant 24 : index
    %c0_141 = arith.constant 0 : index
    %720 = vector.load %arg17[%c24, %c0_141] : memref<32x32xf32, #tpu.memory_space<vmem>>, vector<8x32xf32>
    tpu.vector_store %arg17[%c24, %c0_141], %719 {strides = array<i32>} : memref<32x32xf32, #tpu.memory_space<vmem>>, vector<8x32xf32>,
    %c0_142 = arith.constant 0 : index
    %c0_143 = arith.constant 0 : index
    %721 = vector.load %arg17[%c0_142, %c0_143] : memref<32x32xf32, #tpu.memory_space<vmem>>, vector<32x32xf32>
    %c0_144 = arith.constant 0 : index
    %c0_145 = arith.constant 0 : index
    %722 = vector.load %arg14[%c0_144, %c0_145] : memref<32x128xf32, #tpu.memory_space<vmem>>, vector<32x128xf32>
    %cst_146 = arith.constant dense<0.000000e+00> : vector<32x128xf32>
    %723 = tpu.matmul %721, %722, %cst_146 {dimension_numbers = #tpu.dot_dimension_numbers<[1], [0], [0], [1], [0, 0, 1, 1], [], []>} : vector<32x32xf32>, vector<32x128xf32>, vector<32x128xf32> -> vector<32x128xf32>
    %c0_147 = arith.constant 0 : index
    %c0_148 = arith.constant 0 : index
    %724 = vector.load %arg15[%c0_147, %c0_148] : memref<1x128xf32, #tpu.memory_space<vmem>>, vector<1x128xf32>
    %725 = vector.broadcast %724 : vector<1x128xf32> to vector<32x128xf32>
    %726 = arith.addf %723, %725 : vector<32x128xf32>
    %cst_149 = arith.constant dense<0xFF800000> : vector<32xf32>
    %727 = vector.multi_reduction <maximumf>, %726, %cst_149 [1] : vector<32x128xf32> to vector<32xf32>
    %728 = vector.shape_cast %727 : vector<32xf32> to vector<32x1xf32>
    %729 = vector.broadcast %728 : vector<32x1xf32> to vector<32x128xf32>
    %730 = arith.subf %726, %729 : vector<32x128xf32>
    %731 = math.exp %730 : vector<32x128xf32>
    %cst_150 = arith.constant dense<0.000000e+00> : vector<32xf32>
    %732 = vector.multi_reduction <add>, %731, %cst_150 [1] : vector<32x128xf32> to vector<32xf32>
    %733 = vector.shape_cast %732 : vector<32xf32> to vector<32x1xf32>
    %734 = math.log %733 : vector<32x1xf32>
    %735 = vector.broadcast %734 : vector<32x1xf32> to vector<32x128xf32>
    %736 = arith.subf %730, %735 : vector<32x128xf32>
    %c0_151 = arith.constant 0 : index
    %c0_152 = arith.constant 0 : index
    %737 = vector.load %arg16[%c0_151, %c0_152] : memref<32x128xf32, #tpu.memory_space<vmem>>, vector<32x128xf32>
    tpu.vector_store %arg16[%c0_151, %c0_152], %736 {strides = array<i32>} : memref<32x128xf32, #tpu.memory_space<vmem>>, vector<32x128xf32>,
    return
  }
}

</mosaic_0001>

<llo_original>
// kernel: encdec_forward.1
$region0: #{encdec_forward.1}
  #allocation0 [shape = 'u32[]', space=smem, size = 0x4, offset = 0x4, fixed_abs, tag = 'smem constant byte address 0x4 - core index']
  #allocation1 [shape = 'u32[72,128]{1,0:T(1,128)}', space=vmem, size = 0x9000, scoped, tag = 'internal scratch']
  #allocation2 [shape = 'f32[32,32]{1,0:T(8,128)}', space=vmem, size = 0x4000, scoped, tag = 'scratch operand']
  %s0 = inlined_call_operand.vmem [shape: f32[64,32], index: 0, kind: input, shape index: {}]
  %s1 = inlined_call_operand.vmem [shape: f32[32,128], index: 1, kind: input, shape index: {}]
  %s2 = inlined_call_operand.vmem [shape: f32[1,128], index: 2, kind: input, shape index: {}]
  %s3 = inlined_call_operand.vmem [shape: f32[32,128], index: 3, kind: input, shape index: {}]
  %s4 = inlined_call_operand.vmem [shape: f32[32,128], index: 4, kind: input, shape index: {}]
  %s5 = inlined_call_operand.vmem [shape: f32[32,128], index: 5, kind: input, shape index: {}]
  %s6 = inlined_call_operand.vmem [shape: f32[1,128], index: 6, kind: input, shape index: {}]
  %s7 = inlined_call_operand.vmem [shape: f32[32,32], index: 7, kind: input, shape index: {}]
  %s8 = inlined_call_operand.vmem [shape: f32[32,128], index: 8, kind: input, shape index: {}]
  %s9 = inlined_call_operand.vmem [shape: f32[1,128], index: 9, kind: input, shape index: {}]
  %s10 = inlined_call_operand.vmem [shape: f32[32,128], index: 10, kind: input, shape index: {}]
  %s11 = inlined_call_operand.vmem [shape: f32[32,128], index: 11, kind: input, shape index: {}]
  %s12 = inlined_call_operand.vmem [shape: f32[32,128], index: 12, kind: input, shape index: {}]
  %s13 = inlined_call_operand.vmem [shape: f32[1,128], index: 13, kind: input, shape index: {}]
  %s14 = inlined_call_operand.vmem [shape: f32[32,128], index: 14, kind: input, shape index: {}]
  %s15 = inlined_call_operand.vmem [shape: f32[1,128], index: 15, kind: input, shape index: {}]
  %s16 = inlined_call_operand.vmem [shape: f32[32,128], index: 16, kind: output, shape index: {}]
  %s17 = sld [smem:[#allocation0]]
  $region74: #{encdec_forward.1} parent=0
    _
  %s19 = ssub.s32 1, %s17
  %s20 = scalar_select 0, %s19, %s17
  // Predicated region
  $region2: #{encdec_forward.1} parent=0 // pred_check
    _
  $region3: #{encdec_forward.1} parent=0 // pred_check_branch
    %22 = sbr.rel (0) target = $region5
  $region4: #{encdec_forward.1} parent=0 // pred_region
    _
  $region5: #{encdec_forward.1} parent=0 // pred_fallthru
    _
  // Predicated region
  $region6: #{encdec_forward.1} parent=0 // pred_check
    _
  $region7: #{encdec_forward.1} parent=0 // pred_check_branch
    %24 = sbr.rel (0) target = $region9
  $region8: #{encdec_forward.1} parent=0 // pred_region
    _
  $region9: #{encdec_forward.1} parent=0 // pred_fallthru
    _
  // Predicated region
  $region10: #{encdec_forward.1} parent=0 // pred_check
    _
  $region11: #{encdec_forward.1} parent=0 // pred_check_branch
    %26 = sbr.rel (0) target = $region13
  $region12: #{encdec_forward.1} parent=0 // pred_region
    _
  $region13: #{encdec_forward.1} parent=0 // pred_fallthru
    _
  // Predicated region
  $region14: #{encdec_forward.1} parent=0 // pred_check
    _
  $region15: #{encdec_forward.1} parent=0 // pred_check_branch
    %28 = sbr.rel (0) target = $region17
  $region16: #{encdec_forward.1} parent=0 // pred_region
    _
  $region17: #{encdec_forward.1} parent=0 // pred_fallthru
    _
  // Predicated region
  $region18: #{encdec_forward.1} parent=0 // pred_check
    _
  $region19: #{encdec_forward.1} parent=0 // pred_check_branch
    %30 = sbr.rel (0) target = $region21
  $region20: #{encdec_forward.1} parent=0 // pred_region
    _
  $region21: #{encdec_forward.1} parent=0 // pred_fallthru
    _
  // Predicated region
  $region22: #{encdec_forward.1} parent=0 // pred_check
    _
  $region23: #{encdec_forward.1} parent=0 // pred_check_branch
    %32 = sbr.rel (0) target = $region25
  $region24: #{encdec_forward.1} parent=0 // pred_region
    _
  $region25: #{encdec_forward.1} parent=0 // pred_fallthru
    _
  // Predicated region
  $region26: #{encdec_forward.1} parent=0 // pred_check
    _
  $region27: #{encdec_forward.1} parent=0 // pred_check_branch
    %34 = sbr.rel (0) target = $region29
  $region28: #{encdec_forward.1} parent=0 // pred_region
    _
  $region29: #{encdec_forward.1} parent=0 // pred_fallthru
    _
  // Predicated region
  $region30: #{encdec_forward.1} parent=0 // pred_check
    _
  $region31: #{encdec_forward.1} parent=0 // pred_check_branch
    %36 = sbr.rel (0) target = $region33
  $region32: #{encdec_forward.1} parent=0 // pred_region
    _
  $region33: #{encdec_forward.1} parent=0 // pred_fallthru
    _
  // Predicated region
  $region34: #{encdec_forward.1} parent=0 // pred_check
    _
  $region35: #{encdec_forward.1} parent=0 // pred_check_branch
    %38 = sbr.rel (0) target = $region37
  $region36: #{encdec_forward.1} parent=0 // pred_region
    _
  $region37: #{encdec_forward.1} parent=0 // pred_fallthru
    _
  // Predicated region
  $region38: #{encdec_forward.1} parent=0 // pred_check
    _
  $region39: #{encdec_forward.1} parent=0 // pred_check_branch
    %40 = sbr.rel (0) target = $region41
  $region40: #{encdec_forward.1} parent=0 // pred_region
    _
  $region41: #{encdec_forward.1} parent=0 // pred_fallthru
    _
  // Predicated region
  $region42: #{encdec_forward.1} parent=0 // pred_check
    _
  $region43: #{encdec_forward.1} parent=0 // pred_check_branch
    %42 = sbr.rel (0) target = $region45
  $region44: #{encdec_forward.1} parent=0 // pred_region
    _
  $region45: #{encdec_forward.1} parent=0 // pred_fallthru
    _
  // Predicated region
  $region46: #{encdec_forward.1} parent=0 // pred_check
    _
  $region47: #{encdec_forward.1} parent=0 // pred_check_branch
    %44 = sbr.rel (0) target = $region49
  $region48: #{encdec_forward.1} parent=0 // pred_region
    _
  $region49: #{encdec_forward.1} parent=0 // pred_fallthru
    _
  // Predicated region
  $region50: #{encdec_forward.1} parent=0 // pred_check
    _
  $region51: #{encdec_forward.1} parent=0 // pred_check_branch
    %46 = sbr.rel (0) target = $region53
  $region52: #{encdec_forward.1} parent=0 // pred_region
    _
  $region53: #{encdec_forward.1} parent=0 // pred_fallthru
    _
  // Predicated region
  $region54: #{encdec_forward.1} parent=0 // pred_check
    _
  $region55: #{encdec_forward.1} parent=0 // pred_check_branch
    %48 = sbr.rel (0) target = $region57
  $region56: #{encdec_forward.1} parent=0 // pred_region
    _
  $region57: #{encdec_forward.1} parent=0 // pred_fallthru
    _
  // Predicated region
  $region58: #{encdec_forward.1} parent=0 // pred_check
    _
  $region59: #{encdec_forward.1} parent=0 // pred_check_branch
    %50 = sbr.rel (0) target = $region61
  $region60: #{encdec_forward.1} parent=0 // pred_region
    _
  $region61: #{encdec_forward.1} parent=0 // pred_fallthru
    _
  // Predicated region
  $region62: #{encdec_forward.1} parent=0 // pred_check
    _
  $region63: #{encdec_forward.1} parent=0 // pred_check_branch
    %52 = sbr.rel (0) target = $region65
  $region64: #{encdec_forward.1} parent=0 // pred_region
    _
  $region65: #{encdec_forward.1} parent=0 // pred_fallthru
    _
  %v53 = vld [vmem:[%s0] sm:$0xff]
  %v54 = vld [vmem:[%s0 + $0x8] sm:$0xff]
  %v55 = vld [vmem:[%s0 + $0x10] sm:$0xff]
  %v56 = vld [vmem:[%s0 + $0x18] sm:$0xff]
  %v57 = vld [vmem:[%s0 + $0x20] sm:$0xff]
  %v58 = vld [vmem:[%s0 + $0x28] sm:$0xff]
  %v59 = vld [vmem:[%s0 + $0x30] sm:$0xff]
  %v60 = vld [vmem:[%s0 + $0x38] sm:$0xff]
  %v61 = vld [vmem:[%s1] sm:$0xff]
  %v62 = vld [vmem:[%s1 + $0x8] sm:$0xff]
  %v63 = vld [vmem:[%s1 + $0x10] sm:$0xff]
  %v64 = vld [vmem:[%s1 + $0x18] sm:$0xff]
  %v65 = vld [vmem:[%s2] sm:$0x1]
  %v67 = vperm.slane %v65, 0
  %vm69 = vcmask 261120
  %v71 = vsel %vm69, %v53, 0
  %v74 = vsel %vm69, %v54, 0
  %v77 = vsel %vm69, %v55, 0
  %v80 = vsel %vm69, %v56, 0
  %v83 = vsel %vm69, %v57, 0
  %v86 = vsel %vm69, %v58, 0
  %v89 = vsel %vm69, %v59, 0
  %v92 = vsel %vm69, %v60, 0
  %94 = vmatpush.msra.mxu0 0.0
  %95 = vmatpush.msra.mxu0 0.0
  %96 = vmatpush.msra.mxu0 0.0
  %97 = vmatpush.msra.mxu0 0.0
  %98 = vmatpush.msra.mxu0 0.0
  %99 = vmatpush.msra.mxu0 0.0
  %100 = vmatpush.msra.mxu0 0.0
  %101 = vmatpush.msra.mxu0 0.0
  %102 = vmatpush.msra.mxu0 0.0
  %103 = vmatpush.msra.mxu0 0.0
  %104 = vmatpush.msra.mxu0 0.0
  %105 = vmatpush.msra.mxu0 0.0
  %106 = vmatpush.msra.mxu0 %v64
  %107 = vmatpush.msra.mxu0 %v63
  %108 = vmatpush.msra.mxu0 %v62
  %109 = vmatpush.msra.mxu0 %v61
  %110 = vmatmul.f32.gmra.mxu0 %v71
  %v111 = vpop.f32.mrf.mxu0
  %v112 = vadd.f32 %v67, %v111
  %113 = vmatmul.f32.gmra.mxu0 %v74
  %v114 = vpop.f32.mrf.mxu0
  %v115 = vadd.f32 %v67, %v114
  %116 = vmatmul.f32.gmra.mxu0 %v77
  %v117 = vpop.f32.mrf.mxu0
  %v118 = vadd.f32 %v67, %v117
  %119 = vmatmul.f32.gmra.mxu0 %v80
  %v120 = vpop.f32.mrf.mxu0
  %v121 = vadd.f32 %v67, %v120
  %122 = vmatmul.f32.gmra.mxu0 %v83
  %v123 = vpop.f32.mrf.mxu0
  %v124 = vadd.f32 %v67, %v123
  %125 = vmatmul.f32.gmra.mxu0 %v86
  %v126 = vpop.f32.mrf.mxu0
  %v127 = vadd.f32 %v67, %v126
  %128 = vmatmul.f32.gmra.mxu0 %v89
  %v129 = vpop.f32.mrf.mxu0
  %v130 = vadd.f32 %v67, %v129
  %131 = vmatmul.f32.gmra.mxu0 %v92
  %v132 = vpop.f32.mrf.mxu0
  %v133 = vadd.f32 %v67, %v132
  %134 = vdwg.mxu0
  %v135 = vld [vmem:[%s3] sm:$0xff]
  %v136 = vld [vmem:[%s3 + $0x8] sm:$0xff]
  %v137 = vld [vmem:[%s3 + $0x10] sm:$0xff]
  %v138 = vld [vmem:[%s3 + $0x18] sm:$0xff]
  %v139 = vld [vmem:[%s4] sm:$0xff]
  %v140 = vld [vmem:[%s4 + $0x8] sm:$0xff]
  %v141 = vld [vmem:[%s4 + $0x10] sm:$0xff]
  %v142 = vld [vmem:[%s4 + $0x18] sm:$0xff]
  %v143 = vld [vmem:[%s5] sm:$0xff]
  %v144 = vld [vmem:[%s5 + $0x8] sm:$0xff]
  %v145 = vld [vmem:[%s5 + $0x10] sm:$0xff]
  %v146 = vld [vmem:[%s5 + $0x18] sm:$0xff]
  %v147 = vld [vmem:[%s6] sm:$0x1]
  %v149 = vsel %vm69, 0.0, 0
  %151 = vmatpush.msra.mxu0 0.0
  %152 = vmatpush.msra.mxu0 0.0
  %153 = vmatpush.msra.mxu0 0.0
  %154 = vmatpush.msra.mxu0 0.0
  %155 = vmatpush.msra.mxu0 0.0
  %156 = vmatpush.msra.mxu0 0.0
  %157 = vmatpush.msra.mxu0 0.0
  %158 = vmatpush.msra.mxu0 0.0
  %159 = vmatpush.msra.mxu0 0.0
  %160 = vmatpush.msra.mxu0 0.0
  %161 = vmatpush.msra.mxu0 0.0
  %162 = vmatpush.msra.mxu0 0.0
  %163 = vmatpush.msra.mxu0 %v138
  %164 = vmatpush.msra.mxu0 %v137
  %165 = vmatpush.msra.mxu0 %v136
  %166 = vmatpush.msra.mxu0 %v135
  %167 = vmatmul.f32.gmra.mxu0 %v149
  %v168 = vpop.f32.mrf.mxu0
  %v169 = vadd.f32 0.0, %v168
  %170 = vdwg.mxu0
  %v171 = vadd.f32 %v112, %v169
  %v172 = vxor.u32 %v171, 2147483648
  %v173 = vmul.f32 %v172, 1.442695
  %v174 = vpow.pop %v173
  %v175 = vadd.f32 %v174, 1.0
  %v176 = vrcp.pop %v175
  %v177 = vmul.f32 %v175, %v176
  %v178 = vsub.f32 1.0, %v177
  %v179 = vmul.f32 %v176, %v178
  %v180 = vadd.f32 %v176, %v179
  %vm181 = vweird.f32 %v175
  %vm182 = vweird.f32 %v176
  %vm183 = vmor %vm181, %vm182
  %v184 = vsel %vm183, %v176, %v180
  %v185 = vand.u32 2147483647, %v175
  %vm186 = vcmp.eq.f32.partialorder %v185, 8.507059e+37
  %v187 = vand.u32 %v175, 2147483648
  %v188 = vor.u32 1.1754944e-38, %v187
  %v189 = vsel %vm186, %v188, %v184
  %v190 = vmul.f32 1.0, %v189
  %v191 = vtanh.pop %v171
  %v192 = vmul.f32 %v190, 0.0
  %194 = vrot.lane.b32.xlu0 %v191, 64
  %v195 = vpop.permute.xlu0 %194
  %v197 = vmul.f32 %v190, %v195
  %199 = vrot.lane.b32.xlu0 %v197, 32
  %v200 = vpop.permute.xlu0 %199
  %v202 = vadd.f32 %v192, %v200
  %v203 = vtanh.pop %v202
  %205 = vrot.lane.b32.xlu0 %v203, 64
  %v206 = vpop.permute.xlu0 %205
  %v208 = vmul.f32 %v190, %v206
  %209 = vmatpush.msra.mxu0 0.0
  %210 = vmatpush.msra.mxu0 0.0
  %211 = vmatpush.msra.mxu0 0.0
  %212 = vmatpush.msra.mxu0 0.0
  %213 = vmatpush.msra.mxu0 0.0
  %214 = vmatpush.msra.mxu0 0.0
  %215 = vmatpush.msra.mxu0 0.0
  %216 = vmatpush.msra.mxu0 0.0
  %217 = vmatpush.msra.mxu0 0.0
  %218 = vmatpush.msra.mxu0 0.0
  %219 = vmatpush.msra.mxu0 0.0
  %220 = vmatpush.msra.mxu0 0.0
  %221 = vmatpush.msra.mxu0 %v146
  %222 = vmatpush.msra.mxu0 %v145
  %223 = vmatpush.msra.mxu0 %v144
  %224 = vmatpush.msra.mxu0 %v143
  %225 = vmatmul.f32.gmra.mxu0 %v149
  %v226 = vpop.f32.mrf.mxu0
  %v227 = vadd.f32 0.0, %v226
  %228 = vdwg.mxu0
  %230 = vrot.lane.b32.xlu0 %v208, 32
  %v231 = vpop.permute.xlu0 %230
  %v232 = vsel %vm69, %v231, 0
  %234 = vmatpush.msra.mxu0 0.0
  %235 = vmatpush.msra.mxu0 0.0
  %236 = vmatpush.msra.mxu0 0.0
  %237 = vmatpush.msra.mxu0 0.0
  %238 = vmatpush.msra.mxu0 0.0
  %239 = vmatpush.msra.mxu0 0.0
  %240 = vmatpush.msra.mxu0 0.0
  %241 = vmatpush.msra.mxu0 0.0
  %242 = vmatpush.msra.mxu0 0.0
  %243 = vmatpush.msra.mxu0 0.0
  %244 = vmatpush.msra.mxu0 0.0
  %245 = vmatpush.msra.mxu0 0.0
  %246 = vmatpush.msra.mxu0 %v142
  %247 = vmatpush.msra.mxu0 %v141
  %248 = vmatpush.msra.mxu0 %v140
  %249 = vmatpush.msra.mxu0 %v139
  %250 = vmatmul.f32.gmra.mxu0 %v232
  %v251 = vpop.f32.mrf.mxu0
  %v252 = vadd.f32 %v227, %v251
  %253 = vdwg.mxu0
  %v255 = vperm.slane %v147, 0
  %v257 = vadd.f32 %v252, %v255
  %v258 = vxor.u32 %v257, 2147483648
  %v259 = vmul.f32 %v258, 1.442695
  %v260 = vpow.pop %v259
  %v261 = vadd.f32 %v260, 1.0
  %v262 = vrcp.pop %v261
  %v263 = vmul.f32 %v261, %v262
  %v264 = vsub.f32 1.0, %v263
  %v265 = vmul.f32 %v262, %v264
  %v266 = vadd.f32 %v262, %v265
  %vm267 = vweird.f32 %v261
  %vm268 = vweird.f32 %v262
  %vm269 = vmor %vm267, %vm268
  %v270 = vsel %vm269, %v262, %v266
  %v271 = vand.u32 2147483647, %v261
  %vm272 = vcmp.eq.f32.partialorder %v271, 8.507059e+37
  %v273 = vand.u32 %v261, 2147483648
  %v274 = vor.u32 1.1754944e-38, %v273
  %v275 = vsel %vm272, %v274, %v270
  %v276 = vmul.f32 1.0, %v275
  %v277 = vtanh.pop %v257
  %v278 = vmul.f32 %v276, 0.0
  %280 = vrot.lane.b32.xlu0 %v277, 64
  %v281 = vpop.permute.xlu0 %280
  %v283 = vmul.f32 %v276, %v281
  %285 = vrot.lane.b32.xlu0 %v283, 32
  %v286 = vpop.permute.xlu0 %285
  %v288 = vadd.f32 %v278, %v286
  %v289 = vtanh.pop %v288
  %291 = vrot.lane.b32.xlu0 %v289, 64
  %v292 = vpop.permute.xlu0 %291
  %v294 = vmul.f32 %v276, %v292
  %295 = vmatpush.msra.mxu0 0.0
  %296 = vmatpush.msra.mxu0 0.0
  %297 = vmatpush.msra.mxu0 0.0
  %298 = vmatpush.msra.mxu0 0.0
  %299 = vmatpush.msra.mxu0 0.0
  %300 = vmatpush.msra.mxu0 0.0
  %301 = vmatpush.msra.mxu0 0.0
  %302 = vmatpush.msra.mxu0 0.0
  %303 = vmatpush.msra.mxu0 0.0
  %304 = vmatpush.msra.mxu0 0.0
  %305 = vmatpush.msra.mxu0 0.0
  %306 = vmatpush.msra.mxu0 0.0
  %307 = vmatpush.msra.mxu0 %v138
  %308 = vmatpush.msra.mxu0 %v137
  %309 = vmatpush.msra.mxu0 %v136
  %310 = vmatpush.msra.mxu0 %v135
  %311 = vmatmul.f32.gmra.mxu0 %v232
  %v312 = vpop.f32.mrf.mxu0
  %v313 = vadd.f32 0.0, %v312
  %314 = vdwg.mxu0
  %v315 = vadd.f32 %v115, %v313
  %v316 = vxor.u32 %v315, 2147483648
  %v317 = vmul.f32 %v316, 1.442695
  %v318 = vpow.pop %v317
  %v319 = vadd.f32 %v318, 1.0
  %v320 = vrcp.pop %v319
  %v321 = vmul.f32 %v319, %v320
  %v322 = vsub.f32 1.0, %v321
  %v323 = vmul.f32 %v320, %v322
  %v324 = vadd.f32 %v320, %v323
  %vm325 = vweird.f32 %v319
  %vm326 = vweird.f32 %v320
  %vm327 = vmor %vm325, %vm326
  %v328 = vsel %vm327, %v320, %v324
  %v329 = vand.u32 2147483647, %v319
  %vm330 = vcmp.eq.f32.partialorder %v329, 8.507059e+37
  %v331 = vand.u32 %v319, 2147483648
  %v332 = vor.u32 1.1754944e-38, %v331
  %v333 = vsel %vm330, %v332, %v328
  %v334 = vmul.f32 1.0, %v333
  %v335 = vtanh.pop %v315
  %v336 = vmul.f32 %v334, %v202
  %338 = vrot.lane.b32.xlu0 %v335, 64
  %v339 = vpop.permute.xlu0 %338
  %v341 = vmul.f32 %v334, %v339
  %343 = vrot.lane.b32.xlu0 %v341, 32
  %v344 = vpop.permute.xlu0 %343
  %v346 = vadd.f32 %v336, %v344
  %v347 = vtanh.pop %v346
  %349 = vrot.lane.b32.xlu0 %v347, 64
  %v350 = vpop.permute.xlu0 %349
  %v352 = vmul.f32 %v334, %v350
  %354 = vrot.lane.b32.xlu0 %v294, 32
  %v355 = vpop.permute.xlu0 %354
  %v356 = vsel %vm69, %v355, 0
  %358 = vmatpush.msra.mxu0 0.0
  %359 = vmatpush.msra.mxu0 0.0
  %360 = vmatpush.msra.mxu0 0.0
  %361 = vmatpush.msra.mxu0 0.0
  %362 = vmatpush.msra.mxu0 0.0
  %363 = vmatpush.msra.mxu0 0.0
  %364 = vmatpush.msra.mxu0 0.0
  %365 = vmatpush.msra.mxu0 0.0
  %366 = vmatpush.msra.mxu0 0.0
  %367 = vmatpush.msra.mxu0 0.0
  %368 = vmatpush.msra.mxu0 0.0
  %369 = vmatpush.msra.mxu0 0.0
  %370 = vmatpush.msra.mxu0 %v146
  %371 = vmatpush.msra.mxu0 %v145
  %372 = vmatpush.msra.mxu0 %v144
  %373 = vmatpush.msra.mxu0 %v143
  %374 = vmatmul.f32.gmra.mxu0 %v356
  %v375 = vpop.f32.mrf.mxu0
  %v376 = vadd.f32 0.0, %v375
  %377 = vdwg.mxu0
  %379 = vrot.lane.b32.xlu0 %v352, 32
  %v380 = vpop.permute.xlu0 %379
  %v381 = vsel %vm69, %v380, 0
  %383 = vmatpush.msra.mxu0 0.0
  %384 = vmatpush.msra.mxu0 0.0
  %385 = vmatpush.msra.mxu0 0.0
  %386 = vmatpush.msra.mxu0 0.0
  %387 = vmatpush.msra.mxu0 0.0
  %388 = vmatpush.msra.mxu0 0.0
  %389 = vmatpush.msra.mxu0 0.0
  %390 = vmatpush.msra.mxu0 0.0
  %391 = vmatpush.msra.mxu0 0.0
  %392 = vmatpush.msra.mxu0 0.0
  %393 = vmatpush.msra.mxu0 0.0
  %394 = vmatpush.msra.mxu0 0.0
  %395 = vmatpush.msra.mxu0 %v142
  %396 = vmatpush.msra.mxu0 %v141
  %397 = vmatpush.msra.mxu0 %v140
  %398 = vmatpush.msra.mxu0 %v139
  %399 = vmatmul.f32.gmra.mxu0 %v381
  %v400 = vpop.f32.mrf.mxu0
  %v401 = vadd.f32 %v376, %v400
  %402 = vdwg.mxu0
  %v403 = vadd.f32 %v401, %v255
  %v404 = vxor.u32 %v403, 2147483648
  %v405 = vmul.f32 %v404, 1.442695
  %v406 = vpow.pop %v405
  %v407 = vadd.f32 %v406, 1.0
  %v408 = vrcp.pop %v407
  %v409 = vmul.f32 %v407, %v408
  %v410 = vsub.f32 1.0, %v409
  %v411 = vmul.f32 %v408, %v410
  %v412 = vadd.f32 %v408, %v411
  %vm413 = vweird.f32 %v407
  %vm414 = vweird.f32 %v408
  %vm415 = vmor %vm413, %vm414
  %v416 = vsel %vm415, %v408, %v412
  %v417 = vand.u32 2147483647, %v407
  %vm418 = vcmp.eq.f32.partialorder %v417, 8.507059e+37
  %v419 = vand.u32 %v407, 2147483648
  %v420 = vor.u32 1.1754944e-38, %v419
  %v421 = vsel %vm418, %v420, %v416
  %v422 = vmul.f32 1.0, %v421
  %v423 = vtanh.pop %v403
  %v424 = vmul.f32 %v422, %v288
  %426 = vrot.lane.b32.xlu0 %v423, 64
  %v427 = vpop.permute.xlu0 %426
  %v429 = vmul.f32 %v422, %v427
  %431 = vrot.lane.b32.xlu0 %v429, 32
  %v432 = vpop.permute.xlu0 %431
  %v434 = vadd.f32 %v424, %v432
  %v435 = vtanh.pop %v434
  %437 = vrot.lane.b32.xlu0 %v435, 64
  %v438 = vpop.permute.xlu0 %437
  %v440 = vmul.f32 %v422, %v438
  %441 = vmatpush.msra.mxu0 0.0
  %442 = vmatpush.msra.mxu0 0.0
  %443 = vmatpush.msra.mxu0 0.0
  %444 = vmatpush.msra.mxu0 0.0
  %445 = vmatpush.msra.mxu0 0.0
  %446 = vmatpush.msra.mxu0 0.0
  %447 = vmatpush.msra.mxu0 0.0
  %448 = vmatpush.msra.mxu0 0.0
  %449 = vmatpush.msra.mxu0 0.0
  %450 = vmatpush.msra.mxu0 0.0
  %451 = vmatpush.msra.mxu0 0.0
  %452 = vmatpush.msra.mxu0 0.0
  %453 = vmatpush.msra.mxu0 %v138
  %454 = vmatpush.msra.mxu0 %v137
  %455 = vmatpush.msra.mxu0 %v136
  %456 = vmatpush.msra.mxu0 %v135
  %457 = vmatmul.f32.gmra.mxu0 %v381
  %v458 = vpop.f32.mrf.mxu0
  %v459 = vadd.f32 0.0, %v458
  %460 = vdwg.mxu0
  %v461 = vadd.f32 %v118, %v459
  %v462 = vxor.u32 %v461, 2147483648
  %v463 = vmul.f32 %v462, 1.442695
  %v464 = vpow.pop %v463
  %v465 = vadd.f32 %v464, 1.0
  %v466 = vrcp.pop %v465
  %v467 = vmul.f32 %v465, %v466
  %v468 = vsub.f32 1.0, %v467
  %v469 = vmul.f32 %v466, %v468
  %v470 = vadd.f32 %v466, %v469
  %vm471 = vweird.f32 %v465
  %vm472 = vweird.f32 %v466
  %vm473 = vmor %vm471, %vm472
  %v474 = vsel %vm473, %v466, %v470
  %v475 = vand.u32 2147483647, %v465
  %vm476 = vcmp.eq.f32.partialorder %v475, 8.507059e+37
  %v477 = vand.u32 %v465, 2147483648
  %v478 = vor.u32 1.1754944e-38, %v477
  %v479 = vsel %vm476, %v478, %v474
  %v480 = vmul.f32 1.0, %v479
  %v481 = vtanh.pop %v461
  %v482 = vmul.f32 %v480, %v346
  %484 = vrot.lane.b32.xlu0 %v481, 64
  %v485 = vpop.permute.xlu0 %484
  %v487 = vmul.f32 %v480, %v485
  %489 = vrot.lane.b32.xlu0 %v487, 32
  %v490 = vpop.permute.xlu0 %489
  %v492 = vadd.f32 %v482, %v490
  %v493 = vtanh.pop %v492
  %495 = vrot.lane.b32.xlu0 %v493, 64
  %v496 = vpop.permute.xlu0 %495
  %v498 = vmul.f32 %v480, %v496
  %500 = vrot.lane.b32.xlu0 %v440, 32
  %v501 = vpop.permute.xlu0 %500
  %v502 = vsel %vm69, %v501, 0
  %504 = vmatpush.msra.mxu0 0.0
  %505 = vmatpush.msra.mxu0 0.0
  %506 = vmatpush.msra.mxu0 0.0
  %507 = vmatpush.msra.mxu0 0.0
  %508 = vmatpush.msra.mxu0 0.0
  %509 = vmatpush.msra.mxu0 0.0
  %510 = vmatpush.msra.mxu0 0.0
  %511 = vmatpush.msra.mxu0 0.0
  %512 = vmatpush.msra.mxu0 0.0
  %513 = vmatpush.msra.mxu0 0.0
  %514 = vmatpush.msra.mxu0 0.0
  %515 = vmatpush.msra.mxu0 0.0
  %516 = vmatpush.msra.mxu0 %v146
  %517 = vmatpush.msra.mxu0 %v145
  %518 = vmatpush.msra.mxu0 %v144
  %519 = vmatpush.msra.mxu0 %v143
  %520 = vmatmul.f32.gmra.mxu0 %v502
  %v521 = vpop.f32.mrf.mxu0
  %v522 = vadd.f32 0.0, %v521
  %523 = vdwg.mxu0
  %525 = vrot.lane.b32.xlu0 %v498, 32
  %v526 = vpop.permute.xlu0 %525
  %v527 = vsel %vm69, %v526, 0
  %529 = vmatpush.msra.mxu0 0.0
  %530 = vmatpush.msra.mxu0 0.0
  %531 = vmatpush.msra.mxu0 0.0
  %532 = vmatpush.msra.mxu0 0.0
  %533 = vmatpush.msra.mxu0 0.0
  %534 = vmatpush.msra.mxu0 0.0
  %535 = vmatpush.msra.mxu0 0.0
  %536 = vmatpush.msra.mxu0 0.0
  %537 = vmatpush.msra.mxu0 0.0
  %538 = vmatpush.msra.mxu0 0.0
  %539 = vmatpush.msra.mxu0 0.0
  %540 = vmatpush.msra.mxu0 0.0
  %541 = vmatpush.msra.mxu0 %v142
  %542 = vmatpush.msra.mxu0 %v141
  %543 = vmatpush.msra.mxu0 %v140
  %544 = vmatpush.msra.mxu0 %v139
  %545 = vmatmul.f32.gmra.mxu0 %v527
  %v546 = vpop.f32.mrf.mxu0
  %v547 = vadd.f32 %v522, %v546
  %548 = vdwg.mxu0
  %v549 = vadd.f32 %v547, %v255
  %v550 = vxor.u32 %v549, 2147483648
  %v551 = vmul.f32 %v550, 1.442695
  %v552 = vpow.pop %v551
  %v553 = vadd.f32 %v552, 1.0
  %v554 = vrcp.pop %v553
  %v555 = vmul.f32 %v553, %v554
  %v556 = vsub.f32 1.0, %v555
  %v557 = vmul.f32 %v554, %v556
  %v558 = vadd.f32 %v554, %v557
  %vm559 = vweird.f32 %v553
  %vm560 = vweird.f32 %v554
  %vm561 = vmor %vm559, %vm560
  %v562 = vsel %vm561, %v554, %v558
  %v563 = vand.u32 2147483647, %v553
  %vm564 = vcmp.eq.f32.partialorder %v563, 8.507059e+37
  %v565 = vand.u32 %v553, 2147483648
  %v566 = vor.u32 1.1754944e-38, %v565
  %v567 = vsel %vm564, %v566, %v562
  %v568 = vmul.f32 1.0, %v567
  %v569 = vtanh.pop %v549
  %v570 = vmul.f32 %v568, %v434
  %572 = vrot.lane.b32.xlu0 %v569, 64
  %v573 = vpop.permute.xlu0 %572
  %v575 = vmul.f32 %v568, %v573
  %577 = vrot.lane.b32.xlu0 %v575, 32
  %v578 = vpop.permute.xlu0 %577
  %v580 = vadd.f32 %v570, %v578
  %v581 = vtanh.pop %v580
  %583 = vrot.lane.b32.xlu0 %v581, 64
  %v584 = vpop.permute.xlu0 %583
  %v586 = vmul.f32 %v568, %v584
  %587 = vmatpush.msra.mxu0 0.0
  %588 = vmatpush.msra.mxu0 0.0
  %589 = vmatpush.msra.mxu0 0.0
  %590 = vmatpush.msra.mxu0 0.0
  %591 = vmatpush.msra.mxu0 0.0
  %592 = vmatpush.msra.mxu0 0.0
  %593 = vmatpush.msra.mxu0 0.0
  %594 = vmatpush.msra.mxu0 0.0
  %595 = vmatpush.msra.mxu0 0.0
  %596 = vmatpush.msra.mxu0 0.0
  %597 = vmatpush.msra.mxu0 0.0
  %598 = vmatpush.msra.mxu0 0.0
  %599 = vmatpush.msra.mxu0 %v138
  %600 = vmatpush.msra.mxu0 %v137
  %601 = vmatpush.msra.mxu0 %v136
  %602 = vmatpush.msra.mxu0 %v135
  %603 = vmatmul.f32.gmra.mxu0 %v527
  %v604 = vpop.f32.mrf.mxu0
  %v605 = vadd.f32 0.0, %v604
  %606 = vdwg.mxu0
  %v607 = vadd.f32 %v121, %v605
  %v608 = vxor.u32 %v607, 2147483648
  %v609 = vmul.f32 %v608, 1.442695
  %v610 = vpow.pop %v609
  %v611 = vadd.f32 %v610, 1.0
  %v612 = vrcp.pop %v611
  %v613 = vmul.f32 %v611, %v612
  %v614 = vsub.f32 1.0, %v613
  %v615 = vmul.f32 %v612, %v614
  %v616 = vadd.f32 %v612, %v615
  %vm617 = vweird.f32 %v611
  %vm618 = vweird.f32 %v612
  %vm619 = vmor %vm617, %vm618
  %v620 = vsel %vm619, %v612, %v616
  %v621 = vand.u32 2147483647, %v611
  %vm622 = vcmp.eq.f32.partialorder %v621, 8.507059e+37
  %v623 = vand.u32 %v611, 2147483648
  %v624 = vor.u32 1.1754944e-38, %v623
  %v625 = vsel %vm622, %v624, %v620
  %v626 = vmul.f32 1.0, %v625
  %v627 = vtanh.pop %v607
  %v628 = vmul.f32 %v626, %v492
  %630 = vrot.lane.b32.xlu0 %v627, 64
  %v631 = vpop.permute.xlu0 %630
  %v633 = vmul.f32 %v626, %v631
  %635 = vrot.lane.b32.xlu0 %v633, 32
  %v636 = vpop.permute.xlu0 %635
  %v638 = vadd.f32 %v628, %v636
  %v639 = vtanh.pop %v638
  %641 = vrot.lane.b32.xlu0 %v639, 64
  %v642 = vpop.permute.xlu0 %641
  %v644 = vmul.f32 %v626, %v642
  %646 = vrot.lane.b32.xlu0 %v586, 32
  %v647 = vpop.permute.xlu0 %646
  %v648 = vsel %vm69, %v647, 0
  %650 = vmatpush.msra.mxu0 0.0
  %651 = vmatpush.msra.mxu0 0.0
  %652 = vmatpush.msra.mxu0 0.0
  %653 = vmatpush.msra.mxu0 0.0
  %654 = vmatpush.msra.mxu0 0.0
  %655 = vmatpush.msra.mxu0 0.0
  %656 = vmatpush.msra.mxu0 0.0
  %657 = vmatpush.msra.mxu0 0.0
  %658 = vmatpush.msra.mxu0 0.0
  %659 = vmatpush.msra.mxu0 0.0
  %660 = vmatpush.msra.mxu0 0.0
  %661 = vmatpush.msra.mxu0 0.0
  %662 = vmatpush.msra.mxu0 %v146
  %663 = vmatpush.msra.mxu0 %v145
  %664 = vmatpush.msra.mxu0 %v144
  %665 = vmatpush.msra.mxu0 %v143
  %666 = vmatmul.f32.gmra.mxu0 %v648
  %v667 = vpop.f32.mrf.mxu0
  %v668 = vadd.f32 0.0, %v667
  %669 = vdwg.mxu0
  %671 = vrot.lane.b32.xlu0 %v644, 32
  %v672 = vpop.permute.xlu0 %671
  %v673 = vsel %vm69, %v672, 0
  %675 = vmatpush.msra.mxu0 0.0
  %676 = vmatpush.msra.mxu0 0.0
  %677 = vmatpush.msra.mxu0 0.0
  %678 = vmatpush.msra.mxu0 0.0
  %679 = vmatpush.msra.mxu0 0.0
  %680 = vmatpush.msra.mxu0 0.0
  %681 = vmatpush.msra.mxu0 0.0
  %682 = vmatpush.msra.mxu0 0.0
  %683 = vmatpush.msra.mxu0 0.0
  %684 = vmatpush.msra.mxu0 0.0
  %685 = vmatpush.msra.mxu0 0.0
  %686 = vmatpush.msra.mxu0 0.0
  %687 = vmatpush.msra.mxu0 %v142
  %688 = vmatpush.msra.mxu0 %v141
  %689 = vmatpush.msra.mxu0 %v140
  %690 = vmatpush.msra.mxu0 %v139
  %691 = vmatmul.f32.gmra.mxu0 %v673
  %v692 = vpop.f32.mrf.mxu0
  %v693 = vadd.f32 %v668, %v692
  %694 = vdwg.mxu0
  %v695 = vadd.f32 %v693, %v255
  %v696 = vxor.u32 %v695, 2147483648
  %v697 = vmul.f32 %v696, 1.442695
  %v698 = vpow.pop %v697
  %v699 = vadd.f32 %v698, 1.0
  %v700 = vrcp.pop %v699
  %v701 = vmul.f32 %v699, %v700
  %v702 = vsub.f32 1.0, %v701
  %v703 = vmul.f32 %v700, %v702
  %v704 = vadd.f32 %v700, %v703
  %vm705 = vweird.f32 %v699
  %vm706 = vweird.f32 %v700
  %vm707 = vmor %vm705, %vm706
  %v708 = vsel %vm707, %v700, %v704
  %v709 = vand.u32 2147483647, %v699
  %vm710 = vcmp.eq.f32.partialorder %v709, 8.507059e+37
  %v711 = vand.u32 %v699, 2147483648
  %v712 = vor.u32 1.1754944e-38, %v711
  %v713 = vsel %vm710, %v712, %v708
  %v714 = vmul.f32 1.0, %v713
  %v715 = vtanh.pop %v695
  %v716 = vmul.f32 %v714, %v580
  %718 = vrot.lane.b32.xlu0 %v715, 64
  %v719 = vpop.permute.xlu0 %718
  %v721 = vmul.f32 %v714, %v719
  %723 = vrot.lane.b32.xlu0 %v721, 32
  %v724 = vpop.permute.xlu0 %723
  %v726 = vadd.f32 %v716, %v724
  %v727 = vtanh.pop %v726
  %729 = vrot.lane.b32.xlu0 %v727, 64
  %v730 = vpop.permute.xlu0 %729
  %v732 = vmul.f32 %v714, %v730
  %733 = vmatpush.msra.mxu0 0.0
  %734 = vmatpush.msra.mxu0 0.0
  %735 = vmatpush.msra.mxu0 0.0
  %736 = vmatpush.msra.mxu0 0.0
  %737 = vmatpush.msra.mxu0 0.0
  %738 = vmatpush.msra.mxu0 0.0
  %739 = vmatpush.msra.mxu0 0.0
  %740 = vmatpush.msra.mxu0 0.0
  %741 = vmatpush.msra.mxu0 0.0
  %742 = vmatpush.msra.mxu0 0.0
  %743 = vmatpush.msra.mxu0 0.0
  %744 = vmatpush.msra.mxu0 0.0
  %745 = vmatpush.msra.mxu0 %v138
  %746 = vmatpush.msra.mxu0 %v137
  %747 = vmatpush.msra.mxu0 %v136
  %748 = vmatpush.msra.mxu0 %v135
  %749 = vmatmul.f32.gmra.mxu0 %v673
  %v750 = vpop.f32.mrf.mxu0
  %v751 = vadd.f32 0.0, %v750
  %752 = vdwg.mxu0
  %v753 = vadd.f32 %v124, %v751
  %v754 = vxor.u32 %v753, 2147483648
  %v755 = vmul.f32 %v754, 1.442695
  %v756 = vpow.pop %v755
  %v757 = vadd.f32 %v756, 1.0
  %v758 = vrcp.pop %v757
  %v759 = vmul.f32 %v757, %v758
  %v760 = vsub.f32 1.0, %v759
  %v761 = vmul.f32 %v758, %v760
  %v762 = vadd.f32 %v758, %v761
  %vm763 = vweird.f32 %v757
  %vm764 = vweird.f32 %v758
  %vm765 = vmor %vm763, %vm764
  %v766 = vsel %vm765, %v758, %v762
  %v767 = vand.u32 2147483647, %v757
  %vm768 = vcmp.eq.f32.partialorder %v767, 8.507059e+37
  %v769 = vand.u32 %v757, 2147483648
  %v770 = vor.u32 1.1754944e-38, %v769
  %v771 = vsel %vm768, %v770, %v766
  %v772 = vmul.f32 1.0, %v771
  %v773 = vtanh.pop %v753
  %v774 = vmul.f32 %v772, %v638
  %776 = vrot.lane.b32.xlu0 %v773, 64
  %v777 = vpop.permute.xlu0 %776
  %v779 = vmul.f32 %v772, %v777
  %781 = vrot.lane.b32.xlu0 %v779, 32
  %v782 = vpop.permute.xlu0 %781
  %v784 = vadd.f32 %v774, %v782
  %v785 = vtanh.pop %v784
  %787 = vrot.lane.b32.xlu0 %v785, 64
  %v788 = vpop.permute.xlu0 %787
  %v790 = vmul.f32 %v772, %v788
  %792 = vrot.lane.b32.xlu0 %v732, 32
  %v793 = vpop.permute.xlu0 %792
  %v794 = vsel %vm69, %v793, 0
  %796 = vmatpush.msra.mxu0 0.0
  %797 = vmatpush.msra.mxu0 0.0
  %798 = vmatpush.msra.mxu0 0.0
  %799 = vmatpush.msra.mxu0 0.0
  %800 = vmatpush.msra.mxu0 0.0
  %801 = vmatpush.msra.mxu0 0.0
  %802 = vmatpush.msra.mxu0 0.0
  %803 = vmatpush.msra.mxu0 0.0
  %804 = vmatpush.msra.mxu0 0.0
  %805 = vmatpush.msra.mxu0 0.0
  %806 = vmatpush.msra.mxu0 0.0
  %807 = vmatpush.msra.mxu0 0.0
  %808 = vmatpush.msra.mxu0 %v146
  %809 = vmatpush.msra.mxu0 %v145
  %810 = vmatpush.msra.mxu0 %v144
  %811 = vmatpush.msra.mxu0 %v143
  %812 = vmatmul.f32.gmra.mxu0 %v794
  %v813 = vpop.f32.mrf.mxu0
  %v814 = vadd.f32 0.0, %v813
  %815 = vdwg.mxu0
  %817 = vrot.lane.b32.xlu0 %v790, 32
  %v818 = vpop.permute.xlu0 %817
  %v819 = vsel %vm69, %v818, 0
  %821 = vmatpush.msra.mxu0 0.0
  %822 = vmatpush.msra.mxu0 0.0
  %823 = vmatpush.msra.mxu0 0.0
  %824 = vmatpush.msra.mxu0 0.0
  %825 = vmatpush.msra.mxu0 0.0
  %826 = vmatpush.msra.mxu0 0.0
  %827 = vmatpush.msra.mxu0 0.0
  %828 = vmatpush.msra.mxu0 0.0
  %829 = vmatpush.msra.mxu0 0.0
  %830 = vmatpush.msra.mxu0 0.0
  %831 = vmatpush.msra.mxu0 0.0
  %832 = vmatpush.msra.mxu0 0.0
  %833 = vmatpush.msra.mxu0 %v142
  %834 = vmatpush.msra.mxu0 %v141
  %835 = vmatpush.msra.mxu0 %v140
  %836 = vmatpush.msra.mxu0 %v139
  %837 = vmatmul.f32.gmra.mxu0 %v819
  %v838 = vpop.f32.mrf.mxu0
  %v839 = vadd.f32 %v814, %v838
  %840 = vdwg.mxu0
  %v841 = vadd.f32 %v839, %v255
  %v842 = vxor.u32 %v841, 2147483648
  %v843 = vmul.f32 %v842, 1.442695
  %v844 = vpow.pop %v843
  %v845 = vadd.f32 %v844, 1.0
  %v846 = vrcp.pop %v845
  %v847 = vmul.f32 %v845, %v846
  %v848 = vsub.f32 1.0, %v847
  %v849 = vmul.f32 %v846, %v848
  %v850 = vadd.f32 %v846, %v849
  %vm851 = vweird.f32 %v845
  %vm852 = vweird.f32 %v846
  %vm853 = vmor %vm851, %vm852
  %v854 = vsel %vm853, %v846, %v850
  %v855 = vand.u32 2147483647, %v845
  %vm856 = vcmp.eq.f32.partialorder %v855, 8.507059e+37
  %v857 = vand.u32 %v845, 2147483648
  %v858 = vor.u32 1.1754944e-38, %v857
  %v859 = vsel %vm856, %v858, %v854
  %v860 = vmul.f32 1.0, %v859
  %v861 = vtanh.pop %v841
  %v862 = vmul.f32 %v860, %v726
  %864 = vrot.lane.b32.xlu0 %v861, 64
  %v865 = vpop.permute.xlu0 %864
  %v867 = vmul.f32 %v860, %v865
  %869 = vrot.lane.b32.xlu0 %v867, 32
  %v870 = vpop.permute.xlu0 %869
  %v872 = vadd.f32 %v862, %v870
  %v873 = vtanh.pop %v872
  %875 = vrot.lane.b32.xlu0 %v873, 64
  %v876 = vpop.permute.xlu0 %875
  %v878 = vmul.f32 %v860, %v876
  %879 = vmatpush.msra.mxu0 0.0
  %880 = vmatpush.msra.mxu0 0.0
  %881 = vmatpush.msra.mxu0 0.0
  %882 = vmatpush.msra.mxu0 0.0
  %883 = vmatpush.msra.mxu0 0.0
  %884 = vmatpush.msra.mxu0 0.0
  %885 = vmatpush.msra.mxu0 0.0
  %886 = vmatpush.msra.mxu0 0.0
  %887 = vmatpush.msra.mxu0 0.0
  %888 = vmatpush.msra.mxu0 0.0
  %889 = vmatpush.msra.mxu0 0.0
  %890 = vmatpush.msra.mxu0 0.0
  %891 = vmatpush.msra.mxu0 %v138
  %892 = vmatpush.msra.mxu0 %v137
  %893 = vmatpush.msra.mxu0 %v136
  %894 = vmatpush.msra.mxu0 %v135
  %895 = vmatmul.f32.gmra.mxu0 %v819
  %v896 = vpop.f32.mrf.mxu0
  %v897 = vadd.f32 0.0, %v896
  %898 = vdwg.mxu0
  %v899 = vadd.f32 %v127, %v897
  %v900 = vxor.u32 %v899, 2147483648
  %v901 = vmul.f32 %v900, 1.442695
  %v902 = vpow.pop %v901
  %v903 = vadd.f32 %v902, 1.0
  %v904 = vrcp.pop %v903
  %v905 = vmul.f32 %v903, %v904
  %v906 = vsub.f32 1.0, %v905
  %v907 = vmul.f32 %v904, %v906
  %v908 = vadd.f32 %v904, %v907
  %vm909 = vweird.f32 %v903
  %vm910 = vweird.f32 %v904
  %vm911 = vmor %vm909, %vm910
  %v912 = vsel %vm911, %v904, %v908
  %v913 = vand.u32 2147483647, %v903
  %vm914 = vcmp.eq.f32.partialorder %v913, 8.507059e+37
  %v915 = vand.u32 %v903, 2147483648
  %v916 = vor.u32 1.1754944e-38, %v915
  %v917 = vsel %vm914, %v916, %v912
  %v918 = vmul.f32 1.0, %v917
  %v919 = vtanh.pop %v899
  %v920 = vmul.f32 %v918, %v784
  %922 = vrot.lane.b32.xlu0 %v919, 64
  %v923 = vpop.permute.xlu0 %922
  %v925 = vmul.f32 %v918, %v923
  %927 = vrot.lane.b32.xlu0 %v925, 32
  %v928 = vpop.permute.xlu0 %927
  %v930 = vadd.f32 %v920, %v928
  %v931 = vtanh.pop %v930
  %933 = vrot.lane.b32.xlu0 %v931, 64
  %v934 = vpop.permute.xlu0 %933
  %v936 = vmul.f32 %v918, %v934
  %938 = vrot.lane.b32.xlu0 %v878, 32
  %v939 = vpop.permute.xlu0 %938
  %v940 = vsel %vm69, %v939, 0
  %942 = vmatpush.msra.mxu0 0.0
  %943 = vmatpush.msra.mxu0 0.0
  %944 = vmatpush.msra.mxu0 0.0
  %945 = vmatpush.msra.mxu0 0.0
  %946 = vmatpush.msra.mxu0 0.0
  %947 = vmatpush.msra.mxu0 0.0
  %948 = vmatpush.msra.mxu0 0.0
  %949 = vmatpush.msra.mxu0 0.0
  %950 = vmatpush.msra.mxu0 0.0
  %951 = vmatpush.msra.mxu0 0.0
  %952 = vmatpush.msra.mxu0 0.0
  %953 = vmatpush.msra.mxu0 0.0
  %954 = vmatpush.msra.mxu0 %v146
  %955 = vmatpush.msra.mxu0 %v145
  %956 = vmatpush.msra.mxu0 %v144
  %957 = vmatpush.msra.mxu0 %v143
  %958 = vmatmul.f32.gmra.mxu0 %v940
  %v959 = vpop.f32.mrf.mxu0
  %v960 = vadd.f32 0.0, %v959
  %961 = vdwg.mxu0
  %963 = vrot.lane.b32.xlu0 %v936, 32
  %v964 = vpop.permute.xlu0 %963
  %v965 = vsel %vm69, %v964, 0
  %967 = vmatpush.msra.mxu0 0.0
  %968 = vmatpush.msra.mxu0 0.0
  %969 = vmatpush.msra.mxu0 0.0
  %970 = vmatpush.msra.mxu0 0.0
  %971 = vmatpush.msra.mxu0 0.0
  %972 = vmatpush.msra.mxu0 0.0
  %973 = vmatpush.msra.mxu0 0.0
  %974 = vmatpush.msra.mxu0 0.0
  %975 = vmatpush.msra.mxu0 0.0
  %976 = vmatpush.msra.mxu0 0.0
  %977 = vmatpush.msra.mxu0 0.0
  %978 = vmatpush.msra.mxu0 0.0
  %979 = vmatpush.msra.mxu0 %v142
  %980 = vmatpush.msra.mxu0 %v141
  %981 = vmatpush.msra.mxu0 %v140
  %982 = vmatpush.msra.mxu0 %v139
  %983 = vmatmul.f32.gmra.mxu0 %v965
  %v984 = vpop.f32.mrf.mxu0
  %v985 = vadd.f32 %v960, %v984
  %986 = vdwg.mxu0
  %v987 = vadd.f32 %v985, %v255
  %v988 = vxor.u32 %v987, 2147483648
  %v989 = vmul.f32 %v988, 1.442695
  %v990 = vpow.pop %v989
  %v991 = vadd.f32 %v990, 1.0
  %v992 = vrcp.pop %v991
  %v993 = vmul.f32 %v991, %v992
  %v994 = vsub.f32 1.0, %v993
  %v995 = vmul.f32 %v992, %v994
  %v996 = vadd.f32 %v992, %v995
  %vm997 = vweird.f32 %v991
  %vm998 = vweird.f32 %v992
  %vm999 = vmor %vm997, %vm998
  %v1000 = vsel %vm999, %v992, %v996
  %v1001 = vand.u32 2147483647, %v991
  %vm1002 = vcmp.eq.f32.partialorder %v1001, 8.507059e+37
  %v1003 = vand.u32 %v991, 2147483648
  %v1004 = vor.u32 1.1754944e-38, %v1003
  %v1005 = vsel %vm1002, %v1004, %v1000
  %v1006 = vmul.f32 1.0, %v1005
  %v1007 = vtanh.pop %v987
  %v1008 = vmul.f32 %v1006, %v872
  %1010 = vrot.lane.b32.xlu0 %v1007, 64
  %v1011 = vpop.permute.xlu0 %1010
  %v1013 = vmul.f32 %v1006, %v1011
  %1015 = vrot.lane.b32.xlu0 %v1013, 32
  %v1016 = vpop.permute.xlu0 %1015
  %v1018 = vadd.f32 %v1008, %v1016
  %v1019 = vtanh.pop %v1018
  %1021 = vrot.lane.b32.xlu0 %v1019, 64
  %v1022 = vpop.permute.xlu0 %1021
  %v1024 = vmul.f32 %v1006, %v1022
  %1025 = vmatpush.msra.mxu0 0.0
  %1026 = vmatpush.msra.mxu0 0.0
  %1027 = vmatpush.msra.mxu0 0.0
  %1028 = vmatpush.msra.mxu0 0.0
  %1029 = vmatpush.msra.mxu0 0.0
  %1030 = vmatpush.msra.mxu0 0.0
  %1031 = vmatpush.msra.mxu0 0.0
  %1032 = vmatpush.msra.mxu0 0.0
  %1033 = vmatpush.msra.mxu0 0.0
  %1034 = vmatpush.msra.mxu0 0.0
  %1035 = vmatpush.msra.mxu0 0.0
  %1036 = vmatpush.msra.mxu0 0.0
  %1037 = vmatpush.msra.mxu0 %v138
  %1038 = vmatpush.msra.mxu0 %v137
  %1039 = vmatpush.msra.mxu0 %v136
  %1040 = vmatpush.msra.mxu0 %v135
  %1041 = vmatmul.f32.gmra.mxu0 %v965
  %v1042 = vpop.f32.mrf.mxu0
  %v1043 = vadd.f32 0.0, %v1042
  %1044 = vdwg.mxu0
  %v1045 = vadd.f32 %v130, %v1043
  %v1046 = vxor.u32 %v1045, 2147483648
  %v1047 = vmul.f32 %v1046, 1.442695
  %v1048 = vpow.pop %v1047
  %v1049 = vadd.f32 %v1048, 1.0
  %v1050 = vrcp.pop %v1049
  %v1051 = vmul.f32 %v1049, %v1050
  %v1052 = vsub.f32 1.0, %v1051
  %v1053 = vmul.f32 %v1050, %v1052
  %v1054 = vadd.f32 %v1050, %v1053
  %vm1055 = vweird.f32 %v1049
  %vm1056 = vweird.f32 %v1050
  %vm1057 = vmor %vm1055, %vm1056
  %v1058 = vsel %vm1057, %v1050, %v1054
  %v1059 = vand.u32 2147483647, %v1049
  %vm1060 = vcmp.eq.f32.partialorder %v1059, 8.507059e+37
  %v1061 = vand.u32 %v1049, 2147483648
  %v1062 = vor.u32 1.1754944e-38, %v1061
  %v1063 = vsel %vm1060, %v1062, %v1058
  %v1064 = vmul.f32 1.0, %v1063
  %v1065 = vtanh.pop %v1045
  %v1066 = vmul.f32 %v1064, %v930
  %1068 = vrot.lane.b32.xlu0 %v1065, 64
  %v1069 = vpop.permute.xlu0 %1068
  %v1071 = vmul.f32 %v1064, %v1069
  %1073 = vrot.lane.b32.xlu0 %v1071, 32
  %v1074 = vpop.permute.xlu0 %1073
  %v1076 = vadd.f32 %v1066, %v1074
  %v1077 = vtanh.pop %v1076
  %1079 = vrot.lane.b32.xlu0 %v1077, 64
  %v1080 = vpop.permute.xlu0 %1079
  %v1082 = vmul.f32 %v1064, %v1080
  %1084 = vrot.lane.b32.xlu0 %v1024, 32
  %v1085 = vpop.permute.xlu0 %1084
  %v1086 = vsel %vm69, %v1085, 0
  %1088 = vmatpush.msra.mxu0 0.0
  %1089 = vmatpush.msra.mxu0 0.0
  %1090 = vmatpush.msra.mxu0 0.0
  %1091 = vmatpush.msra.mxu0 0.0
  %1092 = vmatpush.msra.mxu0 0.0
  %1093 = vmatpush.msra.mxu0 0.0
  %1094 = vmatpush.msra.mxu0 0.0
  %1095 = vmatpush.msra.mxu0 0.0
  %1096 = vmatpush.msra.mxu0 0.0
  %1097 = vmatpush.msra.mxu0 0.0
  %1098 = vmatpush.msra.mxu0 0.0
  %1099 = vmatpush.msra.mxu0 0.0
  %1100 = vmatpush.msra.mxu0 %v146
  %1101 = vmatpush.msra.mxu0 %v145
  %1102 = vmatpush.msra.mxu0 %v144
  %1103 = vmatpush.msra.mxu0 %v143
  %1104 = vmatmul.f32.gmra.mxu0 %v1086
  %v1105 = vpop.f32.mrf.mxu0
  %v1106 = vadd.f32 0.0, %v1105
  %1107 = vdwg.mxu0
  %1109 = vrot.lane.b32.xlu0 %v1082, 32
  %v1110 = vpop.permute.xlu0 %1109
  %v1111 = vsel %vm69, %v1110, 0
  %1113 = vmatpush.msra.mxu0 0.0
  %1114 = vmatpush.msra.mxu0 0.0
  %1115 = vmatpush.msra.mxu0 0.0
  %1116 = vmatpush.msra.mxu0 0.0
  %1117 = vmatpush.msra.mxu0 0.0
  %1118 = vmatpush.msra.mxu0 0.0
  %1119 = vmatpush.msra.mxu0 0.0
  %1120 = vmatpush.msra.mxu0 0.0
  %1121 = vmatpush.msra.mxu0 0.0
  %1122 = vmatpush.msra.mxu0 0.0
  %1123 = vmatpush.msra.mxu0 0.0
  %1124 = vmatpush.msra.mxu0 0.0
  %1125 = vmatpush.msra.mxu0 %v142
  %1126 = vmatpush.msra.mxu0 %v141
  %1127 = vmatpush.msra.mxu0 %v140
  %1128 = vmatpush.msra.mxu0 %v139
  %1129 = vmatmul.f32.gmra.mxu0 %v1111
  %v1130 = vpop.f32.mrf.mxu0
  %v1131 = vadd.f32 %v1106, %v1130
  %1132 = vdwg.mxu0
  %v1133 = vadd.f32 %v1131, %v255
  %v1134 = vxor.u32 %v1133, 2147483648
  %v1135 = vmul.f32 %v1134, 1.442695
  %v1136 = vpow.pop %v1135
  %v1137 = vadd.f32 %v1136, 1.0
  %v1138 = vrcp.pop %v1137
  %v1139 = vmul.f32 %v1137, %v1138
  %v1140 = vsub.f32 1.0, %v1139
  %v1141 = vmul.f32 %v1138, %v1140
  %v1142 = vadd.f32 %v1138, %v1141
  %vm1143 = vweird.f32 %v1137
  %vm1144 = vweird.f32 %v1138
  %vm1145 = vmor %vm1143, %vm1144
  %v1146 = vsel %vm1145, %v1138, %v1142
  %v1147 = vand.u32 2147483647, %v1137
  %vm1148 = vcmp.eq.f32.partialorder %v1147, 8.507059e+37
  %v1149 = vand.u32 %v1137, 2147483648
  %v1150 = vor.u32 1.1754944e-38, %v1149
  %v1151 = vsel %vm1148, %v1150, %v1146
  %v1152 = vmul.f32 1.0, %v1151
  %v1153 = vtanh.pop %v1133
  %v1154 = vmul.f32 %v1152, %v1018
  %1156 = vrot.lane.b32.xlu0 %v1153, 64
  %v1157 = vpop.permute.xlu0 %1156
  %v1159 = vmul.f32 %v1152, %v1157
  %1161 = vrot.lane.b32.xlu0 %v1159, 32
  %v1162 = vpop.permute.xlu0 %1161
  %v1164 = vadd.f32 %v1154, %v1162
  %v1165 = vtanh.pop %v1164
  %1167 = vrot.lane.b32.xlu0 %v1165, 64
  %v1168 = vpop.permute.xlu0 %1167
  %v1170 = vmul.f32 %v1152, %v1168
  %1171 = vmatpush.msra.mxu0 0.0
  %1172 = vmatpush.msra.mxu0 0.0
  %1173 = vmatpush.msra.mxu0 0.0
  %1174 = vmatpush.msra.mxu0 0.0
  %1175 = vmatpush.msra.mxu0 0.0
  %1176 = vmatpush.msra.mxu0 0.0
  %1177 = vmatpush.msra.mxu0 0.0
  %1178 = vmatpush.msra.mxu0 0.0
  %1179 = vmatpush.msra.mxu0 0.0
  %1180 = vmatpush.msra.mxu0 0.0
  %1181 = vmatpush.msra.mxu0 0.0
  %1182 = vmatpush.msra.mxu0 0.0
  %1183 = vmatpush.msra.mxu0 %v138
  %1184 = vmatpush.msra.mxu0 %v137
  %1185 = vmatpush.msra.mxu0 %v136
  %1186 = vmatpush.msra.mxu0 %v135
  %1187 = vmatmul.f32.gmra.mxu0 %v1111
  %v1188 = vpop.f32.mrf.mxu0
  %v1189 = vadd.f32 0.0, %v1188
  %1190 = vdwg.mxu0
  %v1191 = vadd.f32 %v133, %v1189
  %v1192 = vxor.u32 %v1191, 2147483648
  %v1193 = vmul.f32 %v1192, 1.442695
  %v1194 = vpow.pop %v1193
  %v1195 = vadd.f32 %v1194, 1.0
  %v1196 = vrcp.pop %v1195
  %v1197 = vmul.f32 %v1195, %v1196
  %v1198 = vsub.f32 1.0, %v1197
  %v1199 = vmul.f32 %v1196, %v1198
  %v1200 = vadd.f32 %v1196, %v1199
  %vm1201 = vweird.f32 %v1195
  %vm1202 = vweird.f32 %v1196
  %vm1203 = vmor %vm1201, %vm1202
  %v1204 = vsel %vm1203, %v1196, %v1200
  %v1205 = vand.u32 2147483647, %v1195
  %vm1206 = vcmp.eq.f32.partialorder %v1205, 8.507059e+37
  %v1207 = vand.u32 %v1195, 2147483648
  %v1208 = vor.u32 1.1754944e-38, %v1207
  %v1209 = vsel %vm1206, %v1208, %v1204
  %v1210 = vmul.f32 1.0, %v1209
  %v1211 = vtanh.pop %v1191
  %v1212 = vmul.f32 %v1210, %v1076
  %1214 = vrot.lane.b32.xlu0 %v1211, 64
  %v1215 = vpop.permute.xlu0 %1214
  %v1217 = vmul.f32 %v1210, %v1215
  %1219 = vrot.lane.b32.xlu0 %v1217, 32
  %v1220 = vpop.permute.xlu0 %1219
  %v1222 = vadd.f32 %v1212, %v1220
  %v1223 = vtanh.pop %v1222
  %1225 = vrot.lane.b32.xlu0 %v1223, 64
  %v1226 = vpop.permute.xlu0 %1225
  %v1228 = vmul.f32 %v1210, %v1226
  %1230 = vrot.lane.b32.xlu0 %v1170, 32
  %v1231 = vpop.permute.xlu0 %1230
  %v1232 = vsel %vm69, %v1231, 0
  %1234 = vmatpush.msra.mxu0 0.0
  %1235 = vmatpush.msra.mxu0 0.0
  %1236 = vmatpush.msra.mxu0 0.0
  %1237 = vmatpush.msra.mxu0 0.0
  %1238 = vmatpush.msra.mxu0 0.0
  %1239 = vmatpush.msra.mxu0 0.0
  %1240 = vmatpush.msra.mxu0 0.0
  %1241 = vmatpush.msra.mxu0 0.0
  %1242 = vmatpush.msra.mxu0 0.0
  %1243 = vmatpush.msra.mxu0 0.0
  %1244 = vmatpush.msra.mxu0 0.0
  %1245 = vmatpush.msra.mxu0 0.0
  %1246 = vmatpush.msra.mxu0 %v146
  %1247 = vmatpush.msra.mxu0 %v145
  %1248 = vmatpush.msra.mxu0 %v144
  %1249 = vmatpush.msra.mxu0 %v143
  %1250 = vmatmul.f32.gmra.mxu0 %v1232
  %v1251 = vpop.f32.mrf.mxu0
  %v1252 = vadd.f32 0.0, %v1251
  %1253 = vdwg.mxu0
  %1255 = vrot.lane.b32.xlu0 %v1228, 32
  %v1256 = vpop.permute.xlu0 %1255
  %v1257 = vsel %vm69, %v1256, 0
  %1259 = vmatpush.msra.mxu0 0.0
  %1260 = vmatpush.msra.mxu0 0.0
  %1261 = vmatpush.msra.mxu0 0.0
  %1262 = vmatpush.msra.mxu0 0.0
  %1263 = vmatpush.msra.mxu0 0.0
  %1264 = vmatpush.msra.mxu0 0.0
  %1265 = vmatpush.msra.mxu0 0.0
  %1266 = vmatpush.msra.mxu0 0.0
  %1267 = vmatpush.msra.mxu0 0.0
  %1268 = vmatpush.msra.mxu0 0.0
  %1269 = vmatpush.msra.mxu0 0.0
  %1270 = vmatpush.msra.mxu0 0.0
  %1271 = vmatpush.msra.mxu0 %v142
  %1272 = vmatpush.msra.mxu0 %v141
  %1273 = vmatpush.msra.mxu0 %v140
  %1274 = vmatpush.msra.mxu0 %v139
  %1275 = vmatmul.f32.gmra.mxu0 %v1257
  %v1276 = vpop.f32.mrf.mxu0
  %v1277 = vadd.f32 %v1252, %v1276
  %1278 = vdwg.mxu0
  %v1279 = vadd.f32 %v1277, %v255
  %v1280 = vxor.u32 %v1279, 2147483648
  %v1281 = vmul.f32 %v1280, 1.442695
  %v1282 = vpow.pop %v1281
  %v1283 = vadd.f32 %v1282, 1.0
  %v1284 = vrcp.pop %v1283
  %v1285 = vmul.f32 %v1283, %v1284
  %v1286 = vsub.f32 1.0, %v1285
  %v1287 = vmul.f32 %v1284, %v1286
  %v1288 = vadd.f32 %v1284, %v1287
  %vm1289 = vweird.f32 %v1283
  %vm1290 = vweird.f32 %v1284
  %vm1291 = vmor %vm1289, %vm1290
  %v1292 = vsel %vm1291, %v1284, %v1288
  %v1293 = vand.u32 2147483647, %v1283
  %vm1294 = vcmp.eq.f32.partialorder %v1293, 8.507059e+37
  %v1295 = vand.u32 %v1283, 2147483648
  %v1296 = vor.u32 1.1754944e-38, %v1295
  %v1297 = vsel %vm1294, %v1296, %v1292
  %v1298 = vmul.f32 1.0, %v1297
  %v1299 = vtanh.pop %v1279
  %v1300 = vmul.f32 %v1298, %v1164
  %1302 = vrot.lane.b32.xlu0 %v1299, 64
  %v1303 = vpop.permute.xlu0 %1302
  %v1305 = vmul.f32 %v1298, %v1303
  %1307 = vrot.lane.b32.xlu0 %v1305, 32
  %v1308 = vpop.permute.xlu0 %1307
  %v1310 = vadd.f32 %v1300, %v1308
  %v1311 = vtanh.pop %v1310
  %1313 = vrot.lane.b32.xlu0 %v1311, 64
  %v1314 = vpop.permute.xlu0 %1313
  %v1316 = vmul.f32 %v1298, %v1314
  %v1317 = vld [vmem:[%s7] sm:$0xff]
  %v1318 = vld [vmem:[%s7 + $0x8] sm:$0xff]
  %v1319 = vld [vmem:[%s7 + $0x10] sm:$0xff]
  %v1320 = vld [vmem:[%s7 + $0x18] sm:$0xff]
  %v1321 = vld [vmem:[%s8] sm:$0xff]
  %v1322 = vld [vmem:[%s8 + $0x8] sm:$0xff]
  %v1323 = vld [vmem:[%s8 + $0x10] sm:$0xff]
  %v1324 = vld [vmem:[%s8 + $0x18] sm:$0xff]
  %v1325 = vld [vmem:[%s9] sm:$0x1]
  %v1327 = vperm.slane %v1325, 0
  %v1330 = vsel %vm69, %v1317, 0
  %v1333 = vsel %vm69, %v1318, 0
  %v1336 = vsel %vm69, %v1319, 0
  %v1339 = vsel %vm69, %v1320, 0
  %1341 = vmatpush.msra.mxu0 0.0
  %1342 = vmatpush.msra.mxu0 0.0
  %1343 = vmatpush.msra.mxu0 0.0
  %1344 = vmatpush.msra.mxu0 0.0
  %1345 = vmatpush.msra.mxu0 0.0
  %1346 = vmatpush.msra.mxu0 0.0
  %1347 = vmatpush.msra.mxu0 0.0
  %1348 = vmatpush.msra.mxu0 0.0
  %1349 = vmatpush.msra.mxu0 0.0
  %1350 = vmatpush.msra.mxu0 0.0
  %1351 = vmatpush.msra.mxu0 0.0
  %1352 = vmatpush.msra.mxu0 0.0
  %1353 = vmatpush.msra.mxu0 %v1324
  %1354 = vmatpush.msra.mxu0 %v1323
  %1355 = vmatpush.msra.mxu0 %v1322
  %1356 = vmatpush.msra.mxu0 %v1321
  %1357 = vmatmul.f32.gmra.mxu0 %v1330
  %v1358 = vpop.f32.mrf.mxu0
  %v1359 = vadd.f32 %v1327, %v1358
  %1360 = vmatmul.f32.gmra.mxu0 %v1333
  %v1361 = vpop.f32.mrf.mxu0
  %v1362 = vadd.f32 %v1327, %v1361
  %1363 = vmatmul.f32.gmra.mxu0 %v1336
  %v1364 = vpop.f32.mrf.mxu0
  %v1365 = vadd.f32 %v1327, %v1364
  %1366 = vmatmul.f32.gmra.mxu0 %v1339
  %v1367 = vpop.f32.mrf.mxu0
  %v1368 = vadd.f32 %v1327, %v1367
  %1369 = vdwg.mxu0
  %v1370 = vld [vmem:[%s10] sm:$0xff]
  %v1371 = vld [vmem:[%s10 + $0x8] sm:$0xff]
  %v1372 = vld [vmem:[%s10 + $0x10] sm:$0xff]
  %v1373 = vld [vmem:[%s10 + $0x18] sm:$0xff]
  %v1374 = vld [vmem:[%s11] sm:$0xff]
  %v1375 = vld [vmem:[%s11 + $0x8] sm:$0xff]
  %v1376 = vld [vmem:[%s11 + $0x10] sm:$0xff]
  %v1377 = vld [vmem:[%s11 + $0x18] sm:$0xff]
  %v1378 = vld [vmem:[%s12] sm:$0xff]
  %v1379 = vld [vmem:[%s12 + $0x8] sm:$0xff]
  %v1380 = vld [vmem:[%s12 + $0x10] sm:$0xff]
  %v1381 = vld [vmem:[%s12 + $0x18] sm:$0xff]
  %v1382 = vld [vmem:[%s13] sm:$0x1]
  %1383 = vmatpush.msra.mxu0 0.0
  %1384 = vmatpush.msra.mxu0 0.0
  %1385 = vmatpush.msra.mxu0 0.0
  %1386 = vmatpush.msra.mxu0 0.0
  %1387 = vmatpush.msra.mxu0 0.0
  %1388 = vmatpush.msra.mxu0 0.0
  %1389 = vmatpush.msra.mxu0 0.0
  %1390 = vmatpush.msra.mxu0 0.0
  %1391 = vmatpush.msra.mxu0 0.0
  %1392 = vmatpush.msra.mxu0 0.0
  %1393 = vmatpush.msra.mxu0 0.0
  %1394 = vmatpush.msra.mxu0 0.0
  %1395 = vmatpush.msra.mxu0 %v1373
  %1396 = vmatpush.msra.mxu0 %v1372
  %1397 = vmatpush.msra.mxu0 %v1371
  %1398 = vmatpush.msra.mxu0 %v1370
  %1399 = vmatmul.f32.gmra.mxu0 %v1257
  %v1400 = vpop.f32.mrf.mxu0
  %v1401 = vadd.f32 0.0, %v1400
  %1402 = vdwg.mxu0
  %v1403 = vadd.f32 %v1359, %v1401
  %v1404 = vxor.u32 %v1403, 2147483648
  %v1405 = vmul.f32 %v1404, 1.442695
  %v1406 = vpow.pop %v1405
  %v1407 = vadd.f32 %v1406, 1.0
  %v1408 = vrcp.pop %v1407
  %v1409 = vmul.f32 %v1407, %v1408
  %v1410 = vsub.f32 1.0, %v1409
  %v1411 = vmul.f32 %v1408, %v1410
  %v1412 = vadd.f32 %v1408, %v1411
  %vm1413 = vweird.f32 %v1407
  %vm1414 = vweird.f32 %v1408
  %vm1415 = vmor %vm1413, %vm1414
  %v1416 = vsel %vm1415, %v1408, %v1412
  %v1417 = vand.u32 2147483647, %v1407
  %vm1418 = vcmp.eq.f32.partialorder %v1417, 8.507059e+37
  %v1419 = vand.u32 %v1407, 2147483648
  %v1420 = vor.u32 1.1754944e-38, %v1419
  %v1421 = vsel %vm1418, %v1420, %v1416
  %v1422 = vmul.f32 1.0, %v1421
  %v1423 = vtanh.pop %v1403
  %v1424 = vmul.f32 %v1422, %v1222
  %1426 = vrot.lane.b32.xlu0 %v1423, 64
  %v1427 = vpop.permute.xlu0 %1426
  %v1429 = vmul.f32 %v1422, %v1427
  %1431 = vrot.lane.b32.xlu0 %v1429, 32
  %v1432 = vpop.permute.xlu0 %1431
  %v1434 = vadd.f32 %v1424, %v1432
  %v1435 = vtanh.pop %v1434
  %1437 = vrot.lane.b32.xlu0 %v1435, 64
  %v1438 = vpop.permute.xlu0 %1437
  %v1440 = vmul.f32 %v1422, %v1438
  %1442 = vrot.lane.b32.xlu0 %v1316, 32
  %v1443 = vpop.permute.xlu0 %1442
  %v1444 = vsel %vm69, %v1443, 0
  %1446 = vmatpush.msra.mxu0 0.0
  %1447 = vmatpush.msra.mxu0 0.0
  %1448 = vmatpush.msra.mxu0 0.0
  %1449 = vmatpush.msra.mxu0 0.0
  %1450 = vmatpush.msra.mxu0 0.0
  %1451 = vmatpush.msra.mxu0 0.0
  %1452 = vmatpush.msra.mxu0 0.0
  %1453 = vmatpush.msra.mxu0 0.0
  %1454 = vmatpush.msra.mxu0 0.0
  %1455 = vmatpush.msra.mxu0 0.0
  %1456 = vmatpush.msra.mxu0 0.0
  %1457 = vmatpush.msra.mxu0 0.0
  %1458 = vmatpush.msra.mxu0 %v1381
  %1459 = vmatpush.msra.mxu0 %v1380
  %1460 = vmatpush.msra.mxu0 %v1379
  %1461 = vmatpush.msra.mxu0 %v1378
  %1462 = vmatmul.f32.gmra.mxu0 %v1444
  %v1463 = vpop.f32.mrf.mxu0
  %v1464 = vadd.f32 0.0, %v1463
  %1465 = vdwg.mxu0
  %1467 = vrot.lane.b32.xlu0 %v1440, 32
  %v1468 = vpop.permute.xlu0 %1467
  %v1469 = vsel %vm69, %v1468, 0
  %1471 = vmatpush.msra.mxu0 0.0
  %1472 = vmatpush.msra.mxu0 0.0
  %1473 = vmatpush.msra.mxu0 0.0
  %1474 = vmatpush.msra.mxu0 0.0
  %1475 = vmatpush.msra.mxu0 0.0
  %1476 = vmatpush.msra.mxu0 0.0
  %1477 = vmatpush.msra.mxu0 0.0
  %1478 = vmatpush.msra.mxu0 0.0
  %1479 = vmatpush.msra.mxu0 0.0
  %1480 = vmatpush.msra.mxu0 0.0
  %1481 = vmatpush.msra.mxu0 0.0
  %1482 = vmatpush.msra.mxu0 0.0
  %1483 = vmatpush.msra.mxu0 %v1377
  %1484 = vmatpush.msra.mxu0 %v1376
  %1485 = vmatpush.msra.mxu0 %v1375
  %1486 = vmatpush.msra.mxu0 %v1374
  %1487 = vmatmul.f32.gmra.mxu0 %v1469
  %v1488 = vpop.f32.mrf.mxu0
  %v1489 = vadd.f32 %v1464, %v1488
  %1490 = vdwg.mxu0
  %v1492 = vperm.slane %v1382, 0
  %v1494 = vadd.f32 %v1489, %v1492
  %v1495 = vxor.u32 %v1494, 2147483648
  %v1496 = vmul.f32 %v1495, 1.442695
  %v1497 = vpow.pop %v1496
  %v1498 = vadd.f32 %v1497, 1.0
  %v1499 = vrcp.pop %v1498
  %v1500 = vmul.f32 %v1498, %v1499
  %v1501 = vsub.f32 1.0, %v1500
  %v1502 = vmul.f32 %v1499, %v1501
  %v1503 = vadd.f32 %v1499, %v1502
  %vm1504 = vweird.f32 %v1498
  %vm1505 = vweird.f32 %v1499
  %vm1506 = vmor %vm1504, %vm1505
  %v1507 = vsel %vm1506, %v1499, %v1503
  %v1508 = vand.u32 2147483647, %v1498
  %vm1509 = vcmp.eq.f32.partialorder %v1508, 8.507059e+37
  %v1510 = vand.u32 %v1498, 2147483648
  %v1511 = vor.u32 1.1754944e-38, %v1510
  %v1512 = vsel %vm1509, %v1511, %v1507
  %v1513 = vmul.f32 1.0, %v1512
  %v1514 = vtanh.pop %v1494
  %v1515 = vmul.f32 %v1513, %v1310
  %1517 = vrot.lane.b32.xlu0 %v1514, 64
  %v1518 = vpop.permute.xlu0 %1517
  %v1520 = vmul.f32 %v1513, %v1518
  %1522 = vrot.lane.b32.xlu0 %v1520, 32
  %v1523 = vpop.permute.xlu0 %1522
  %v1525 = vadd.f32 %v1515, %v1523
  %v1526 = vtanh.pop %v1525
  %1528 = vrot.lane.b32.xlu0 %v1526, 64
  %v1529 = vpop.permute.xlu0 %1528
  %v1531 = vmul.f32 %v1513, %v1529
  %1533 = vrot.lane.b32.xlu0 %v1531, 32
  %v1534 = vpop.permute.xlu0 %1533
  %1536 = vst.msk [vmem:[#allocation2] sm:$0xff] %vm69, %v1534
  %1537 = vmatpush.msra.mxu0 0.0
  %1538 = vmatpush.msra.mxu0 0.0
  %1539 = vmatpush.msra.mxu0 0.0
  %1540 = vmatpush.msra.mxu0 0.0
  %1541 = vmatpush.msra.mxu0 0.0
  %1542 = vmatpush.msra.mxu0 0.0
  %1543 = vmatpush.msra.mxu0 0.0
  %1544 = vmatpush.msra.mxu0 0.0
  %1545 = vmatpush.msra.mxu0 0.0
  %1546 = vmatpush.msra.mxu0 0.0
  %1547 = vmatpush.msra.mxu0 0.0
  %1548 = vmatpush.msra.mxu0 0.0
  %1549 = vmatpush.msra.mxu0 %v1373
  %1550 = vmatpush.msra.mxu0 %v1372
  %1551 = vmatpush.msra.mxu0 %v1371
  %1552 = vmatpush.msra.mxu0 %v1370
  %1553 = vmatmul.f32.gmra.mxu0 %v1469
  %v1554 = vpop.f32.mrf.mxu0
  %v1555 = vadd.f32 0.0, %v1554
  %1556 = vdwg.mxu0
  %v1557 = vadd.f32 %v1362, %v1555
  %v1558 = vxor.u32 %v1557, 2147483648
  %v1559 = vmul.f32 %v1558, 1.442695
  %v1560 = vpow.pop %v1559
  %v1561 = vadd.f32 %v1560, 1.0
  %v1562 = vrcp.pop %v1561
  %v1563 = vmul.f32 %v1561, %v1562
  %v1564 = vsub.f32 1.0, %v1563
  %v1565 = vmul.f32 %v1562, %v1564
  %v1566 = vadd.f32 %v1562, %v1565
  %vm1567 = vweird.f32 %v1561
  %vm1568 = vweird.f32 %v1562
  %vm1569 = vmor %vm1567, %vm1568
  %v1570 = vsel %vm1569, %v1562, %v1566
  %v1571 = vand.u32 2147483647, %v1561
  %vm1572 = vcmp.eq.f32.partialorder %v1571, 8.507059e+37
  %v1573 = vand.u32 %v1561, 2147483648
  %v1574 = vor.u32 1.1754944e-38, %v1573
  %v1575 = vsel %vm1572, %v1574, %v1570
  %v1576 = vmul.f32 1.0, %v1575
  %v1577 = vtanh.pop %v1557
  %v1578 = vmul.f32 %v1576, %v1434
  %1580 = vrot.lane.b32.xlu0 %v1577, 64
  %v1581 = vpop.permute.xlu0 %1580
  %v1583 = vmul.f32 %v1576, %v1581
  %1585 = vrot.lane.b32.xlu0 %v1583, 32
  %v1586 = vpop.permute.xlu0 %1585
  %v1588 = vadd.f32 %v1578, %v1586
  %v1589 = vtanh.pop %v1588
  %1591 = vrot.lane.b32.xlu0 %v1589, 64
  %v1592 = vpop.permute.xlu0 %1591
  %v1594 = vmul.f32 %v1576, %v1592
  %v1595 = vsel %vm69, %v1534, 0
  %1597 = vmatpush.msra.mxu0 0.0
  %1598 = vmatpush.msra.mxu0 0.0
  %1599 = vmatpush.msra.mxu0 0.0
  %1600 = vmatpush.msra.mxu0 0.0
  %1601 = vmatpush.msra.mxu0 0.0
  %1602 = vmatpush.msra.mxu0 0.0
  %1603 = vmatpush.msra.mxu0 0.0
  %1604 = vmatpush.msra.mxu0 0.0
  %1605 = vmatpush.msra.mxu0 0.0
  %1606 = vmatpush.msra.mxu0 0.0
  %1607 = vmatpush.msra.mxu0 0.0
  %1608 = vmatpush.msra.mxu0 0.0
  %1609 = vmatpush.msra.mxu0 %v1381
  %1610 = vmatpush.msra.mxu0 %v1380
  %1611 = vmatpush.msra.mxu0 %v1379
  %1612 = vmatpush.msra.mxu0 %v1378
  %1613 = vmatmul.f32.gmra.mxu0 %v1595
  %v1614 = vpop.f32.mrf.mxu0
  %v1615 = vadd.f32 0.0, %v1614
  %1616 = vdwg.mxu0
  %1618 = vrot.lane.b32.xlu0 %v1594, 32
  %v1619 = vpop.permute.xlu0 %1618
  %v1620 = vsel %vm69, %v1619, 0
  %1622 = vmatpush.msra.mxu0 0.0
  %1623 = vmatpush.msra.mxu0 0.0
  %1624 = vmatpush.msra.mxu0 0.0
  %1625 = vmatpush.msra.mxu0 0.0
  %1626 = vmatpush.msra.mxu0 0.0
  %1627 = vmatpush.msra.mxu0 0.0
  %1628 = vmatpush.msra.mxu0 0.0
  %1629 = vmatpush.msra.mxu0 0.0
  %1630 = vmatpush.msra.mxu0 0.0
  %1631 = vmatpush.msra.mxu0 0.0
  %1632 = vmatpush.msra.mxu0 0.0
  %1633 = vmatpush.msra.mxu0 0.0
  %1634 = vmatpush.msra.mxu0 %v1377
  %1635 = vmatpush.msra.mxu0 %v1376
  %1636 = vmatpush.msra.mxu0 %v1375
  %1637 = vmatpush.msra.mxu0 %v1374
  %1638 = vmatmul.f32.gmra.mxu0 %v1620
  %v1639 = vpop.f32.mrf.mxu0
  %v1640 = vadd.f32 %v1615, %v1639
  %1641 = vdwg.mxu0
  %v1642 = vadd.f32 %v1640, %v1492
  %v1643 = vxor.u32 %v1642, 2147483648
  %v1644 = vmul.f32 %v1643, 1.442695
  %v1645 = vpow.pop %v1644
  %v1646 = vadd.f32 %v1645, 1.0
  %v1647 = vrcp.pop %v1646
  %v1648 = vmul.f32 %v1646, %v1647
  %v1649 = vsub.f32 1.0, %v1648
  %v1650 = vmul.f32 %v1647, %v1649
  %v1651 = vadd.f32 %v1647, %v1650
  %vm1652 = vweird.f32 %v1646
  %vm1653 = vweird.f32 %v1647
  %vm1654 = vmor %vm1652, %vm1653
  %v1655 = vsel %vm1654, %v1647, %v1651
  %v1656 = vand.u32 2147483647, %v1646
  %vm1657 = vcmp.eq.f32.partialorder %v1656, 8.507059e+37
  %v1658 = vand.u32 %v1646, 2147483648
  %v1659 = vor.u32 1.1754944e-38, %v1658
  %v1660 = vsel %vm1657, %v1659, %v1655
  %v1661 = vmul.f32 1.0, %v1660
  %v1662 = vtanh.pop %v1642
  %v1663 = vmul.f32 %v1661, %v1525
  %1665 = vrot.lane.b32.xlu0 %v1662, 64
  %v1666 = vpop.permute.xlu0 %1665
  %v1668 = vmul.f32 %v1661, %v1666
  %1670 = vrot.lane.b32.xlu0 %v1668, 32
  %v1671 = vpop.permute.xlu0 %1670
  %v1673 = vadd.f32 %v1663, %v1671
  %v1674 = vtanh.pop %v1673
  %1676 = vrot.lane.b32.xlu0 %v1674, 64
  %v1677 = vpop.permute.xlu0 %1676
  %v1679 = vmul.f32 %v1661, %v1677
  %1681 = vrot.lane.b32.xlu0 %v1679, 32
  %v1682 = vpop.permute.xlu0 %1681
  %1684 = vst.msk [vmem:[#allocation2 + $0x8] sm:$0xff] %vm69, %v1682
  %1685 = vmatpush.msra.mxu0 0.0
  %1686 = vmatpush.msra.mxu0 0.0
  %1687 = vmatpush.msra.mxu0 0.0
  %1688 = vmatpush.msra.mxu0 0.0
  %1689 = vmatpush.msra.mxu0 0.0
  %1690 = vmatpush.msra.mxu0 0.0
  %1691 = vmatpush.msra.mxu0 0.0
  %1692 = vmatpush.msra.mxu0 0.0
  %1693 = vmatpush.msra.mxu0 0.0
  %1694 = vmatpush.msra.mxu0 0.0
  %1695 = vmatpush.msra.mxu0 0.0
  %1696 = vmatpush.msra.mxu0 0.0
  %1697 = vmatpush.msra.mxu0 %v1373
  %1698 = vmatpush.msra.mxu0 %v1372
  %1699 = vmatpush.msra.mxu0 %v1371
  %1700 = vmatpush.msra.mxu0 %v1370
  %1701 = vmatmul.f32.gmra.mxu0 %v1620
  %v1702 = vpop.f32.mrf.mxu0
  %v1703 = vadd.f32 0.0, %v1702
  %1704 = vdwg.mxu0
  %v1705 = vadd.f32 %v1365, %v1703
  %v1706 = vxor.u32 %v1705, 2147483648
  %v1707 = vmul.f32 %v1706, 1.442695
  %v1708 = vpow.pop %v1707
  %v1709 = vadd.f32 %v1708, 1.0
  %v1710 = vrcp.pop %v1709
  %v1711 = vmul.f32 %v1709, %v1710
  %v1712 = vsub.f32 1.0, %v1711
  %v1713 = vmul.f32 %v1710, %v1712
  %v1714 = vadd.f32 %v1710, %v1713
  %vm1715 = vweird.f32 %v1709
  %vm1716 = vweird.f32 %v1710
  %vm1717 = vmor %vm1715, %vm1716
  %v1718 = vsel %vm1717, %v1710, %v1714
  %v1719 = vand.u32 2147483647, %v1709
  %vm1720 = vcmp.eq.f32.partialorder %v1719, 8.507059e+37
  %v1721 = vand.u32 %v1709, 2147483648
  %v1722 = vor.u32 1.1754944e-38, %v1721
  %v1723 = vsel %vm1720, %v1722, %v1718
  %v1724 = vmul.f32 1.0, %v1723
  %v1725 = vtanh.pop %v1705
  %v1726 = vmul.f32 %v1724, %v1588
  %1728 = vrot.lane.b32.xlu0 %v1725, 64
  %v1729 = vpop.permute.xlu0 %1728
  %v1731 = vmul.f32 %v1724, %v1729
  %1733 = vrot.lane.b32.xlu0 %v1731, 32
  %v1734 = vpop.permute.xlu0 %1733
  %v1736 = vadd.f32 %v1726, %v1734
  %v1737 = vtanh.pop %v1736
  %1739 = vrot.lane.b32.xlu0 %v1737, 64
  %v1740 = vpop.permute.xlu0 %1739
  %v1742 = vmul.f32 %v1724, %v1740
  %v1743 = vsel %vm69, %v1682, 0
  %1745 = vmatpush.msra.mxu0 0.0
  %1746 = vmatpush.msra.mxu0 0.0
  %1747 = vmatpush.msra.mxu0 0.0
  %1748 = vmatpush.msra.mxu0 0.0
  %1749 = vmatpush.msra.mxu0 0.0
  %1750 = vmatpush.msra.mxu0 0.0
  %1751 = vmatpush.msra.mxu0 0.0
  %1752 = vmatpush.msra.mxu0 0.0
  %1753 = vmatpush.msra.mxu0 0.0
  %1754 = vmatpush.msra.mxu0 0.0
  %1755 = vmatpush.msra.mxu0 0.0
  %1756 = vmatpush.msra.mxu0 0.0
  %1757 = vmatpush.msra.mxu0 %v1381
  %1758 = vmatpush.msra.mxu0 %v1380
  %1759 = vmatpush.msra.mxu0 %v1379
  %1760 = vmatpush.msra.mxu0 %v1378
  %1761 = vmatmul.f32.gmra.mxu0 %v1743
  %v1762 = vpop.f32.mrf.mxu0
  %v1763 = vadd.f32 0.0, %v1762
  %1764 = vdwg.mxu0
  %1766 = vrot.lane.b32.xlu0 %v1742, 32
  %v1767 = vpop.permute.xlu0 %1766
  %v1768 = vsel %vm69, %v1767, 0
  %1770 = vmatpush.msra.mxu0 0.0
  %1771 = vmatpush.msra.mxu0 0.0
  %1772 = vmatpush.msra.mxu0 0.0
  %1773 = vmatpush.msra.mxu0 0.0
  %1774 = vmatpush.msra.mxu0 0.0
  %1775 = vmatpush.msra.mxu0 0.0
  %1776 = vmatpush.msra.mxu0 0.0
  %1777 = vmatpush.msra.mxu0 0.0
  %1778 = vmatpush.msra.mxu0 0.0
  %1779 = vmatpush.msra.mxu0 0.0
  %1780 = vmatpush.msra.mxu0 0.0
  %1781 = vmatpush.msra.mxu0 0.0
  %1782 = vmatpush.msra.mxu0 %v1377
  %1783 = vmatpush.msra.mxu0 %v1376
  %1784 = vmatpush.msra.mxu0 %v1375
  %1785 = vmatpush.msra.mxu0 %v1374
  %1786 = vmatmul.f32.gmra.mxu0 %v1768
  %v1787 = vpop.f32.mrf.mxu0
  %v1788 = vadd.f32 %v1763, %v1787
  %1789 = vdwg.mxu0
  %v1790 = vadd.f32 %v1788, %v1492
  %v1791 = vxor.u32 %v1790, 2147483648
  %v1792 = vmul.f32 %v1791, 1.442695
  %v1793 = vpow.pop %v1792
  %v1794 = vadd.f32 %v1793, 1.0
  %v1795 = vrcp.pop %v1794
  %v1796 = vmul.f32 %v1794, %v1795
  %v1797 = vsub.f32 1.0, %v1796
  %v1798 = vmul.f32 %v1795, %v1797
  %v1799 = vadd.f32 %v1795, %v1798
  %vm1800 = vweird.f32 %v1794
  %vm1801 = vweird.f32 %v1795
  %vm1802 = vmor %vm1800, %vm1801
  %v1803 = vsel %vm1802, %v1795, %v1799
  %v1804 = vand.u32 2147483647, %v1794
  %vm1805 = vcmp.eq.f32.partialorder %v1804, 8.507059e+37
  %v1806 = vand.u32 %v1794, 2147483648
  %v1807 = vor.u32 1.1754944e-38, %v1806
  %v1808 = vsel %vm1805, %v1807, %v1803
  %v1809 = vmul.f32 1.0, %v1808
  %v1810 = vtanh.pop %v1790
  %v1811 = vmul.f32 %v1809, %v1673
  %1813 = vrot.lane.b32.xlu0 %v1810, 64
  %v1814 = vpop.permute.xlu0 %1813
  %v1816 = vmul.f32 %v1809, %v1814
  %1818 = vrot.lane.b32.xlu0 %v1816, 32
  %v1819 = vpop.permute.xlu0 %1818
  %v1821 = vadd.f32 %v1811, %v1819
  %v1822 = vtanh.pop %v1821
  %1824 = vrot.lane.b32.xlu0 %v1822, 64
  %v1825 = vpop.permute.xlu0 %1824
  %v1827 = vmul.f32 %v1809, %v1825
  %1829 = vrot.lane.b32.xlu0 %v1827, 32
  %v1830 = vpop.permute.xlu0 %1829
  %1832 = vst.msk [vmem:[#allocation2 + $0x10] sm:$0xff] %vm69, %v1830
  %1833 = vmatpush.msra.mxu0 0.0
  %1834 = vmatpush.msra.mxu0 0.0
  %1835 = vmatpush.msra.mxu0 0.0
  %1836 = vmatpush.msra.mxu0 0.0
  %1837 = vmatpush.msra.mxu0 0.0
  %1838 = vmatpush.msra.mxu0 0.0
  %1839 = vmatpush.msra.mxu0 0.0
  %1840 = vmatpush.msra.mxu0 0.0
  %1841 = vmatpush.msra.mxu0 0.0
  %1842 = vmatpush.msra.mxu0 0.0
  %1843 = vmatpush.msra.mxu0 0.0
  %1844 = vmatpush.msra.mxu0 0.0
  %1845 = vmatpush.msra.mxu0 %v1373
  %1846 = vmatpush.msra.mxu0 %v1372
  %1847 = vmatpush.msra.mxu0 %v1371
  %1848 = vmatpush.msra.mxu0 %v1370
  %1849 = vmatmul.f32.gmra.mxu0 %v1768
  %v1850 = vpop.f32.mrf.mxu0
  %v1851 = vadd.f32 0.0, %v1850
  %1852 = vdwg.mxu0
  %v1853 = vadd.f32 %v1368, %v1851
  %v1854 = vxor.u32 %v1853, 2147483648
  %v1855 = vmul.f32 %v1854, 1.442695
  %v1856 = vpow.pop %v1855
  %v1857 = vadd.f32 %v1856, 1.0
  %v1858 = vrcp.pop %v1857
  %v1859 = vmul.f32 %v1857, %v1858
  %v1860 = vsub.f32 1.0, %v1859
  %v1861 = vmul.f32 %v1858, %v1860
  %v1862 = vadd.f32 %v1858, %v1861
  %vm1863 = vweird.f32 %v1857
  %vm1864 = vweird.f32 %v1858
  %vm1865 = vmor %vm1863, %vm1864
  %v1866 = vsel %vm1865, %v1858, %v1862
  %v1867 = vand.u32 2147483647, %v1857
  %vm1868 = vcmp.eq.f32.partialorder %v1867, 8.507059e+37
  %v1869 = vand.u32 %v1857, 2147483648
  %v1870 = vor.u32 1.1754944e-38, %v1869
  %v1871 = vsel %vm1868, %v1870, %v1866
  %v1872 = vmul.f32 1.0, %v1871
  %v1873 = vtanh.pop %v1853
  %v1874 = vmul.f32 %v1872, %v1736
  %1876 = vrot.lane.b32.xlu0 %v1873, 64
  %v1877 = vpop.permute.xlu0 %1876
  %v1879 = vmul.f32 %v1872, %v1877
  %1881 = vrot.lane.b32.xlu0 %v1879, 32
  %v1882 = vpop.permute.xlu0 %1881
  %v1884 = vadd.f32 %v1874, %v1882
  %v1885 = vtanh.pop %v1884
  %1887 = vrot.lane.b32.xlu0 %v1885, 64
  %v1888 = vpop.permute.xlu0 %1887
  %v1890 = vmul.f32 %v1872, %v1888
  %v1891 = vsel %vm69, %v1830, 0
  %1893 = vmatpush.msra.mxu0 0.0
  %1894 = vmatpush.msra.mxu0 0.0
  %1895 = vmatpush.msra.mxu0 0.0
  %1896 = vmatpush.msra.mxu0 0.0
  %1897 = vmatpush.msra.mxu0 0.0
  %1898 = vmatpush.msra.mxu0 0.0
  %1899 = vmatpush.msra.mxu0 0.0
  %1900 = vmatpush.msra.mxu0 0.0
  %1901 = vmatpush.msra.mxu0 0.0
  %1902 = vmatpush.msra.mxu0 0.0
  %1903 = vmatpush.msra.mxu0 0.0
  %1904 = vmatpush.msra.mxu0 0.0
  %1905 = vmatpush.msra.mxu0 %v1381
  %1906 = vmatpush.msra.mxu0 %v1380
  %1907 = vmatpush.msra.mxu0 %v1379
  %1908 = vmatpush.msra.mxu0 %v1378
  %1909 = vmatmul.f32.gmra.mxu0 %v1891
  %v1910 = vpop.f32.mrf.mxu0
  %v1911 = vadd.f32 0.0, %v1910
  %1912 = vdwg.mxu0
  %1914 = vrot.lane.b32.xlu0 %v1890, 32
  %v1915 = vpop.permute.xlu0 %1914
  %v1916 = vsel %vm69, %v1915, 0
  %1918 = vmatpush.msra.mxu0 0.0
  %1919 = vmatpush.msra.mxu0 0.0
  %1920 = vmatpush.msra.mxu0 0.0
  %1921 = vmatpush.msra.mxu0 0.0
  %1922 = vmatpush.msra.mxu0 0.0
  %1923 = vmatpush.msra.mxu0 0.0
  %1924 = vmatpush.msra.mxu0 0.0
  %1925 = vmatpush.msra.mxu0 0.0
  %1926 = vmatpush.msra.mxu0 0.0
  %1927 = vmatpush.msra.mxu0 0.0
  %1928 = vmatpush.msra.mxu0 0.0
  %1929 = vmatpush.msra.mxu0 0.0
  %1930 = vmatpush.msra.mxu0 %v1377
  %1931 = vmatpush.msra.mxu0 %v1376
  %1932 = vmatpush.msra.mxu0 %v1375
  %1933 = vmatpush.msra.mxu0 %v1374
  %1934 = vmatmul.f32.gmra.mxu0 %v1916
  %v1935 = vpop.f32.mrf.mxu0
  %v1936 = vadd.f32 %v1911, %v1935
  %1937 = vdwg.mxu0
  %v1938 = vadd.f32 %v1936, %v1492
  %v1939 = vxor.u32 %v1938, 2147483648
  %v1940 = vmul.f32 %v1939, 1.442695
  %v1941 = vpow.pop %v1940
  %v1942 = vadd.f32 %v1941, 1.0
  %v1943 = vrcp.pop %v1942
  %v1944 = vmul.f32 %v1942, %v1943
  %v1945 = vsub.f32 1.0, %v1944
  %v1946 = vmul.f32 %v1943, %v1945
  %v1947 = vadd.f32 %v1943, %v1946
  %vm1948 = vweird.f32 %v1942
  %vm1949 = vweird.f32 %v1943
  %vm1950 = vmor %vm1948, %vm1949
  %v1951 = vsel %vm1950, %v1943, %v1947
  %v1952 = vand.u32 2147483647, %v1942
  %vm1953 = vcmp.eq.f32.partialorder %v1952, 8.507059e+37
  %v1954 = vand.u32 %v1942, 2147483648
  %v1955 = vor.u32 1.1754944e-38, %v1954
  %v1956 = vsel %vm1953, %v1955, %v1951
  %v1957 = vmul.f32 1.0, %v1956
  %v1958 = vtanh.pop %v1938
  %v1959 = vmul.f32 %v1957, %v1821
  %1961 = vrot.lane.b32.xlu0 %v1958, 64
  %v1962 = vpop.permute.xlu0 %1961
  %v1964 = vmul.f32 %v1957, %v1962
  %1966 = vrot.lane.b32.xlu0 %v1964, 32
  %v1967 = vpop.permute.xlu0 %1966
  %v1969 = vadd.f32 %v1959, %v1967
  %v1970 = vtanh.pop %v1969
  %1972 = vrot.lane.b32.xlu0 %v1970, 64
  %v1973 = vpop.permute.xlu0 %1972
  %v1975 = vmul.f32 %v1957, %v1973
  %1977 = vrot.lane.b32.xlu0 %v1975, 32
  %v1978 = vpop.permute.xlu0 %1977
  %1980 = vst.msk [vmem:[#allocation2 + $0x18] sm:$0xff] %vm69, %v1978
  %v1981 = vld [vmem:[#allocation2] sm:$0xff]
  %v1982 = vld [vmem:[#allocation2 + $0x8] sm:$0xff]
  %v1983 = vld [vmem:[#allocation2 + $0x10] sm:$0xff]
  %v1984 = vld [vmem:[#allocation2 + $0x18] sm:$0xff]
  %v1985 = vld [vmem:[%s14] sm:$0xff]
  %v1986 = vld [vmem:[%s14 + $0x8] sm:$0xff]
  %v1987 = vld [vmem:[%s14 + $0x10] sm:$0xff]
  %v1988 = vld [vmem:[%s14 + $0x18] sm:$0xff]
  %v1989 = vld [vmem:[%s15] sm:$0x1]
  %v1991 = vperm.slane %v1989, 0
  %v1994 = vsel %vm69, %v1981, 0
  %v1997 = vsel %vm69, %v1982, 0
  %v2000 = vsel %vm69, %v1983, 0
  %v2003 = vsel %vm69, %v1984, 0
  %2005 = vmatpush.msra.mxu0 0.0
  %2006 = vmatpush.msra.mxu0 0.0
  %2007 = vmatpush.msra.mxu0 0.0
  %2008 = vmatpush.msra.mxu0 0.0
  %2009 = vmatpush.msra.mxu0 0.0
  %2010 = vmatpush.msra.mxu0 0.0
  %2011 = vmatpush.msra.mxu0 0.0
  %2012 = vmatpush.msra.mxu0 0.0
  %2013 = vmatpush.msra.mxu0 0.0
  %2014 = vmatpush.msra.mxu0 0.0
  %2015 = vmatpush.msra.mxu0 0.0
  %2016 = vmatpush.msra.mxu0 0.0
  %2017 = vmatpush.msra.mxu0 %v1988
  %2018 = vmatpush.msra.mxu0 %v1987
  %2019 = vmatpush.msra.mxu0 %v1986
  %2020 = vmatpush.msra.mxu0 %v1985
  %2021 = vmatmul.f32.gmra.mxu0 %v1994
  %v2022 = vpop.f32.mrf.mxu0
  %v2023 = vadd.f32 %v1991, %v2022
  %2024 = vmatmul.f32.gmra.mxu0 %v1997
  %v2025 = vpop.f32.mrf.mxu0
  %v2026 = vadd.f32 %v1991, %v2025
  %2027 = vmatmul.f32.gmra.mxu0 %v2000
  %v2028 = vpop.f32.mrf.mxu0
  %v2029 = vadd.f32 %v1991, %v2028
  %2030 = vmatmul.f32.gmra.mxu0 %v2003
  %v2031 = vpop.f32.mrf.mxu0
  %v2032 = vadd.f32 %v1991, %v2031
  %2033 = vdwg.mxu0
  %2034 = vmax.xlane.f32.xlu0 %v2023
  %v2035 = vpop.xlane.xlu0 %2034
  %2036 = vmax.xlane.f32.xlu0 %v2026
  %v2037 = vpop.xlane.xlu0 %2036
  %2038 = vmax.xlane.f32.xlu0 %v2029
  %v2039 = vpop.xlane.xlu0 %2038
  %2040 = vmax.xlane.f32.xlu0 %v2032
  %v2041 = vpop.xlane.xlu0 %2040
  %v2042 = vsub.f32 %v2023, %v2035
  %v2043 = vsub.f32 %v2026, %v2037
  %v2044 = vsub.f32 %v2029, %v2039
  %v2045 = vsub.f32 %v2032, %v2041
  %v2046 = vmul.f32 %v2042, 1.442695
  %v2047 = vpow.pop %v2046
  %v2048 = vmul.f32 %v2043, 1.442695
  %v2049 = vpow.pop %v2048
  %v2050 = vmul.f32 %v2044, 1.442695
  %v2051 = vpow.pop %v2050
  %v2052 = vmul.f32 %v2045, 1.442695
  %v2053 = vpow.pop %v2052
  %2054 = vadd.xlane.f32.xlu0 %v2047
  %v2055 = vpop.xlane.xlu0 %2054
  %2056 = vadd.xlane.f32.xlu0 %v2049
  %v2057 = vpop.xlane.xlu0 %2056
  %2058 = vadd.xlane.f32.xlu0 %v2051
  %v2059 = vpop.xlane.xlu0 %2058
  %2060 = vadd.xlane.f32.xlu0 %v2053
  %v2061 = vpop.xlane.xlu0 %2060
  %v2062 = vlog2.pop %v2055
  %v2063 = vmul.f32 %v2062, 0.6931472
  %v2064 = vlog2.pop %v2057
  %v2065 = vmul.f32 %v2064, 0.6931472
  %v2066 = vlog2.pop %v2059
  %v2067 = vmul.f32 %v2066, 0.6931472
  %v2068 = vlog2.pop %v2061
  %v2069 = vmul.f32 %v2068, 0.6931472
  %v2070 = vsub.f32 %v2042, %v2063
  %v2071 = vsub.f32 %v2043, %v2065
  %v2072 = vsub.f32 %v2044, %v2067
  %v2073 = vsub.f32 %v2045, %v2069
  %2074 = vst [vmem:[%s16] sm:$0xff] %v2070
  %2075 = vst [vmem:[%s16 + $0x8] sm:$0xff] %v2071
  %2076 = vst [vmem:[%s16 + $0x10] sm:$0xff] %v2072
  %2077 = vst [vmem:[%s16 + $0x18] sm:$0xff] %v2073
  // Predicated region
  $region66: #{encdec_forward.1} parent=0 // pred_check
    _
  $region67: #{encdec_forward.1} parent=0 // pred_check_branch
    %2079 = sbr.rel (0) target = $region69
  $region68: #{encdec_forward.1} parent=0 // pred_region
    _
  $region69: #{encdec_forward.1} parent=0 // pred_fallthru
    _
  // Predicated region
  $region70: #{encdec_forward.1} parent=0 // pred_check
    _
  $region71: #{encdec_forward.1} parent=0 // pred_check_branch
    %2081 = sbr.rel (0) target = $region73
  $region72: #{encdec_forward.1} parent=0 // pred_region
    _
  $region73: #{encdec_forward.1} parent=0 // pred_fallthru
    _

</llo_original>
